<compile_context>
chip_gen: v7x
topology: tpu7x:2x2x1
jax: 0.10.0
libtpu: 0.0.40
codegen_flags: <defaults>
</compile_context>

<pallas_src>
import functools
import math

import jax
import jax.numpy as jnp
from jax.experimental import pallas as pl
from jax.experimental.pallas import tpu as pltpu

LN_EPS = 1e-5  # torch.nn.LayerNorm default

# order in which prepared params are passed to the kernel
KPARAM_ORDER = (
    "ln1_g", "ln1_b",
    "wq", "bq", "wkv", "bkv", "wo", "bo",
    "ln2_g", "ln2_b",
    "w1", "b1", "w2", "b2",
)


# ----------------------------- math helpers (shared by kernel & reference) -----------------
def _layernorm(x, gamma, beta):
    mu = jnp.mean(x, axis=-1, keepdims=True)
    var = jnp.mean((x - mu) ** 2, axis=-1, keepdims=True)
    return (x - mu) * jax.lax.rsqrt(var + LN_EPS) * gamma + beta


def _gelu_tanh(x):
    # tanh-approximate GELU (== jax.nn.gelu(approximate=True) / torch GELU(approximate='tanh')).
    # jnp.tanh lands on the EUP slot so it is nearly free next to the MXU work.
    c = math.sqrt(2.0 / math.pi)
    return 0.5 * x * (1.0 + jnp.tanh(c * (x + 0.044715 * (x * x * x))))


# ----------------------------- Pallas kernel -----------------------------------------------
def _block_kernel(n_heads, tq,
                  x_ref,
                  ln1_g, ln1_b, wq, bq, wkv, bkv, wo, bo,
                  ln2_g, ln2_b, w1, b1, w2, b2,
                  out_ref,
                  kt_scr, v_scr):
    """Grid = (batch, nx // tq).

    x_ref holds the full (1, nx, d) sequence of the current batch row (index_map constant
    in the q axis -> DMA'd once per batch row); out_ref is this step's (1, tq, d) tile.
    kt_scr (h, d_head, nx) / v_scr (h, nx, d_head) hold K^T / V for the whole sequence and
    are refilled on the first q-tile of every batch row (q axis is innermost, 'arbitrary').
    """
    nx = x_ref.shape[1]
    d_model = x_ref.shape[2]
    d_head = d_model // n_heads
    scale = 1.0 / math.sqrt(d_head)
    qi = pl.program_id(1)

    # -------- per-batch prologue: K/V projection for the whole sequence --------------------
    # Q is NOT projected here; it is computed per q-tile below.
    @pl.when(qi == 0)
    def _project_kv():
        # TODO(synk): for very long sequences, chunk this over ~256-row blocks (lax.fori_loop)
        # to bound live ranges, and add a flash-style KV-tiled path for v7x's 64 MiB VMEM.
        x_full = x_ref[0].astype(jnp.float32)                                  # (nx, d)
        h1 = _layernorm(x_full, ln1_g[...], ln1_b[...])
        kv = jnp.dot(h1.astype(jnp.bfloat16), wkv[...],
                     preferred_element_type=jnp.float32) + bkv[...]            # (nx, 2d) f32
        # One per-batch transpose so the per-tile score matmul needs none; K^T layout keeps
        # nx on the lane axis (no 128-lane padding of d_head in the K scratch).
        k_t = kv[:, :d_model].T                                                # (d, nx) f32
        v_f = kv[:, d_model:]                                                  # (nx, d) f32
        for hd in range(n_heads):
            lo = hd * d_head
            kt_scr[hd] = k_t[lo:lo + d_head, :].astype(kt_scr.dtype)           # sublane slice
            v_scr[hd] = v_f[:, lo:lo + d_head].astype(v_scr.dtype)             # lane slice

    # -------- attention for this q tile (all heads batched) --------------------------------
    row0 = pl.multiple_of(qi * tq, tq)
    x_t = x_ref[0, pl.ds(row0, tq), :].astype(jnp.float32)                     # (tq, d)
    h1_t = _layernorm(x_t, ln1_g[...], ln1_b[...])
    # per-tile Q projection; 1/sqrt(d_head) applied in f32 (matches the reference rounding)
    q_t = (jnp.dot(h1_t.astype(jnp.bfloat16), wq[...],
                   preferred_element_type=jnp.float32) + bq[...]) * scale      # (tq, d) f32
    q_bf = q_t.astype(jnp.bfloat16)
    q_h = jnp.stack([q_bf[:, hd * d_head:(hd + 1) * d_head]
                     for hd in range(n_heads)], axis=0)                        # (h, tq, dh)

    # scores: natural NN MXU matmul against pre-transposed K (contraction = d_head)
    att = jnp.einsum("hqd,hdk->hqk", q_h, kt_scr[...],
                     preferred_element_type=jnp.float32)                       # (h, tq, nx)
    att = jnp.exp(att - jnp.max(att, axis=-1, keepdims=True))
    att = att * pl.reciprocal(jnp.sum(att, axis=-1, keepdims=True), approx=True)

    o = jnp.einsum("hqk,hkd->hqd", att.astype(jnp.bfloat16), v_scr[...],
                   preferred_element_type=jnp.float32)                         # (h, tq, dh)
    # out-projection: lane-concat heads once, then ONE matmul with K = d_model
    # (full MXU fill; no (h, tq, d) f32 intermediate and no VPU head-sum).
    o2d = jnp.concatenate([o[hd].astype(jnp.bfloat16) for hd in range(n_heads)],
                          axis=-1)                                             # (tq, d) bf16
    sa = jnp.dot(o2d, wo[...], preferred_element_type=jnp.float32) + bo[...]
    x1 = x_t + sa                                                              # residual 1

    # -------- MLP branch --------------------------------------------------------------------
    h2 = _layernorm(x1, ln2_g[...], ln2_b[...])
    hid = jnp.dot(h2.astype(jnp.bfloat16), w1[...],
                  preferred_element_type=jnp.float32) + b1[...]                # (tq, hidden)
    hid = _gelu_tanh(hid)
    mlp = jnp.dot(hid.astype(jnp.bfloat16), w2[...],
                  preferred_element_type=jnp.float32) + b2[...]                # (tq, d)
    out_ref[0] = (x1 + mlp).astype(out_ref.dtype)                              # residual 2


# ----------------------------- wrapper ------------------------------------------------------
def prepare_kernel_params(params):
    """Cast / fuse the PyTorch-layout params (weights stored (in, out); biases (1, out))."""
    f32 = lambda a: a.astype(jnp.float32)
    bf16 = lambda a: a.astype(jnp.bfloat16)
    wkv = jnp.concatenate([params["wk"], params["wv"]], axis=1)
    bkv = jnp.concatenate([params["bk"], params["bv"]], axis=1)
    return {
        "ln1_g": f32(params["ln1_g"]), "ln1_b": f32(params["ln1_b"]),
        "wq": bf16(params["wq"]), "bq": f32(params["bq"]),
        "wkv": bf16(wkv), "bkv": f32(bkv),
        "wo": bf16(params["wo"]), "bo": f32(params["bo"]),
        "ln2_g": f32(params["ln2_g"]), "ln2_b": f32(params["ln2_b"]),
        "w1": bf16(params["w1"]), "b1": f32(params["b1"]),
        "w2": bf16(params["w2"]), "b2": f32(params["b2"]),
    }


def _vmem_cap_bytes():
    try:
        return int(pltpu.get_tpu_info().vmem_capacity_bytes)
    except Exception:
        return 64 * 1024 * 1024   # conservative (v7x per-core VMEM) if the query fails


def transformer_block(x, params, n_heads, seq_block=256):
    bs, nx, d = x.shape
    assert d % n_heads == 0
    assert nx % 8 == 0, "sequence length must be a multiple of 8 (sublane tile)"
    d_head = d // n_heads
    hidden = params["w1"].shape[1]

    # Sequence tile: prefer >=128 for real sizes (MXU row fill, per-step overhead); must
    # divide nx and be a multiple of 8.  Small nx falls back to one full-sequence tile.
    # TODO(synk): pad nx up to a multiple of 128 (needs key masking inside the softmax).
    tq = min(seq_block, nx)
    if nx % tq != 0 or tq % 8 != 0:
        tq = nx

    kparams = prepare_kernel_params(params)
    kparam_list = [kparams[name] for name in KPARAM_ORDER]

    # VMEM budget: x block (x2 buffers) + out block (x2) + weights + K^T/V scratch + headroom
    # for the per-tile live values (scores, MLP hidden, prologue KV).  Clamped to chip VMEM.
    param_bytes = sum(int(p.size) * p.dtype.itemsize for p in kparam_list)
    need = (2 * nx * d * x.dtype.itemsize
            + 2 * tq * d * x.dtype.itemsize
            + 2 * param_bytes                                   # safe even if double-buffered
            + n_heads * d_head * max(nx, 128) * 2               # K^T scratch (bf16, lane-dense)
            + n_heads * nx * max(d_head, 128) * 2               # V scratch (bf16, lane-padded)
            + 2 * (n_heads * tq * max(nx, 128) * 4              # score tile
                   + tq * max(hidden, 128) * 4                  # MLP hidden tile
                   + nx * max(2 * d, 128) * 4)                  # prologue KV intermediate
            + (4 << 20))
    vmem_limit = int(min(max(need, 32 << 20), int(_vmem_cap_bytes() * 0.9)))

    out_shape = jax.ShapeDtypeStruct((bs, nx, d), x.dtype)
    scratch_shapes = [
        pltpu.VMEM((n_heads, d_head, nx), jnp.bfloat16),   # K^T
        pltpu.VMEM((n_heads, nx, d_head), jnp.bfloat16),   # V
    ]

    def build(single_buffer_weights):
        def rep_spec(shape):
            zeros = (0,) * len(shape)
            if single_buffer_weights:
                # grid-invariant weights: multi-buffering buys nothing for a constant
                # index_map and doubles their VMEM footprint -> single-buffer them.
                return pl.BlockSpec(shape, lambda b, q: zeros,
                                    pipeline_mode=pl.Buffered(1))
            return pl.BlockSpec(shape, lambda b, q: zeros)

        in_specs = [pl.BlockSpec((1, nx, d), lambda b, q: (b, 0, 0))]  # full seq, once/batch
        in_specs += [rep_spec(p.shape) for p in kparam_list]
        out_specs = pl.BlockSpec((1, tq, d), lambda b, q: (b, q, 0))

        # TODO(synk): on v7x (2 TensorCores) add a second parallel grid axis (head groups)
        # so both cores stay busy when bs is small or odd.
        return pl.pallas_call(
            functools.partial(_block_kernel, n_heads, tq),
            out_shape=out_shape,
            grid=(bs, nx // tq),
            in_specs=in_specs,
            out_specs=out_specs,
            scratch_shapes=scratch_shapes,
            compiler_params=pltpu.CompilerParams(
                dimension_semantics=("parallel", "arbitrary"),
                vmem_limit_bytes=vmem_limit),
        )

    try:
        return build(single_buffer_weights=True)(x, *kparam_list)
    except Exception:
        # jax versions without BlockSpec.pipeline_mode / Buffered(1): same math with the
        # default (double-buffered) weight blocks.
        return build(single_buffer_weights=False)(x, *kparam_list)


# ----------------------------- pure-JAX reference -------------------------------------------
def reference_block(x, params, n_heads, matmul_dtype=jnp.float32, approx_gelu=False):
    """Pure-JAX reference of the PyTorch module.  matmul_dtype=bf16 + approx_gelu=True
    mirrors the kernel's MXU precision / tanh GELU for the tight check."""
    cast = lambda a: a.astype(matmul_dtype)
    mm = lambda a, b: jnp.dot(cast(a), cast(b), preferred_element_type=jnp.float32)
    gelu = (lambda v: jax.nn.gelu(v, approximate=True)) if approx_gelu else \
           (lambda v: jax.nn.gelu(v, approximate=False))

    x = x.astype(jnp.float32)
    bs, nx, d_model = x.shape
    d_head = d_model // n_heads
    scale = 1.0 / math.sqrt(d_head)

    h1 = _layernorm(x, params["ln1_g"], params["ln1_b"])
    q = (mm(h1, params["wq"]) + params["bq"]) * scale   # scaling q == scaling att by 1/sqrt(dk)
    k = mm(h1, params["wk"]) + params["bk"]
    v = mm(h1, params["wv"]) + params["bv"]
    qh = q.reshape(bs, nx, n_heads, d_head).transpose(0, 2, 1, 3)
    kh = k.reshape(bs, nx, n_heads, d_head).transpose(0, 2, 1, 3)
    vh = v.reshape(bs, nx, n_heads, d_head).transpose(0, 2, 1, 3)
    att = jnp.einsum("bhqd,bhkd->bhqk", cast(qh), cast(kh),
                     preferred_element_type=jnp.float32)
    att = jax.nn.softmax(att, axis=-1)
    o = jnp.einsum("bhqk,bhkd->bhqd", cast(att), cast(vh),
                   preferred_element_type=jnp.float32)
    o = o.transpose(0, 2, 1, 3).reshape(bs, nx, d_model)
    x = x + mm(o, params["wo"]) + params["bo"]

    h2 = _layernorm(x, params["ln2_g"], params["ln2_b"])
    hid = gelu(mm(h2, params["w1"]) + params["b1"])
    x = x + mm(hid, params["w2"]) + params["b2"]
    return x


# ----------------------------- synthetic params & test --------------------------------------
def make_params(key, d_model, block_exp):
    # Deterministic synthetic init (shapes follow the PyTorch module); weights stored
    # pre-transposed as (in_features, out_features); biases as (1, d) rows.
    hidden = block_exp * d_model
    ks = jax.random.split(key, 12)
    n = lambda k, shape, s: jax.random.normal(k, shape, jnp.float32) * s
    params = {
        "ln1_g": 1.0 + n(ks[0], (1, d_model), 0.05),
        "ln1_b": n(ks[1], (1, d_model), 0.05),
        "wq": n(ks[2], (d_model, d_model), 0.05), "bq": n(ks[3], (1, d_model), 0.01),
        "wk": n(ks[4], (d_model, d_model), 0.05), "bk": n(ks[5], (1, d_model), 0.01),
        "wv": n(ks[6], (d_model, d_model), 0.05), "bv": n(ks[7], (1, d_model), 0.01),
        "wo": n(ks[8], (d_model, d_model), 0.05), "bo": n(ks[9], (1, d_model), 0.01),
        "ln2_g": 1.0 + n(ks[10], (1, d_model), 0.05),
        "ln2_b": n(ks[11], (1, d_model), 0.05),
    }
    ks2 = jax.random.split(jax.random.fold_in(key, 123), 4)
    params.update({
        "w1": n(ks2[0], (d_model, hidden), 0.05), "b1": n(ks2[1], (1, hidden), 0.01),
        "w2": n(ks2[2], (hidden, d_model), 0.05), "b2": n(ks2[3], (1, d_model), 0.01),
    })
    return params


if __name__ == "__main__":
    # TODO(synk): dropout (attn_pdrop / resid_pdrop) is identity (eval mode); the optional
    # attention_mask / attention_weights arguments (None in this block) are not implemented.
    bs, nx, d_model = 2, 16, 32          # (b_s, nx, c) with nx = H*W of a feature map
    n_heads, block_exp = 4, 4

    key = jax.random.PRNGKey(0)
    kx, kp = jax.random.split(key)
    x = jax.random.normal(kx, (bs, nx, d_model), jnp.float32)
    params = make_params(kp, d_model, block_exp)

    out = transformer_block(x, params, n_heads, seq_block=8)   # 2 q-tiles per batch row
    out = jax.block_until_ready(out)
    assert out.shape == (bs, nx, d_model)

    # tight check vs. a reference mirroring the kernel's bf16-MXU / f32-acc / tanh-GELU math
    ref_bf16 = reference_block(x, params, n_heads, matmul_dtype=jnp.bfloat16, approx_gelu=True)
    err_bf16 = float(jnp.max(jnp.abs(out - ref_bf16)))
    assert jnp.allclose(out, ref_bf16, atol=3e-3, rtol=3e-3), err_bf16

    # loose semantic check vs. the full-f32, exact-erf-GELU PyTorch-equivalent math
    ref_f32 = reference_block(x, params, n_heads)
    err_f32 = float(jnp.max(jnp.abs(out - ref_f32)))
    assert jnp.allclose(out, ref_f32, atol=2e-2, rtol=2e-2), err_f32

    print("KERNEL_OK")
</pallas_src>

<mosaic_0001>
module attributes {stable_mosaic.version = 11 : i64} {
  func.func @_block_kernel(%arg0: i32, %arg1: i32, %arg2: memref<1x16x32xf32, #tpu.memory_space<vmem>>, %arg3: memref<1x32xf32, #tpu.memory_space<vmem>>, %arg4: memref<1x32xf32, #tpu.memory_space<vmem>>, %arg5: memref<32x32xbf16, #tpu.memory_space<vmem>>, %arg6: memref<1x32xf32, #tpu.memory_space<vmem>>, %arg7: memref<32x64xbf16, #tpu.memory_space<vmem>>, %arg8: memref<1x64xf32, #tpu.memory_space<vmem>>, %arg9: memref<32x32xbf16, #tpu.memory_space<vmem>>, %arg10: memref<1x32xf32, #tpu.memory_space<vmem>>, %arg11: memref<1x32xf32, #tpu.memory_space<vmem>>, %arg12: memref<1x32xf32, #tpu.memory_space<vmem>>, %arg13: memref<32x128xbf16, #tpu.memory_space<vmem>>, %arg14: memref<1x128xf32, #tpu.memory_space<vmem>>, %arg15: memref<128x32xbf16, #tpu.memory_space<vmem>>, %arg16: memref<1x32xf32, #tpu.memory_space<vmem>>, %arg17: memref<1x8x32xf32, #tpu.memory_space<vmem>>, %arg18: memref<4x8x16xbf16, #tpu.memory_space<vmem>>, %arg19: memref<4x16x8xbf16, #tpu.memory_space<vmem>>) attributes {dimension_semantics = [#tpu.dimension_semantics<parallel>, #tpu.dimension_semantics<arbitrary>], iteration_bounds = array<i64: 2, 2>, scalar_prefetch = 0 : i64, scratch_operands = 2 : i64, tpu.core_type = #tpu.core_type<tc>, window_params = [{transform_indices = @transform_0, window_bounds = array<i64: 1, 16, 32>}, {pipeline_mode = #tpu.pipeline_mode<synchronous>, transform_indices = @transform_1, window_bounds = array<i64: 1, 32>}, {pipeline_mode = #tpu.pipeline_mode<synchronous>, transform_indices = @transform_2, window_bounds = array<i64: 1, 32>}, {pipeline_mode = #tpu.pipeline_mode<synchronous>, transform_indices = @transform_3, window_bounds = array<i64: 32, 32>}, {pipeline_mode = #tpu.pipeline_mode<synchronous>, transform_indices = @transform_4, window_bounds = array<i64: 1, 32>}, {pipeline_mode = #tpu.pipeline_mode<synchronous>, transform_indices = @transform_5, window_bounds = array<i64: 32, 64>}, {pipeline_mode = #tpu.pipeline_mode<synchronous>, transform_indices = @transform_6, window_bounds = array<i64: 1, 64>}, {pipeline_mode = #tpu.pipeline_mode<synchronous>, transform_indices = @transform_7, window_bounds = array<i64: 32, 32>}, {pipeline_mode = #tpu.pipeline_mode<synchronous>, transform_indices = @transform_8, window_bounds = array<i64: 1, 32>}, {pipeline_mode = #tpu.pipeline_mode<synchronous>, transform_indices = @transform_9, window_bounds = array<i64: 1, 32>}, {pipeline_mode = #tpu.pipeline_mode<synchronous>, transform_indices = @transform_10, window_bounds = array<i64: 1, 32>}, {pipeline_mode = #tpu.pipeline_mode<synchronous>, transform_indices = @transform_11, window_bounds = array<i64: 32, 128>}, {pipeline_mode = #tpu.pipeline_mode<synchronous>, transform_indices = @transform_12, window_bounds = array<i64: 1, 128>}, {pipeline_mode = #tpu.pipeline_mode<synchronous>, transform_indices = @transform_13, window_bounds = array<i64: 128, 32>}, {pipeline_mode = #tpu.pipeline_mode<synchronous>, transform_indices = @transform_14, window_bounds = array<i64: 1, 32>}, {transform_indices = @transform_15, window_bounds = array<i64: 1, 8, 32>}]} {
    %c0_i32 = arith.constant 0 : i32
    %0 = arith.cmpi eq, %arg1, %c0_i32 : i32
    %1 = arith.extui %0 : i1 to i32
    %c0_i32_0 = arith.constant 0 : i32
    %2 = arith.cmpi ne, %1, %c0_i32_0 : i32
    scf.if %2 {
      %c0_57 = arith.constant 0 : index
      %c0_58 = arith.constant 0 : index
      %c0_59 = arith.constant 0 : index
      %137 = vector.load %arg2[%c0_57, %c0_58, %c0_59] : memref<1x16x32xf32, #tpu.memory_space<vmem>>, vector<1x16x32xf32>
      %138 = vector.shape_cast %137 : vector<1x16x32xf32> to vector<16x32xf32>
      %c0_60 = arith.constant 0 : index
      %c0_61 = arith.constant 0 : index
      %139 = vector.load %arg3[%c0_60, %c0_61] : memref<1x32xf32, #tpu.memory_space<vmem>>, vector<1x32xf32>
      %c0_62 = arith.constant 0 : index
      %c0_63 = arith.constant 0 : index
      %140 = vector.load %arg4[%c0_62, %c0_63] : memref<1x32xf32, #tpu.memory_space<vmem>>, vector<1x32xf32>
      %cst_64 = arith.constant dense<0.000000e+00> : vector<16xf32>
      %141 = vector.multi_reduction <add>, %138, %cst_64 [1] : vector<16x32xf32> to vector<16xf32>
      %142 = vector.shape_cast %141 : vector<16xf32> to vector<16x1xf32>
      %cst_65 = arith.constant 3.200000e+01 : f32
      %143 = vector.broadcast %cst_65 : f32 to vector<16x1xf32>
      %144 = arith.divf %142, %143 : vector<16x1xf32>
      %145 = vector.broadcast %144 : vector<16x1xf32> to vector<16x32xf32>
      %146 = arith.subf %138, %145 : vector<16x32xf32>
      %147 = arith.mulf %146, %146 : vector<16x32xf32>
      %cst_66 = arith.constant dense<0.000000e+00> : vector<16xf32>
      %148 = vector.multi_reduction <add>, %147, %cst_66 [1] : vector<16x32xf32> to vector<16xf32>
      %149 = vector.shape_cast %148 : vector<16xf32> to vector<16x1xf32>
      %cst_67 = arith.constant 3.200000e+01 : f32
      %150 = vector.broadcast %cst_67 : f32 to vector<16x1xf32>
      %151 = arith.divf %149, %150 : vector<16x1xf32>
      %152 = vector.broadcast %144 : vector<16x1xf32> to vector<16x32xf32>
      %153 = arith.subf %138, %152 : vector<16x32xf32>
      %cst_68 = arith.constant 9.99999974E-6 : f32
      %154 = vector.broadcast %cst_68 : f32 to vector<16x1xf32>
      %155 = arith.addf %151, %154 : vector<16x1xf32>
      %156 = math.rsqrt %155 : vector<16x1xf32>
      %157 = vector.broadcast %156 : vector<16x1xf32> to vector<16x32xf32>
      %158 = arith.mulf %153, %157 : vector<16x32xf32>
      %159 = vector.broadcast %139 : vector<1x32xf32> to vector<16x32xf32>
      %160 = arith.mulf %158, %159 : vector<16x32xf32>
      %161 = vector.broadcast %140 : vector<1x32xf32> to vector<16x32xf32>
      %162 = arith.addf %160, %161 : vector<16x32xf32>
      %163 = arith.truncf %162 : vector<16x32xf32> to vector<16x32xbf16>
      %c0_69 = arith.constant 0 : index
      %c0_70 = arith.constant 0 : index
      %164 = vector.load %arg7[%c0_69, %c0_70] : memref<32x64xbf16, #tpu.memory_space<vmem>>, vector<32x64xbf16>
      %cst_71 = arith.constant dense<0.000000e+00> : vector<16x64xf32>
      %165 = tpu.matmul %163, %164, %cst_71 {dimension_numbers = #tpu.dot_dimension_numbers<[1], [0], [0], [1], [0, 0, 1, 1], [], []>} : vector<16x32xbf16>, vector<32x64xbf16>, vector<16x64xf32> -> vector<16x64xf32>
      %c0_72 = arith.constant 0 : index
      %c0_73 = arith.constant 0 : index
      %166 = vector.load %arg8[%c0_72, %c0_73] : memref<1x64xf32, #tpu.memory_space<vmem>>, vector<1x64xf32>
      %167 = vector.broadcast %166 : vector<1x64xf32> to vector<16x64xf32>
      %168 = arith.addf %165, %167 : vector<16x64xf32>
      %169 = vector.extract_strided_slice %168 {offsets = [0, 0], sizes = [16, 32], strides = [1, 1]} : vector<16x64xf32> to vector<16x32xf32>
      %170 = tpu.transpose %169, [1, 0] : vector<16x32xf32> -> vector<32x16xf32>
      %171 = vector.extract_strided_slice %168 {offsets = [0, 32], sizes = [16, 32], strides = [1, 1]} : vector<16x64xf32> to vector<16x32xf32>
      %172 = vector.extract_strided_slice %170 {offsets = [0, 0], sizes = [8, 16], strides = [1, 1]} : vector<32x16xf32> to vector<8x16xf32>
      %173 = arith.truncf %172 : vector<8x16xf32> to vector<8x16xbf16>
      %c0_74 = arith.constant 0 : index
      %c0_75 = arith.constant 0 : index
      %c0_76 = arith.constant 0 : index
      %174 = vector.load %arg18[%c0_74, %c0_75, %c0_76] : memref<4x8x16xbf16, #tpu.memory_space<vmem>>, vector<1x8x16xbf16>
      %175 = vector.shape_cast %174 : vector<1x8x16xbf16> to vector<8x16xbf16>
      %176 = vector.shape_cast %173 : vector<8x16xbf16> to vector<1x8x16xbf16>
      tpu.vector_store %arg18[%c0_74, %c0_75, %c0_76], %176 {strides = array<i32>} : memref<4x8x16xbf16, #tpu.memory_space<vmem>>, vector<1x8x16xbf16>,
      %177 = vector.extract_strided_slice %171 {offsets = [0, 0], sizes = [16, 8], strides = [1, 1]} : vector<16x32xf32> to vector<16x8xf32>
      %178 = arith.truncf %177 : vector<16x8xf32> to vector<16x8xbf16>
      %c0_77 = arith.constant 0 : index
      %c0_78 = arith.constant 0 : index
      %c0_79 = arith.constant 0 : index
      %179 = vector.load %arg19[%c0_77, %c0_78, %c0_79] : memref<4x16x8xbf16, #tpu.memory_space<vmem>>, vector<1x16x8xbf16>
      %180 = vector.shape_cast %179 : vector<1x16x8xbf16> to vector<16x8xbf16>
      %181 = vector.shape_cast %178 : vector<16x8xbf16> to vector<1x16x8xbf16>
      tpu.vector_store %arg19[%c0_77, %c0_78, %c0_79], %181 {strides = array<i32>} : memref<4x16x8xbf16, #tpu.memory_space<vmem>>, vector<1x16x8xbf16>,
      %182 = vector.extract_strided_slice %170 {offsets = [8, 0], sizes = [8, 16], strides = [1, 1]} : vector<32x16xf32> to vector<8x16xf32>
      %183 = arith.truncf %182 : vector<8x16xf32> to vector<8x16xbf16>
      %c1 = arith.constant 1 : index
      %c0_80 = arith.constant 0 : index
      %c0_81 = arith.constant 0 : index
      %184 = vector.load %arg18[%c1, %c0_80, %c0_81] : memref<4x8x16xbf16, #tpu.memory_space<vmem>>, vector<1x8x16xbf16>
      %185 = vector.shape_cast %184 : vector<1x8x16xbf16> to vector<8x16xbf16>
      %186 = vector.shape_cast %183 : vector<8x16xbf16> to vector<1x8x16xbf16>
      tpu.vector_store %arg18[%c1, %c0_80, %c0_81], %186 {strides = array<i32>} : memref<4x8x16xbf16, #tpu.memory_space<vmem>>, vector<1x8x16xbf16>,
      %187 = vector.extract_strided_slice %171 {offsets = [0, 8], sizes = [16, 8], strides = [1, 1]} : vector<16x32xf32> to vector<16x8xf32>
      %188 = arith.truncf %187 : vector<16x8xf32> to vector<16x8xbf16>
      %c1_82 = arith.constant 1 : index
      %c0_83 = arith.constant 0 : index
      %c0_84 = arith.constant 0 : index
      %189 = vector.load %arg19[%c1_82, %c0_83, %c0_84] : memref<4x16x8xbf16, #tpu.memory_space<vmem>>, vector<1x16x8xbf16>
      %190 = vector.shape_cast %189 : vector<1x16x8xbf16> to vector<16x8xbf16>
      %191 = vector.shape_cast %188 : vector<16x8xbf16> to vector<1x16x8xbf16>
      tpu.vector_store %arg19[%c1_82, %c0_83, %c0_84], %191 {strides = array<i32>} : memref<4x16x8xbf16, #tpu.memory_space<vmem>>, vector<1x16x8xbf16>,
      %192 = vector.extract_strided_slice %170 {offsets = [16, 0], sizes = [8, 16], strides = [1, 1]} : vector<32x16xf32> to vector<8x16xf32>
      %193 = arith.truncf %192 : vector<8x16xf32> to vector<8x16xbf16>
      %c2 = arith.constant 2 : index
      %c0_85 = arith.constant 0 : index
      %c0_86 = arith.constant 0 : index
      %194 = vector.load %arg18[%c2, %c0_85, %c0_86] : memref<4x8x16xbf16, #tpu.memory_space<vmem>>, vector<1x8x16xbf16>
      %195 = vector.shape_cast %194 : vector<1x8x16xbf16> to vector<8x16xbf16>
      %196 = vector.shape_cast %193 : vector<8x16xbf16> to vector<1x8x16xbf16>
      tpu.vector_store %arg18[%c2, %c0_85, %c0_86], %196 {strides = array<i32>} : memref<4x8x16xbf16, #tpu.memory_space<vmem>>, vector<1x8x16xbf16>,
      %197 = vector.extract_strided_slice %171 {offsets = [0, 16], sizes = [16, 8], strides = [1, 1]} : vector<16x32xf32> to vector<16x8xf32>
      %198 = arith.truncf %197 : vector<16x8xf32> to vector<16x8xbf16>
      %c2_87 = arith.constant 2 : index
      %c0_88 = arith.constant 0 : index
      %c0_89 = arith.constant 0 : index
      %199 = vector.load %arg19[%c2_87, %c0_88, %c0_89] : memref<4x16x8xbf16, #tpu.memory_space<vmem>>, vector<1x16x8xbf16>
      %200 = vector.shape_cast %199 : vector<1x16x8xbf16> to vector<16x8xbf16>
      %201 = vector.shape_cast %198 : vector<16x8xbf16> to vector<1x16x8xbf16>
      tpu.vector_store %arg19[%c2_87, %c0_88, %c0_89], %201 {strides = array<i32>} : memref<4x16x8xbf16, #tpu.memory_space<vmem>>, vector<1x16x8xbf16>,
      %202 = vector.extract_strided_slice %170 {offsets = [24, 0], sizes = [8, 16], strides = [1, 1]} : vector<32x16xf32> to vector<8x16xf32>
      %203 = arith.truncf %202 : vector<8x16xf32> to vector<8x16xbf16>
      %c3 = arith.constant 3 : index
      %c0_90 = arith.constant 0 : index
      %c0_91 = arith.constant 0 : index
      %204 = vector.load %arg18[%c3, %c0_90, %c0_91] : memref<4x8x16xbf16, #tpu.memory_space<vmem>>, vector<1x8x16xbf16>
      %205 = vector.shape_cast %204 : vector<1x8x16xbf16> to vector<8x16xbf16>
      %206 = vector.shape_cast %203 : vector<8x16xbf16> to vector<1x8x16xbf16>
      tpu.vector_store %arg18[%c3, %c0_90, %c0_91], %206 {strides = array<i32>} : memref<4x8x16xbf16, #tpu.memory_space<vmem>>, vector<1x8x16xbf16>,
      %207 = vector.extract_strided_slice %171 {offsets = [0, 24], sizes = [16, 8], strides = [1, 1]} : vector<16x32xf32> to vector<16x8xf32>
      %208 = arith.truncf %207 : vector<16x8xf32> to vector<16x8xbf16>
      %c3_92 = arith.constant 3 : index
      %c0_93 = arith.constant 0 : index
      %c0_94 = arith.constant 0 : index
      %209 = vector.load %arg19[%c3_92, %c0_93, %c0_94] : memref<4x16x8xbf16, #tpu.memory_space<vmem>>, vector<1x16x8xbf16>
      %210 = vector.shape_cast %209 : vector<1x16x8xbf16> to vector<16x8xbf16>
      %211 = vector.shape_cast %208 : vector<16x8xbf16> to vector<1x16x8xbf16>
      tpu.vector_store %arg19[%c3_92, %c0_93, %c0_94], %211 {strides = array<i32>} : memref<4x16x8xbf16, #tpu.memory_space<vmem>>, vector<1x16x8xbf16>,
    } else {
    }
    %c8_i32 = arith.constant 8 : i32
    %3 = arith.muli %arg1, %c8_i32 : i32
    %4 = tpu.assume_multiple %3, 8 : i32
    %c0 = arith.constant 0 : index
    %5 = arith.index_cast %4 : i32 to index
    %c0_1 = arith.constant 0 : index
    %6 = vector.load %arg2[%c0, %5, %c0_1] : memref<1x16x32xf32, #tpu.memory_space<vmem>>, vector<1x8x32xf32>
    %7 = vector.shape_cast %6 : vector<1x8x32xf32> to vector<8x32xf32>
    %c0_2 = arith.constant 0 : index
    %c0_3 = arith.constant 0 : index
    %8 = vector.load %arg3[%c0_2, %c0_3] : memref<1x32xf32, #tpu.memory_space<vmem>>, vector<1x32xf32>
    %c0_4 = arith.constant 0 : index
    %c0_5 = arith.constant 0 : index
    %9 = vector.load %arg4[%c0_4, %c0_5] : memref<1x32xf32, #tpu.memory_space<vmem>>, vector<1x32xf32>
    %cst = arith.constant dense<0.000000e+00> : vector<8xf32>
    %10 = vector.multi_reduction <add>, %7, %cst [1] : vector<8x32xf32> to vector<8xf32>
    %11 = vector.shape_cast %10 : vector<8xf32> to vector<8x1xf32>
    %cst_6 = arith.constant 3.200000e+01 : f32
    %12 = vector.broadcast %cst_6 : f32 to vector<8x1xf32>
    %13 = arith.divf %11, %12 : vector<8x1xf32>
    %14 = vector.broadcast %13 : vector<8x1xf32> to vector<8x32xf32>
    %15 = arith.subf %7, %14 : vector<8x32xf32>
    %16 = arith.mulf %15, %15 : vector<8x32xf32>
    %cst_7 = arith.constant dense<0.000000e+00> : vector<8xf32>
    %17 = vector.multi_reduction <add>, %16, %cst_7 [1] : vector<8x32xf32> to vector<8xf32>
    %18 = vector.shape_cast %17 : vector<8xf32> to vector<8x1xf32>
    %cst_8 = arith.constant 3.200000e+01 : f32
    %19 = vector.broadcast %cst_8 : f32 to vector<8x1xf32>
    %20 = arith.divf %18, %19 : vector<8x1xf32>
    %21 = vector.broadcast %13 : vector<8x1xf32> to vector<8x32xf32>
    %22 = arith.subf %7, %21 : vector<8x32xf32>
    %cst_9 = arith.constant 9.99999974E-6 : f32
    %23 = vector.broadcast %cst_9 : f32 to vector<8x1xf32>
    %24 = arith.addf %20, %23 : vector<8x1xf32>
    %25 = math.rsqrt %24 : vector<8x1xf32>
    %26 = vector.broadcast %25 : vector<8x1xf32> to vector<8x32xf32>
    %27 = arith.mulf %22, %26 : vector<8x32xf32>
    %28 = vector.broadcast %8 : vector<1x32xf32> to vector<8x32xf32>
    %29 = arith.mulf %27, %28 : vector<8x32xf32>
    %30 = vector.broadcast %9 : vector<1x32xf32> to vector<8x32xf32>
    %31 = arith.addf %29, %30 : vector<8x32xf32>
    %32 = arith.truncf %31 : vector<8x32xf32> to vector<8x32xbf16>
    %c0_10 = arith.constant 0 : index
    %c0_11 = arith.constant 0 : index
    %33 = vector.load %arg5[%c0_10, %c0_11] : memref<32x32xbf16, #tpu.memory_space<vmem>>, vector<32x32xbf16>
    %cst_12 = arith.constant dense<0.000000e+00> : vector<8x32xf32>
    %34 = tpu.matmul %32, %33, %cst_12 {dimension_numbers = #tpu.dot_dimension_numbers<[1], [0], [0], [1], [0, 0, 1, 1], [], []>} : vector<8x32xbf16>, vector<32x32xbf16>, vector<8x32xf32> -> vector<8x32xf32>
    %c0_13 = arith.constant 0 : index
    %c0_14 = arith.constant 0 : index
    %35 = vector.load %arg6[%c0_13, %c0_14] : memref<1x32xf32, #tpu.memory_space<vmem>>, vector<1x32xf32>
    %36 = vector.broadcast %35 : vector<1x32xf32> to vector<8x32xf32>
    %37 = arith.addf %34, %36 : vector<8x32xf32>
    %cst_15 = arith.constant 0.353553385 : f32
    %38 = vector.broadcast %cst_15 : f32 to vector<8x32xf32>
    %39 = arith.mulf %37, %38 : vector<8x32xf32>
    %40 = arith.truncf %39 : vector<8x32xf32> to vector<8x32xbf16>
    %41 = vector.extract_strided_slice %40 {offsets = [0, 0], sizes = [8, 8], strides = [1, 1]} : vector<8x32xbf16> to vector<8x8xbf16>
    %42 = vector.extract_strided_slice %40 {offsets = [0, 8], sizes = [8, 8], strides = [1, 1]} : vector<8x32xbf16> to vector<8x8xbf16>
    %43 = vector.extract_strided_slice %40 {offsets = [0, 16], sizes = [8, 8], strides = [1, 1]} : vector<8x32xbf16> to vector<8x8xbf16>
    %44 = vector.extract_strided_slice %40 {offsets = [0, 24], sizes = [8, 8], strides = [1, 1]} : vector<8x32xbf16> to vector<8x8xbf16>
    %45 = vector.shape_cast %41 : vector<8x8xbf16> to vector<1x8x8xbf16>
    %46 = vector.shape_cast %42 : vector<8x8xbf16> to vector<1x8x8xbf16>
    %47 = vector.shape_cast %43 : vector<8x8xbf16> to vector<1x8x8xbf16>
    %48 = vector.shape_cast %44 : vector<8x8xbf16> to vector<1x8x8xbf16>
    %49 = tpu.concatenate %45, %46, %47, %48 in 0 : vector<1x8x8xbf16>, vector<1x8x8xbf16>, vector<1x8x8xbf16>, vector<1x8x8xbf16> -> vector<4x8x8xbf16>
    %c0_16 = arith.constant 0 : index
    %c0_17 = arith.constant 0 : index
    %c0_18 = arith.constant 0 : index
    %50 = vector.load %arg18[%c0_16, %c0_17, %c0_18] : memref<4x8x16xbf16, #tpu.memory_space<vmem>>, vector<4x8x16xbf16>
    "tpu.trace_start"() <{level = 10 : i32, message = "hqd,hdk->hqk"}> : () -> ()
    %cst_19 = arith.constant dense<0.000000e+00> : vector<4x8x16xf32>
    %51 = tpu.matmul %49, %50, %cst_19 {dimension_numbers = #tpu.dot_dimension_numbers<[2], [1], [1], [2], [0, 0, 0, 1, 1, 2], [0], [0]>} : vector<4x8x8xbf16>, vector<4x8x16xbf16>, vector<4x8x16xf32> -> vector<4x8x16xf32>
    "tpu.trace_stop"() : () -> ()
    %cst_20 = arith.constant dense<0xFF800000> : vector<4x8xf32>
    %52 = vector.multi_reduction <maximumf>, %51, %cst_20 [2] : vector<4x8x16xf32> to vector<4x8xf32>
    %53 = vector.shape_cast %52 : vector<4x8xf32> to vector<4x8x1xf32>
    %54 = vector.broadcast %53 : vector<4x8x1xf32> to vector<4x8x16xf32>
    %55 = arith.subf %51, %54 : vector<4x8x16xf32>
    %56 = math.exp %55 : vector<4x8x16xf32>
    %cst_21 = arith.constant dense<0.000000e+00> : vector<4x8xf32>
    %57 = vector.multi_reduction <add>, %56, %cst_21 [2] : vector<4x8x16xf32> to vector<4x8xf32>
    %58 = vector.shape_cast %57 : vector<4x8xf32> to vector<4x8x1xf32>
    %59 = tpu.reciprocal %58 {approx = true} : vector<4x8x1xf32> -> vector<4x8x1xf32>
    %60 = vector.broadcast %59 : vector<4x8x1xf32> to vector<4x8x16xf32>
    %61 = arith.mulf %56, %60 : vector<4x8x16xf32>
    %62 = arith.truncf %61 : vector<4x8x16xf32> to vector<4x8x16xbf16>
    %c0_22 = arith.constant 0 : index
    %c0_23 = arith.constant 0 : index
    %c0_24 = arith.constant 0 : index
    %63 = vector.load %arg19[%c0_22, %c0_23, %c0_24] : memref<4x16x8xbf16, #tpu.memory_space<vmem>>, vector<4x16x8xbf16>
    "tpu.trace_start"() <{level = 10 : i32, message = "hqk,hkd->hqd"}> : () -> ()
    %cst_25 = arith.constant dense<0.000000e+00> : vector<4x8x8xf32>
    %64 = tpu.matmul %62, %63, %cst_25 {dimension_numbers = #tpu.dot_dimension_numbers<[2], [1], [1], [2], [0, 0, 0, 1, 1, 2], [0], [0]>} : vector<4x8x16xbf16>, vector<4x16x8xbf16>, vector<4x8x8xf32> -> vector<4x8x8xf32>
    "tpu.trace_stop"() : () -> ()
    %65 = vector.extract_strided_slice %64 {offsets = [0, 0, 0], sizes = [1, 8, 8], strides = [1, 1, 1]} : vector<4x8x8xf32> to vector<1x8x8xf32>
    %66 = vector.shape_cast %65 : vector<1x8x8xf32> to vector<8x8xf32>
    %67 = arith.truncf %66 : vector<8x8xf32> to vector<8x8xbf16>
    %68 = vector.extract_strided_slice %64 {offsets = [1, 0, 0], sizes = [1, 8, 8], strides = [1, 1, 1]} : vector<4x8x8xf32> to vector<1x8x8xf32>
    %69 = vector.shape_cast %68 : vector<1x8x8xf32> to vector<8x8xf32>
    %70 = arith.truncf %69 : vector<8x8xf32> to vector<8x8xbf16>
    %71 = vector.extract_strided_slice %64 {offsets = [2, 0, 0], sizes = [1, 8, 8], strides = [1, 1, 1]} : vector<4x8x8xf32> to vector<1x8x8xf32>
    %72 = vector.shape_cast %71 : vector<1x8x8xf32> to vector<8x8xf32>
    %73 = arith.truncf %72 : vector<8x8xf32> to vector<8x8xbf16>
    %74 = vector.extract_strided_slice %64 {offsets = [3, 0, 0], sizes = [1, 8, 8], strides = [1, 1, 1]} : vector<4x8x8xf32> to vector<1x8x8xf32>
    %75 = vector.shape_cast %74 : vector<1x8x8xf32> to vector<8x8xf32>
    %76 = arith.truncf %75 : vector<8x8xf32> to vector<8x8xbf16>
    %77 = tpu.concatenate %67, %70, %73, %76 in 1 : vector<8x8xbf16>, vector<8x8xbf16>, vector<8x8xbf16>, vector<8x8xbf16> -> vector<8x32xbf16>
    %c0_26 = arith.constant 0 : index
    %c0_27 = arith.constant 0 : index
    %78 = vector.load %arg9[%c0_26, %c0_27] : memref<32x32xbf16, #tpu.memory_space<vmem>>, vector<32x32xbf16>
    %cst_28 = arith.constant dense<0.000000e+00> : vector<8x32xf32>
    %79 = tpu.matmul %77, %78, %cst_28 {dimension_numbers = #tpu.dot_dimension_numbers<[1], [0], [0], [1], [0, 0, 1, 1], [], []>} : vector<8x32xbf16>, vector<32x32xbf16>, vector<8x32xf32> -> vector<8x32xf32>
    %c0_29 = arith.constant 0 : index
    %c0_30 = arith.constant 0 : index
    %80 = vector.load %arg10[%c0_29, %c0_30] : memref<1x32xf32, #tpu.memory_space<vmem>>, vector<1x32xf32>
    %81 = vector.broadcast %80 : vector<1x32xf32> to vector<8x32xf32>
    %82 = arith.addf %79, %81 : vector<8x32xf32>
    %83 = arith.addf %7, %82 : vector<8x32xf32>
    %c0_31 = arith.constant 0 : index
    %c0_32 = arith.constant 0 : index
    %84 = vector.load %arg11[%c0_31, %c0_32] : memref<1x32xf32, #tpu.memory_space<vmem>>, vector<1x32xf32>
    %c0_33 = arith.constant 0 : index
    %c0_34 = arith.constant 0 : index
    %85 = vector.load %arg12[%c0_33, %c0_34] : memref<1x32xf32, #tpu.memory_space<vmem>>, vector<1x32xf32>
    %cst_35 = arith.constant dense<0.000000e+00> : vector<8xf32>
    %86 = vector.multi_reduction <add>, %83, %cst_35 [1] : vector<8x32xf32> to vector<8xf32>
    %87 = vector.shape_cast %86 : vector<8xf32> to vector<8x1xf32>
    %cst_36 = arith.constant 3.200000e+01 : f32
    %88 = vector.broadcast %cst_36 : f32 to vector<8x1xf32>
    %89 = arith.divf %87, %88 : vector<8x1xf32>
    %90 = vector.broadcast %89 : vector<8x1xf32> to vector<8x32xf32>
    %91 = arith.subf %83, %90 : vector<8x32xf32>
    %92 = arith.mulf %91, %91 : vector<8x32xf32>
    %cst_37 = arith.constant dense<0.000000e+00> : vector<8xf32>
    %93 = vector.multi_reduction <add>, %92, %cst_37 [1] : vector<8x32xf32> to vector<8xf32>
    %94 = vector.shape_cast %93 : vector<8xf32> to vector<8x1xf32>
    %cst_38 = arith.constant 3.200000e+01 : f32
    %95 = vector.broadcast %cst_38 : f32 to vector<8x1xf32>
    %96 = arith.divf %94, %95 : vector<8x1xf32>
    %97 = vector.broadcast %89 : vector<8x1xf32> to vector<8x32xf32>
    %98 = arith.subf %83, %97 : vector<8x32xf32>
    %cst_39 = arith.constant 9.99999974E-6 : f32
    %99 = vector.broadcast %cst_39 : f32 to vector<8x1xf32>
    %100 = arith.addf %96, %99 : vector<8x1xf32>
    %101 = math.rsqrt %100 : vector<8x1xf32>
    %102 = vector.broadcast %101 : vector<8x1xf32> to vector<8x32xf32>
    %103 = arith.mulf %98, %102 : vector<8x32xf32>
    %104 = vector.broadcast %84 : vector<1x32xf32> to vector<8x32xf32>
    %105 = arith.mulf %103, %104 : vector<8x32xf32>
    %106 = vector.broadcast %85 : vector<1x32xf32> to vector<8x32xf32>
    %107 = arith.addf %105, %106 : vector<8x32xf32>
    %108 = arith.truncf %107 : vector<8x32xf32> to vector<8x32xbf16>
    %c0_40 = arith.constant 0 : index
    %c0_41 = arith.constant 0 : index
    %109 = vector.load %arg13[%c0_40, %c0_41] : memref<32x128xbf16, #tpu.memory_space<vmem>>, vector<32x128xbf16>
    %cst_42 = arith.constant dense<0.000000e+00> : vector<8x128xf32>
    %110 = tpu.matmul %108, %109, %cst_42 {dimension_numbers = #tpu.dot_dimension_numbers<[1], [0], [0], [1], [0, 0, 1, 1], [], []>} : vector<8x32xbf16>, vector<32x128xbf16>, vector<8x128xf32> -> vector<8x128xf32>
    %c0_43 = arith.constant 0 : index
    %c0_44 = arith.constant 0 : index
    %111 = vector.load %arg14[%c0_43, %c0_44] : memref<1x128xf32, #tpu.memory_space<vmem>>, vector<1x128xf32>
    %112 = vector.broadcast %111 : vector<1x128xf32> to vector<8x128xf32>
    %113 = arith.addf %110, %112 : vector<8x128xf32>
    %cst_45 = arith.constant 5.000000e-01 : f32
    %114 = vector.broadcast %cst_45 : f32 to vector<8x128xf32>
    %115 = arith.mulf %114, %113 : vector<8x128xf32>
    %116 = arith.mulf %113, %113 : vector<8x128xf32>
    %117 = arith.mulf %116, %113 : vector<8x128xf32>
    %cst_46 = arith.constant 4.471500e-02 : f32
    %118 = vector.broadcast %cst_46 : f32 to vector<8x128xf32>
    %119 = arith.mulf %118, %117 : vector<8x128xf32>
    %120 = arith.addf %113, %119 : vector<8x128xf32>
    %cst_47 = arith.constant 0.797884583 : f32
    %121 = vector.broadcast %cst_47 : f32 to vector<8x128xf32>
    %122 = arith.mulf %121, %120 : vector<8x128xf32>
    %123 = math.tanh %122 : vector<8x128xf32>
    %cst_48 = arith.constant 1.000000e+00 : f32
    %124 = vector.broadcast %cst_48 : f32 to vector<8x128xf32>
    %125 = arith.addf %124, %123 : vector<8x128xf32>
    %126 = arith.mulf %115, %125 : vector<8x128xf32>
    %127 = arith.truncf %126 : vector<8x128xf32> to vector<8x128xbf16>
    %c0_49 = arith.constant 0 : index
    %c0_50 = arith.constant 0 : index
    %128 = vector.load %arg15[%c0_49, %c0_50] : memref<128x32xbf16, #tpu.memory_space<vmem>>, vector<128x32xbf16>
    %cst_51 = arith.constant dense<0.000000e+00> : vector<8x32xf32>
    %129 = tpu.matmul %127, %128, %cst_51 {dimension_numbers = #tpu.dot_dimension_numbers<[1], [0], [0], [1], [0, 0, 1, 1], [], []>} : vector<8x128xbf16>, vector<128x32xbf16>, vector<8x32xf32> -> vector<8x32xf32>
    %c0_52 = arith.constant 0 : index
    %c0_53 = arith.constant 0 : index
    %130 = vector.load %arg16[%c0_52, %c0_53] : memref<1x32xf32, #tpu.memory_space<vmem>>, vector<1x32xf32>
    %131 = vector.broadcast %130 : vector<1x32xf32> to vector<8x32xf32>
    %132 = arith.addf %129, %131 : vector<8x32xf32>
    %133 = arith.addf %83, %132 : vector<8x32xf32>
    %c0_54 = arith.constant 0 : index
    %c0_55 = arith.constant 0 : index
    %c0_56 = arith.constant 0 : index
    %134 = vector.load %arg17[%c0_54, %c0_55, %c0_56] : memref<1x8x32xf32, #tpu.memory_space<vmem>>, vector<1x8x32xf32>
    %135 = vector.shape_cast %134 : vector<1x8x32xf32> to vector<8x32xf32>
    %136 = vector.shape_cast %133 : vector<8x32xf32> to vector<1x8x32xf32>
    tpu.vector_store %arg17[%c0_54, %c0_55, %c0_56], %136 {strides = array<i32>} : memref<1x8x32xf32, #tpu.memory_space<vmem>>, vector<1x8x32xf32>,
    return
  }
  func.func @transform_0(%arg0: i32, %arg1: i32) -> (i32, i32, i32) {
    %c0_i32 = arith.constant 0 : i32
    %c0_i32_0 = arith.constant 0 : i32
    %c0_i32_1 = arith.constant 0 : i32
    return %arg0, %c0_i32, %c0_i32_0 : i32, i32, i32
  }
  func.func @transform_1(%arg0: i32, %arg1: i32) -> (i32, i32) {
    %c0_i32 = arith.constant 0 : i32
    %c0_i32_0 = arith.constant 0 : i32
    %c0_i32_1 = arith.constant 0 : i32
    return %c0_i32, %c0_i32_0 : i32, i32
  }
  func.func @transform_2(%arg0: i32, %arg1: i32) -> (i32, i32) {
    %c0_i32 = arith.constant 0 : i32
    %c0_i32_0 = arith.constant 0 : i32
    %c0_i32_1 = arith.constant 0 : i32
    return %c0_i32, %c0_i32_0 : i32, i32
  }
  func.func @transform_3(%arg0: i32, %arg1: i32) -> (i32, i32) {
    %c0_i32 = arith.constant 0 : i32
    %c0_i32_0 = arith.constant 0 : i32
    %c0_i32_1 = arith.constant 0 : i32
    return %c0_i32, %c0_i32_0 : i32, i32
  }
  func.func @transform_4(%arg0: i32, %arg1: i32) -> (i32, i32) {
    %c0_i32 = arith.constant 0 : i32
    %c0_i32_0 = arith.constant 0 : i32
    %c0_i32_1 = arith.constant 0 : i32
    return %c0_i32, %c0_i32_0 : i32, i32
  }
  func.func @transform_5(%arg0: i32, %arg1: i32) -> (i32, i32) {
    %c0_i32 = arith.constant 0 : i32
    %c0_i32_0 = arith.constant 0 : i32
    %c0_i32_1 = arith.constant 0 : i32
    return %c0_i32, %c0_i32_0 : i32, i32
  }
  func.func @transform_6(%arg0: i32, %arg1: i32) -> (i32, i32) {
    %c0_i32 = arith.constant 0 : i32
    %c0_i32_0 = arith.constant 0 : i32
    %c0_i32_1 = arith.constant 0 : i32
    return %c0_i32, %c0_i32_0 : i32, i32
  }
  func.func @transform_7(%arg0: i32, %arg1: i32) -> (i32, i32) {
    %c0_i32 = arith.constant 0 : i32
    %c0_i32_0 = arith.constant 0 : i32
    %c0_i32_1 = arith.constant 0 : i32
    return %c0_i32, %c0_i32_0 : i32, i32
  }
  func.func @transform_8(%arg0: i32, %arg1: i32) -> (i32, i32) {
    %c0_i32 = arith.constant 0 : i32
    %c0_i32_0 = arith.constant 0 : i32
    %c0_i32_1 = arith.constant 0 : i32
    return %c0_i32, %c0_i32_0 : i32, i32
  }
  func.func @transform_9(%arg0: i32, %arg1: i32) -> (i32, i32) {
    %c0_i32 = arith.constant 0 : i32
    %c0_i32_0 = arith.constant 0 : i32
    %c0_i32_1 = arith.constant 0 : i32
    return %c0_i32, %c0_i32_0 : i32, i32
  }
  func.func @transform_10(%arg0: i32, %arg1: i32) -> (i32, i32) {
    %c0_i32 = arith.constant 0 : i32
    %c0_i32_0 = arith.constant 0 : i32
    %c0_i32_1 = arith.constant 0 : i32
    return %c0_i32, %c0_i32_0 : i32, i32
  }
  func.func @transform_11(%arg0: i32, %arg1: i32) -> (i32, i32) {
    %c0_i32 = arith.constant 0 : i32
    %c0_i32_0 = arith.constant 0 : i32
    %c0_i32_1 = arith.constant 0 : i32
    return %c0_i32, %c0_i32_0 : i32, i32
  }
  func.func @transform_12(%arg0: i32, %arg1: i32) -> (i32, i32) {
    %c0_i32 = arith.constant 0 : i32
    %c0_i32_0 = arith.constant 0 : i32
    %c0_i32_1 = arith.constant 0 : i32
    return %c0_i32, %c0_i32_0 : i32, i32
  }
  func.func @transform_13(%arg0: i32, %arg1: i32) -> (i32, i32) {
    %c0_i32 = arith.constant 0 : i32
    %c0_i32_0 = arith.constant 0 : i32
    %c0_i32_1 = arith.constant 0 : i32
    return %c0_i32, %c0_i32_0 : i32, i32
  }
  func.func @transform_14(%arg0: i32, %arg1: i32) -> (i32, i32) {
    %c0_i32 = arith.constant 0 : i32
    %c0_i32_0 = arith.constant 0 : i32
    %c0_i32_1 = arith.constant 0 : i32
    return %c0_i32, %c0_i32_0 : i32, i32
  }
  func.func @transform_15(%arg0: i32, %arg1: i32) -> (i32, i32, i32) {
    %c0_i32 = arith.constant 0 : i32
    %c0_i32_0 = arith.constant 0 : i32
    return %arg0, %arg1, %c0_i32 : i32, i32, i32
  }
}

module attributes {stable_mosaic.version = 11 : i64} {
  func.func @_block_kernel(%arg0: i32, %arg1: i32, %arg2: memref<1x16x32xf32, #tpu.memory_space<vmem>>, %arg3: memref<1x32xf32, #tpu.memory_space<vmem>>, %arg4: memref<1x32xf32, #tpu.memory_space<vmem>>, %arg5: memref<32x32xbf16, #tpu.memory_space<vmem>>, %arg6: memref<1x32xf32, #tpu.memory_space<vmem>>, %arg7: memref<32x64xbf16, #tpu.memory_space<vmem>>, %arg8: memref<1x64xf32, #tpu.memory_space<vmem>>, %arg9: memref<32x32xbf16, #tpu.memory_space<vmem>>, %arg10: memref<1x32xf32, #tpu.memory_space<vmem>>, %arg11: memref<1x32xf32, #tpu.memory_space<vmem>>, %arg12: memref<1x32xf32, #tpu.memory_space<vmem>>, %arg13: memref<32x128xbf16, #tpu.memory_space<vmem>>, %arg14: memref<1x128xf32, #tpu.memory_space<vmem>>, %arg15: memref<128x32xbf16, #tpu.memory_space<vmem>>, %arg16: memref<1x32xf32, #tpu.memory_space<vmem>>, %arg17: memref<1x8x32xf32, #tpu.memory_space<vmem>>, %arg18: memref<4x8x16xbf16, #tpu.memory_space<vmem>>, %arg19: memref<4x16x8xbf16, #tpu.memory_space<vmem>>) attributes {dimension_semantics = [#tpu.dimension_semantics<parallel>, #tpu.dimension_semantics<arbitrary>], iteration_bounds = array<i64: 2, 2>, scalar_prefetch = 0 : i64, scratch_operands = 2 : i64, tpu.core_type = #tpu.core_type<tc>, window_params = [{transform_indices = @transform_0, window_bounds = array<i64: 1, 16, 32>}, {pipeline_mode = #tpu.pipeline_mode<synchronous>, transform_indices = @transform_1, window_bounds = array<i64: 1, 32>}, {pipeline_mode = #tpu.pipeline_mode<synchronous>, transform_indices = @transform_2, window_bounds = array<i64: 1, 32>}, {pipeline_mode = #tpu.pipeline_mode<synchronous>, transform_indices = @transform_3, window_bounds = array<i64: 32, 32>}, {pipeline_mode = #tpu.pipeline_mode<synchronous>, transform_indices = @transform_4, window_bounds = array<i64: 1, 32>}, {pipeline_mode = #tpu.pipeline_mode<synchronous>, transform_indices = @transform_5, window_bounds = array<i64: 32, 64>}, {pipeline_mode = #tpu.pipeline_mode<synchronous>, transform_indices = @transform_6, window_bounds = array<i64: 1, 64>}, {pipeline_mode = #tpu.pipeline_mode<synchronous>, transform_indices = @transform_7, window_bounds = array<i64: 32, 32>}, {pipeline_mode = #tpu.pipeline_mode<synchronous>, transform_indices = @transform_8, window_bounds = array<i64: 1, 32>}, {pipeline_mode = #tpu.pipeline_mode<synchronous>, transform_indices = @transform_9, window_bounds = array<i64: 1, 32>}, {pipeline_mode = #tpu.pipeline_mode<synchronous>, transform_indices = @transform_10, window_bounds = array<i64: 1, 32>}, {pipeline_mode = #tpu.pipeline_mode<synchronous>, transform_indices = @transform_11, window_bounds = array<i64: 32, 128>}, {pipeline_mode = #tpu.pipeline_mode<synchronous>, transform_indices = @transform_12, window_bounds = array<i64: 1, 128>}, {pipeline_mode = #tpu.pipeline_mode<synchronous>, transform_indices = @transform_13, window_bounds = array<i64: 128, 32>}, {pipeline_mode = #tpu.pipeline_mode<synchronous>, transform_indices = @transform_14, window_bounds = array<i64: 1, 32>}, {transform_indices = @transform_15, window_bounds = array<i64: 1, 8, 32>}]} {
    %c0_i32 = arith.constant 0 : i32
    %0 = arith.cmpi eq, %arg1, %c0_i32 : i32
    %1 = arith.extui %0 : i1 to i32
    %c0_i32_0 = arith.constant 0 : i32
    %2 = arith.cmpi ne, %1, %c0_i32_0 : i32
    scf.if %2 {
      %c0_57 = arith.constant 0 : index
      %c0_58 = arith.constant 0 : index
      %c0_59 = arith.constant 0 : index
      %137 = vector.load %arg2[%c0_57, %c0_58, %c0_59] : memref<1x16x32xf32, #tpu.memory_space<vmem>>, vector<1x16x32xf32>
      %138 = vector.shape_cast %137 : vector<1x16x32xf32> to vector<16x32xf32>
      %c0_60 = arith.constant 0 : index
      %c0_61 = arith.constant 0 : index
      %139 = vector.load %arg3[%c0_60, %c0_61] : memref<1x32xf32, #tpu.memory_space<vmem>>, vector<1x32xf32>
      %c0_62 = arith.constant 0 : index
      %c0_63 = arith.constant 0 : index
      %140 = vector.load %arg4[%c0_62, %c0_63] : memref<1x32xf32, #tpu.memory_space<vmem>>, vector<1x32xf32>
      %cst_64 = arith.constant dense<0.000000e+00> : vector<16xf32>
      %141 = vector.multi_reduction <add>, %138, %cst_64 [1] : vector<16x32xf32> to vector<16xf32>
      %142 = vector.shape_cast %141 : vector<16xf32> to vector<16x1xf32>
      %cst_65 = arith.constant 3.200000e+01 : f32
      %143 = vector.broadcast %cst_65 : f32 to vector<16x1xf32>
      %144 = arith.divf %142, %143 : vector<16x1xf32>
      %145 = vector.broadcast %144 : vector<16x1xf32> to vector<16x32xf32>
      %146 = arith.subf %138, %145 : vector<16x32xf32>
      %147 = arith.mulf %146, %146 : vector<16x32xf32>
      %cst_66 = arith.constant dense<0.000000e+00> : vector<16xf32>
      %148 = vector.multi_reduction <add>, %147, %cst_66 [1] : vector<16x32xf32> to vector<16xf32>
      %149 = vector.shape_cast %148 : vector<16xf32> to vector<16x1xf32>
      %cst_67 = arith.constant 3.200000e+01 : f32
      %150 = vector.broadcast %cst_67 : f32 to vector<16x1xf32>
      %151 = arith.divf %149, %150 : vector<16x1xf32>
      %152 = vector.broadcast %144 : vector<16x1xf32> to vector<16x32xf32>
      %153 = arith.subf %138, %152 : vector<16x32xf32>
      %cst_68 = arith.constant 9.99999974E-6 : f32
      %154 = vector.broadcast %cst_68 : f32 to vector<16x1xf32>
      %155 = arith.addf %151, %154 : vector<16x1xf32>
      %156 = math.rsqrt %155 : vector<16x1xf32>
      %157 = vector.broadcast %156 : vector<16x1xf32> to vector<16x32xf32>
      %158 = arith.mulf %153, %157 : vector<16x32xf32>
      %159 = vector.broadcast %139 : vector<1x32xf32> to vector<16x32xf32>
      %160 = arith.mulf %158, %159 : vector<16x32xf32>
      %161 = vector.broadcast %140 : vector<1x32xf32> to vector<16x32xf32>
      %162 = arith.addf %160, %161 : vector<16x32xf32>
      %163 = arith.truncf %162 : vector<16x32xf32> to vector<16x32xbf16>
      %c0_69 = arith.constant 0 : index
      %c0_70 = arith.constant 0 : index
      %164 = vector.load %arg7[%c0_69, %c0_70] : memref<32x64xbf16, #tpu.memory_space<vmem>>, vector<32x64xbf16>
      %cst_71 = arith.constant dense<0.000000e+00> : vector<16x64xf32>
      %165 = tpu.matmul %163, %164, %cst_71 {dimension_numbers = #tpu.dot_dimension_numbers<[1], [0], [0], [1], [0, 0, 1, 1], [], []>} : vector<16x32xbf16>, vector<32x64xbf16>, vector<16x64xf32> -> vector<16x64xf32>
      %c0_72 = arith.constant 0 : index
      %c0_73 = arith.constant 0 : index
      %166 = vector.load %arg8[%c0_72, %c0_73] : memref<1x64xf32, #tpu.memory_space<vmem>>, vector<1x64xf32>
      %167 = vector.broadcast %166 : vector<1x64xf32> to vector<16x64xf32>
      %168 = arith.addf %165, %167 : vector<16x64xf32>
      %169 = vector.extract_strided_slice %168 {offsets = [0, 0], sizes = [16, 32], strides = [1, 1]} : vector<16x64xf32> to vector<16x32xf32>
      %170 = tpu.transpose %169, [1, 0] : vector<16x32xf32> -> vector<32x16xf32>
      %171 = vector.extract_strided_slice %168 {offsets = [0, 32], sizes = [16, 32], strides = [1, 1]} : vector<16x64xf32> to vector<16x32xf32>
      %172 = vector.extract_strided_slice %170 {offsets = [0, 0], sizes = [8, 16], strides = [1, 1]} : vector<32x16xf32> to vector<8x16xf32>
      %173 = arith.truncf %172 : vector<8x16xf32> to vector<8x16xbf16>
      %c0_74 = arith.constant 0 : index
      %c0_75 = arith.constant 0 : index
      %c0_76 = arith.constant 0 : index
      %174 = vector.load %arg18[%c0_74, %c0_75, %c0_76] : memref<4x8x16xbf16, #tpu.memory_space<vmem>>, vector<1x8x16xbf16>
      %175 = vector.shape_cast %174 : vector<1x8x16xbf16> to vector<8x16xbf16>
      %176 = vector.shape_cast %173 : vector<8x16xbf16> to vector<1x8x16xbf16>
      tpu.vector_store %arg18[%c0_74, %c0_75, %c0_76], %176 {strides = array<i32>} : memref<4x8x16xbf16, #tpu.memory_space<vmem>>, vector<1x8x16xbf16>,
      %177 = vector.extract_strided_slice %171 {offsets = [0, 0], sizes = [16, 8], strides = [1, 1]} : vector<16x32xf32> to vector<16x8xf32>
      %178 = arith.truncf %177 : vector<16x8xf32> to vector<16x8xbf16>
      %c0_77 = arith.constant 0 : index
      %c0_78 = arith.constant 0 : index
      %c0_79 = arith.constant 0 : index
      %179 = vector.load %arg19[%c0_77, %c0_78, %c0_79] : memref<4x16x8xbf16, #tpu.memory_space<vmem>>, vector<1x16x8xbf16>
      %180 = vector.shape_cast %179 : vector<1x16x8xbf16> to vector<16x8xbf16>
      %181 = vector.shape_cast %178 : vector<16x8xbf16> to vector<1x16x8xbf16>
      tpu.vector_store %arg19[%c0_77, %c0_78, %c0_79], %181 {strides = array<i32>} : memref<4x16x8xbf16, #tpu.memory_space<vmem>>, vector<1x16x8xbf16>,
      %182 = vector.extract_strided_slice %170 {offsets = [8, 0], sizes = [8, 16], strides = [1, 1]} : vector<32x16xf32> to vector<8x16xf32>
      %183 = arith.truncf %182 : vector<8x16xf32> to vector<8x16xbf16>
      %c1 = arith.constant 1 : index
      %c0_80 = arith.constant 0 : index
      %c0_81 = arith.constant 0 : index
      %184 = vector.load %arg18[%c1, %c0_80, %c0_81] : memref<4x8x16xbf16, #tpu.memory_space<vmem>>, vector<1x8x16xbf16>
      %185 = vector.shape_cast %184 : vector<1x8x16xbf16> to vector<8x16xbf16>
      %186 = vector.shape_cast %183 : vector<8x16xbf16> to vector<1x8x16xbf16>
      tpu.vector_store %arg18[%c1, %c0_80, %c0_81], %186 {strides = array<i32>} : memref<4x8x16xbf16, #tpu.memory_space<vmem>>, vector<1x8x16xbf16>,
      %187 = vector.extract_strided_slice %171 {offsets = [0, 8], sizes = [16, 8], strides = [1, 1]} : vector<16x32xf32> to vector<16x8xf32>
      %188 = arith.truncf %187 : vector<16x8xf32> to vector<16x8xbf16>
      %c1_82 = arith.constant 1 : index
      %c0_83 = arith.constant 0 : index
      %c0_84 = arith.constant 0 : index
      %189 = vector.load %arg19[%c1_82, %c0_83, %c0_84] : memref<4x16x8xbf16, #tpu.memory_space<vmem>>, vector<1x16x8xbf16>
      %190 = vector.shape_cast %189 : vector<1x16x8xbf16> to vector<16x8xbf16>
      %191 = vector.shape_cast %188 : vector<16x8xbf16> to vector<1x16x8xbf16>
      tpu.vector_store %arg19[%c1_82, %c0_83, %c0_84], %191 {strides = array<i32>} : memref<4x16x8xbf16, #tpu.memory_space<vmem>>, vector<1x16x8xbf16>,
      %192 = vector.extract_strided_slice %170 {offsets = [16, 0], sizes = [8, 16], strides = [1, 1]} : vector<32x16xf32> to vector<8x16xf32>
      %193 = arith.truncf %192 : vector<8x16xf32> to vector<8x16xbf16>
      %c2 = arith.constant 2 : index
      %c0_85 = arith.constant 0 : index
      %c0_86 = arith.constant 0 : index
      %194 = vector.load %arg18[%c2, %c0_85, %c0_86] : memref<4x8x16xbf16, #tpu.memory_space<vmem>>, vector<1x8x16xbf16>
      %195 = vector.shape_cast %194 : vector<1x8x16xbf16> to vector<8x16xbf16>
      %196 = vector.shape_cast %193 : vector<8x16xbf16> to vector<1x8x16xbf16>
      tpu.vector_store %arg18[%c2, %c0_85, %c0_86], %196 {strides = array<i32>} : memref<4x8x16xbf16, #tpu.memory_space<vmem>>, vector<1x8x16xbf16>,
      %197 = vector.extract_strided_slice %171 {offsets = [0, 16], sizes = [16, 8], strides = [1, 1]} : vector<16x32xf32> to vector<16x8xf32>
      %198 = arith.truncf %197 : vector<16x8xf32> to vector<16x8xbf16>
      %c2_87 = arith.constant 2 : index
      %c0_88 = arith.constant 0 : index
      %c0_89 = arith.constant 0 : index
      %199 = vector.load %arg19[%c2_87, %c0_88, %c0_89] : memref<4x16x8xbf16, #tpu.memory_space<vmem>>, vector<1x16x8xbf16>
      %200 = vector.shape_cast %199 : vector<1x16x8xbf16> to vector<16x8xbf16>
      %201 = vector.shape_cast %198 : vector<16x8xbf16> to vector<1x16x8xbf16>
      tpu.vector_store %arg19[%c2_87, %c0_88, %c0_89], %201 {strides = array<i32>} : memref<4x16x8xbf16, #tpu.memory_space<vmem>>, vector<1x16x8xbf16>,
      %202 = vector.extract_strided_slice %170 {offsets = [24, 0], sizes = [8, 16], strides = [1, 1]} : vector<32x16xf32> to vector<8x16xf32>
      %203 = arith.truncf %202 : vector<8x16xf32> to vector<8x16xbf16>
      %c3 = arith.constant 3 : index
      %c0_90 = arith.constant 0 : index
      %c0_91 = arith.constant 0 : index
      %204 = vector.load %arg18[%c3, %c0_90, %c0_91] : memref<4x8x16xbf16, #tpu.memory_space<vmem>>, vector<1x8x16xbf16>
      %205 = vector.shape_cast %204 : vector<1x8x16xbf16> to vector<8x16xbf16>
      %206 = vector.shape_cast %203 : vector<8x16xbf16> to vector<1x8x16xbf16>
      tpu.vector_store %arg18[%c3, %c0_90, %c0_91], %206 {strides = array<i32>} : memref<4x8x16xbf16, #tpu.memory_space<vmem>>, vector<1x8x16xbf16>,
      %207 = vector.extract_strided_slice %171 {offsets = [0, 24], sizes = [16, 8], strides = [1, 1]} : vector<16x32xf32> to vector<16x8xf32>
      %208 = arith.truncf %207 : vector<16x8xf32> to vector<16x8xbf16>
      %c3_92 = arith.constant 3 : index
      %c0_93 = arith.constant 0 : index
      %c0_94 = arith.constant 0 : index
      %209 = vector.load %arg19[%c3_92, %c0_93, %c0_94] : memref<4x16x8xbf16, #tpu.memory_space<vmem>>, vector<1x16x8xbf16>
      %210 = vector.shape_cast %209 : vector<1x16x8xbf16> to vector<16x8xbf16>
      %211 = vector.shape_cast %208 : vector<16x8xbf16> to vector<1x16x8xbf16>
      tpu.vector_store %arg19[%c3_92, %c0_93, %c0_94], %211 {strides = array<i32>} : memref<4x16x8xbf16, #tpu.memory_space<vmem>>, vector<1x16x8xbf16>,
    } else {
    }
    %c8_i32 = arith.constant 8 : i32
    %3 = arith.muli %arg1, %c8_i32 : i32
    %4 = tpu.assume_multiple %3, 8 : i32
    %c0 = arith.constant 0 : index
    %5 = arith.index_cast %4 : i32 to index
    %c0_1 = arith.constant 0 : index
    %6 = vector.load %arg2[%c0, %5, %c0_1] : memref<1x16x32xf32, #tpu.memory_space<vmem>>, vector<1x8x32xf32>
    %7 = vector.shape_cast %6 : vector<1x8x32xf32> to vector<8x32xf32>
    %c0_2 = arith.constant 0 : index
    %c0_3 = arith.constant 0 : index
    %8 = vector.load %arg3[%c0_2, %c0_3] : memref<1x32xf32, #tpu.memory_space<vmem>>, vector<1x32xf32>
    %c0_4 = arith.constant 0 : index
    %c0_5 = arith.constant 0 : index
    %9 = vector.load %arg4[%c0_4, %c0_5] : memref<1x32xf32, #tpu.memory_space<vmem>>, vector<1x32xf32>
    %cst = arith.constant dense<0.000000e+00> : vector<8xf32>
    %10 = vector.multi_reduction <add>, %7, %cst [1] : vector<8x32xf32> to vector<8xf32>
    %11 = vector.shape_cast %10 : vector<8xf32> to vector<8x1xf32>
    %cst_6 = arith.constant 3.200000e+01 : f32
    %12 = vector.broadcast %cst_6 : f32 to vector<8x1xf32>
    %13 = arith.divf %11, %12 : vector<8x1xf32>
    %14 = vector.broadcast %13 : vector<8x1xf32> to vector<8x32xf32>
    %15 = arith.subf %7, %14 : vector<8x32xf32>
    %16 = arith.mulf %15, %15 : vector<8x32xf32>
    %cst_7 = arith.constant dense<0.000000e+00> : vector<8xf32>
    %17 = vector.multi_reduction <add>, %16, %cst_7 [1] : vector<8x32xf32> to vector<8xf32>
    %18 = vector.shape_cast %17 : vector<8xf32> to vector<8x1xf32>
    %cst_8 = arith.constant 3.200000e+01 : f32
    %19 = vector.broadcast %cst_8 : f32 to vector<8x1xf32>
    %20 = arith.divf %18, %19 : vector<8x1xf32>
    %21 = vector.broadcast %13 : vector<8x1xf32> to vector<8x32xf32>
    %22 = arith.subf %7, %21 : vector<8x32xf32>
    %cst_9 = arith.constant 9.99999974E-6 : f32
    %23 = vector.broadcast %cst_9 : f32 to vector<8x1xf32>
    %24 = arith.addf %20, %23 : vector<8x1xf32>
    %25 = math.rsqrt %24 : vector<8x1xf32>
    %26 = vector.broadcast %25 : vector<8x1xf32> to vector<8x32xf32>
    %27 = arith.mulf %22, %26 : vector<8x32xf32>
    %28 = vector.broadcast %8 : vector<1x32xf32> to vector<8x32xf32>
    %29 = arith.mulf %27, %28 : vector<8x32xf32>
    %30 = vector.broadcast %9 : vector<1x32xf32> to vector<8x32xf32>
    %31 = arith.addf %29, %30 : vector<8x32xf32>
    %32 = arith.truncf %31 : vector<8x32xf32> to vector<8x32xbf16>
    %c0_10 = arith.constant 0 : index
    %c0_11 = arith.constant 0 : index
    %33 = vector.load %arg5[%c0_10, %c0_11] : memref<32x32xbf16, #tpu.memory_space<vmem>>, vector<32x32xbf16>
    %cst_12 = arith.constant dense<0.000000e+00> : vector<8x32xf32>
    %34 = tpu.matmul %32, %33, %cst_12 {dimension_numbers = #tpu.dot_dimension_numbers<[1], [0], [0], [1], [0, 0, 1, 1], [], []>} : vector<8x32xbf16>, vector<32x32xbf16>, vector<8x32xf32> -> vector<8x32xf32>
    %c0_13 = arith.constant 0 : index
    %c0_14 = arith.constant 0 : index
    %35 = vector.load %arg6[%c0_13, %c0_14] : memref<1x32xf32, #tpu.memory_space<vmem>>, vector<1x32xf32>
    %36 = vector.broadcast %35 : vector<1x32xf32> to vector<8x32xf32>
    %37 = arith.addf %34, %36 : vector<8x32xf32>
    %cst_15 = arith.constant 0.353553385 : f32
    %38 = vector.broadcast %cst_15 : f32 to vector<8x32xf32>
    %39 = arith.mulf %37, %38 : vector<8x32xf32>
    %40 = arith.truncf %39 : vector<8x32xf32> to vector<8x32xbf16>
    %41 = vector.extract_strided_slice %40 {offsets = [0, 0], sizes = [8, 8], strides = [1, 1]} : vector<8x32xbf16> to vector<8x8xbf16>
    %42 = vector.extract_strided_slice %40 {offsets = [0, 8], sizes = [8, 8], strides = [1, 1]} : vector<8x32xbf16> to vector<8x8xbf16>
    %43 = vector.extract_strided_slice %40 {offsets = [0, 16], sizes = [8, 8], strides = [1, 1]} : vector<8x32xbf16> to vector<8x8xbf16>
    %44 = vector.extract_strided_slice %40 {offsets = [0, 24], sizes = [8, 8], strides = [1, 1]} : vector<8x32xbf16> to vector<8x8xbf16>
    %45 = vector.shape_cast %41 : vector<8x8xbf16> to vector<1x8x8xbf16>
    %46 = vector.shape_cast %42 : vector<8x8xbf16> to vector<1x8x8xbf16>
    %47 = vector.shape_cast %43 : vector<8x8xbf16> to vector<1x8x8xbf16>
    %48 = vector.shape_cast %44 : vector<8x8xbf16> to vector<1x8x8xbf16>
    %49 = tpu.concatenate %45, %46, %47, %48 in 0 : vector<1x8x8xbf16>, vector<1x8x8xbf16>, vector<1x8x8xbf16>, vector<1x8x8xbf16> -> vector<4x8x8xbf16>
    %c0_16 = arith.constant 0 : index
    %c0_17 = arith.constant 0 : index
    %c0_18 = arith.constant 0 : index
    %50 = vector.load %arg18[%c0_16, %c0_17, %c0_18] : memref<4x8x16xbf16, #tpu.memory_space<vmem>>, vector<4x8x16xbf16>
    "tpu.trace_start"() <{level = 10 : i32, message = "hqd,hdk->hqk"}> : () -> ()
    %cst_19 = arith.constant dense<0.000000e+00> : vector<4x8x16xf32>
    %51 = tpu.matmul %49, %50, %cst_19 {dimension_numbers = #tpu.dot_dimension_numbers<[2], [1], [1], [2], [0, 0, 0, 1, 1, 2], [0], [0]>} : vector<4x8x8xbf16>, vector<4x8x16xbf16>, vector<4x8x16xf32> -> vector<4x8x16xf32>
    "tpu.trace_stop"() : () -> ()
    %cst_20 = arith.constant dense<0xFF800000> : vector<4x8xf32>
    %52 = vector.multi_reduction <maximumf>, %51, %cst_20 [2] : vector<4x8x16xf32> to vector<4x8xf32>
    %53 = vector.shape_cast %52 : vector<4x8xf32> to vector<4x8x1xf32>
    %54 = vector.broadcast %53 : vector<4x8x1xf32> to vector<4x8x16xf32>
    %55 = arith.subf %51, %54 : vector<4x8x16xf32>
    %56 = math.exp %55 : vector<4x8x16xf32>
    %cst_21 = arith.constant dense<0.000000e+00> : vector<4x8xf32>
    %57 = vector.multi_reduction <add>, %56, %cst_21 [2] : vector<4x8x16xf32> to vector<4x8xf32>
    %58 = vector.shape_cast %57 : vector<4x8xf32> to vector<4x8x1xf32>
    %59 = tpu.reciprocal %58 {approx = true} : vector<4x8x1xf32> -> vector<4x8x1xf32>
    %60 = vector.broadcast %59 : vector<4x8x1xf32> to vector<4x8x16xf32>
    %61 = arith.mulf %56, %60 : vector<4x8x16xf32>
    %62 = arith.truncf %61 : vector<4x8x16xf32> to vector<4x8x16xbf16>
    %c0_22 = arith.constant 0 : index
    %c0_23 = arith.constant 0 : index
    %c0_24 = arith.constant 0 : index
    %63 = vector.load %arg19[%c0_22, %c0_23, %c0_24] : memref<4x16x8xbf16, #tpu.memory_space<vmem>>, vector<4x16x8xbf16>
    "tpu.trace_start"() <{level = 10 : i32, message = "hqk,hkd->hqd"}> : () -> ()
    %cst_25 = arith.constant dense<0.000000e+00> : vector<4x8x8xf32>
    %64 = tpu.matmul %62, %63, %cst_25 {dimension_numbers = #tpu.dot_dimension_numbers<[2], [1], [1], [2], [0, 0, 0, 1, 1, 2], [0], [0]>} : vector<4x8x16xbf16>, vector<4x16x8xbf16>, vector<4x8x8xf32> -> vector<4x8x8xf32>
    "tpu.trace_stop"() : () -> ()
    %65 = vector.extract_strided_slice %64 {offsets = [0, 0, 0], sizes = [1, 8, 8], strides = [1, 1, 1]} : vector<4x8x8xf32> to vector<1x8x8xf32>
    %66 = vector.shape_cast %65 : vector<1x8x8xf32> to vector<8x8xf32>
    %67 = arith.truncf %66 : vector<8x8xf32> to vector<8x8xbf16>
    %68 = vector.extract_strided_slice %64 {offsets = [1, 0, 0], sizes = [1, 8, 8], strides = [1, 1, 1]} : vector<4x8x8xf32> to vector<1x8x8xf32>
    %69 = vector.shape_cast %68 : vector<1x8x8xf32> to vector<8x8xf32>
    %70 = arith.truncf %69 : vector<8x8xf32> to vector<8x8xbf16>
    %71 = vector.extract_strided_slice %64 {offsets = [2, 0, 0], sizes = [1, 8, 8], strides = [1, 1, 1]} : vector<4x8x8xf32> to vector<1x8x8xf32>
    %72 = vector.shape_cast %71 : vector<1x8x8xf32> to vector<8x8xf32>
    %73 = arith.truncf %72 : vector<8x8xf32> to vector<8x8xbf16>
    %74 = vector.extract_strided_slice %64 {offsets = [3, 0, 0], sizes = [1, 8, 8], strides = [1, 1, 1]} : vector<4x8x8xf32> to vector<1x8x8xf32>
    %75 = vector.shape_cast %74 : vector<1x8x8xf32> to vector<8x8xf32>
    %76 = arith.truncf %75 : vector<8x8xf32> to vector<8x8xbf16>
    %77 = tpu.concatenate %67, %70, %73, %76 in 1 : vector<8x8xbf16>, vector<8x8xbf16>, vector<8x8xbf16>, vector<8x8xbf16> -> vector<8x32xbf16>
    %c0_26 = arith.constant 0 : index
    %c0_27 = arith.constant 0 : index
    %78 = vector.load %arg9[%c0_26, %c0_27] : memref<32x32xbf16, #tpu.memory_space<vmem>>, vector<32x32xbf16>
    %cst_28 = arith.constant dense<0.000000e+00> : vector<8x32xf32>
    %79 = tpu.matmul %77, %78, %cst_28 {dimension_numbers = #tpu.dot_dimension_numbers<[1], [0], [0], [1], [0, 0, 1, 1], [], []>} : vector<8x32xbf16>, vector<32x32xbf16>, vector<8x32xf32> -> vector<8x32xf32>
    %c0_29 = arith.constant 0 : index
    %c0_30 = arith.constant 0 : index
    %80 = vector.load %arg10[%c0_29, %c0_30] : memref<1x32xf32, #tpu.memory_space<vmem>>, vector<1x32xf32>
    %81 = vector.broadcast %80 : vector<1x32xf32> to vector<8x32xf32>
    %82 = arith.addf %79, %81 : vector<8x32xf32>
    %83 = arith.addf %7, %82 : vector<8x32xf32>
    %c0_31 = arith.constant 0 : index
    %c0_32 = arith.constant 0 : index
    %84 = vector.load %arg11[%c0_31, %c0_32] : memref<1x32xf32, #tpu.memory_space<vmem>>, vector<1x32xf32>
    %c0_33 = arith.constant 0 : index
    %c0_34 = arith.constant 0 : index
    %85 = vector.load %arg12[%c0_33, %c0_34] : memref<1x32xf32, #tpu.memory_space<vmem>>, vector<1x32xf32>
    %cst_35 = arith.constant dense<0.000000e+00> : vector<8xf32>
    %86 = vector.multi_reduction <add>, %83, %cst_35 [1] : vector<8x32xf32> to vector<8xf32>
    %87 = vector.shape_cast %86 : vector<8xf32> to vector<8x1xf32>
    %cst_36 = arith.constant 3.200000e+01 : f32
    %88 = vector.broadcast %cst_36 : f32 to vector<8x1xf32>
    %89 = arith.divf %87, %88 : vector<8x1xf32>
    %90 = vector.broadcast %89 : vector<8x1xf32> to vector<8x32xf32>
    %91 = arith.subf %83, %90 : vector<8x32xf32>
    %92 = arith.mulf %91, %91 : vector<8x32xf32>
    %cst_37 = arith.constant dense<0.000000e+00> : vector<8xf32>
    %93 = vector.multi_reduction <add>, %92, %cst_37 [1] : vector<8x32xf32> to vector<8xf32>
    %94 = vector.shape_cast %93 : vector<8xf32> to vector<8x1xf32>
    %cst_38 = arith.constant 3.200000e+01 : f32
    %95 = vector.broadcast %cst_38 : f32 to vector<8x1xf32>
    %96 = arith.divf %94, %95 : vector<8x1xf32>
    %97 = vector.broadcast %89 : vector<8x1xf32> to vector<8x32xf32>
    %98 = arith.subf %83, %97 : vector<8x32xf32>
    %cst_39 = arith.constant 9.99999974E-6 : f32
    %99 = vector.broadcast %cst_39 : f32 to vector<8x1xf32>
    %100 = arith.addf %96, %99 : vector<8x1xf32>
    %101 = math.rsqrt %100 : vector<8x1xf32>
    %102 = vector.broadcast %101 : vector<8x1xf32> to vector<8x32xf32>
    %103 = arith.mulf %98, %102 : vector<8x32xf32>
    %104 = vector.broadcast %84 : vector<1x32xf32> to vector<8x32xf32>
    %105 = arith.mulf %103, %104 : vector<8x32xf32>
    %106 = vector.broadcast %85 : vector<1x32xf32> to vector<8x32xf32>
    %107 = arith.addf %105, %106 : vector<8x32xf32>
    %108 = arith.truncf %107 : vector<8x32xf32> to vector<8x32xbf16>
    %c0_40 = arith.constant 0 : index
    %c0_41 = arith.constant 0 : index
    %109 = vector.load %arg13[%c0_40, %c0_41] : memref<32x128xbf16, #tpu.memory_space<vmem>>, vector<32x128xbf16>
    %cst_42 = arith.constant dense<0.000000e+00> : vector<8x128xf32>
    %110 = tpu.matmul %108, %109, %cst_42 {dimension_numbers = #tpu.dot_dimension_numbers<[1], [0], [0], [1], [0, 0, 1, 1], [], []>} : vector<8x32xbf16>, vector<32x128xbf16>, vector<8x128xf32> -> vector<8x128xf32>
    %c0_43 = arith.constant 0 : index
    %c0_44 = arith.constant 0 : index
    %111 = vector.load %arg14[%c0_43, %c0_44] : memref<1x128xf32, #tpu.memory_space<vmem>>, vector<1x128xf32>
    %112 = vector.broadcast %111 : vector<1x128xf32> to vector<8x128xf32>
    %113 = arith.addf %110, %112 : vector<8x128xf32>
    %cst_45 = arith.constant 5.000000e-01 : f32
    %114 = vector.broadcast %cst_45 : f32 to vector<8x128xf32>
    %115 = arith.mulf %114, %113 : vector<8x128xf32>
    %116 = arith.mulf %113, %113 : vector<8x128xf32>
    %117 = arith.mulf %116, %113 : vector<8x128xf32>
    %cst_46 = arith.constant 4.471500e-02 : f32
    %118 = vector.broadcast %cst_46 : f32 to vector<8x128xf32>
    %119 = arith.mulf %118, %117 : vector<8x128xf32>
    %120 = arith.addf %113, %119 : vector<8x128xf32>
    %cst_47 = arith.constant 0.797884583 : f32
    %121 = vector.broadcast %cst_47 : f32 to vector<8x128xf32>
    %122 = arith.mulf %121, %120 : vector<8x128xf32>
    %123 = math.tanh %122 : vector<8x128xf32>
    %cst_48 = arith.constant 1.000000e+00 : f32
    %124 = vector.broadcast %cst_48 : f32 to vector<8x128xf32>
    %125 = arith.addf %124, %123 : vector<8x128xf32>
    %126 = arith.mulf %115, %125 : vector<8x128xf32>
    %127 = arith.truncf %126 : vector<8x128xf32> to vector<8x128xbf16>
    %c0_49 = arith.constant 0 : index
    %c0_50 = arith.constant 0 : index
    %128 = vector.load %arg15[%c0_49, %c0_50] : memref<128x32xbf16, #tpu.memory_space<vmem>>, vector<128x32xbf16>
    %cst_51 = arith.constant dense<0.000000e+00> : vector<8x32xf32>
    %129 = tpu.matmul %127, %128, %cst_51 {dimension_numbers = #tpu.dot_dimension_numbers<[1], [0], [0], [1], [0, 0, 1, 1], [], []>} : vector<8x128xbf16>, vector<128x32xbf16>, vector<8x32xf32> -> vector<8x32xf32>
    %c0_52 = arith.constant 0 : index
    %c0_53 = arith.constant 0 : index
    %130 = vector.load %arg16[%c0_52, %c0_53] : memref<1x32xf32, #tpu.memory_space<vmem>>, vector<1x32xf32>
    %131 = vector.broadcast %130 : vector<1x32xf32> to vector<8x32xf32>
    %132 = arith.addf %129, %131 : vector<8x32xf32>
    %133 = arith.addf %83, %132 : vector<8x32xf32>
    %c0_54 = arith.constant 0 : index
    %c0_55 = arith.constant 0 : index
    %c0_56 = arith.constant 0 : index
    %134 = vector.load %arg17[%c0_54, %c0_55, %c0_56] : memref<1x8x32xf32, #tpu.memory_space<vmem>>, vector<1x8x32xf32>
    %135 = vector.shape_cast %134 : vector<1x8x32xf32> to vector<8x32xf32>
    %136 = vector.shape_cast %133 : vector<8x32xf32> to vector<1x8x32xf32>
    tpu.vector_store %arg17[%c0_54, %c0_55, %c0_56], %136 {strides = array<i32>} : memref<1x8x32xf32, #tpu.memory_space<vmem>>, vector<1x8x32xf32>,
    return
  }
  func.func @transform_0(%arg0: i32, %arg1: i32) -> (i32, i32, i32) {
    %c0_i32 = arith.constant 0 : i32
    %c0_i32_0 = arith.constant 0 : i32
    %c0_i32_1 = arith.constant 0 : i32
    return %arg0, %c0_i32, %c0_i32_0 : i32, i32, i32
  }
  func.func @transform_1(%arg0: i32, %arg1: i32) -> (i32, i32) {
    %c0_i32 = arith.constant 0 : i32
    %c0_i32_0 = arith.constant 0 : i32
    %c0_i32_1 = arith.constant 0 : i32
    return %c0_i32, %c0_i32_0 : i32, i32
  }
  func.func @transform_2(%arg0: i32, %arg1: i32) -> (i32, i32) {
    %c0_i32 = arith.constant 0 : i32
    %c0_i32_0 = arith.constant 0 : i32
    %c0_i32_1 = arith.constant 0 : i32
    return %c0_i32, %c0_i32_0 : i32, i32
  }
  func.func @transform_3(%arg0: i32, %arg1: i32) -> (i32, i32) {
    %c0_i32 = arith.constant 0 : i32
    %c0_i32_0 = arith.constant 0 : i32
    %c0_i32_1 = arith.constant 0 : i32
    return %c0_i32, %c0_i32_0 : i32, i32
  }
  func.func @transform_4(%arg0: i32, %arg1: i32) -> (i32, i32) {
    %c0_i32 = arith.constant 0 : i32
    %c0_i32_0 = arith.constant 0 : i32
    %c0_i32_1 = arith.constant 0 : i32
    return %c0_i32, %c0_i32_0 : i32, i32
  }
  func.func @transform_5(%arg0: i32, %arg1: i32) -> (i32, i32) {
    %c0_i32 = arith.constant 0 : i32
    %c0_i32_0 = arith.constant 0 : i32
    %c0_i32_1 = arith.constant 0 : i32
    return %c0_i32, %c0_i32_0 : i32, i32
  }
  func.func @transform_6(%arg0: i32, %arg1: i32) -> (i32, i32) {
    %c0_i32 = arith.constant 0 : i32
    %c0_i32_0 = arith.constant 0 : i32
    %c0_i32_1 = arith.constant 0 : i32
    return %c0_i32, %c0_i32_0 : i32, i32
  }
  func.func @transform_7(%arg0: i32, %arg1: i32) -> (i32, i32) {
    %c0_i32 = arith.constant 0 : i32
    %c0_i32_0 = arith.constant 0 : i32
    %c0_i32_1 = arith.constant 0 : i32
    return %c0_i32, %c0_i32_0 : i32, i32
  }
  func.func @transform_8(%arg0: i32, %arg1: i32) -> (i32, i32) {
    %c0_i32 = arith.constant 0 : i32
    %c0_i32_0 = arith.constant 0 : i32
    %c0_i32_1 = arith.constant 0 : i32
    return %c0_i32, %c0_i32_0 : i32, i32
  }
  func.func @transform_9(%arg0: i32, %arg1: i32) -> (i32, i32) {
    %c0_i32 = arith.constant 0 : i32
    %c0_i32_0 = arith.constant 0 : i32
    %c0_i32_1 = arith.constant 0 : i32
    return %c0_i32, %c0_i32_0 : i32, i32
  }
  func.func @transform_10(%arg0: i32, %arg1: i32) -> (i32, i32) {
    %c0_i32 = arith.constant 0 : i32
    %c0_i32_0 = arith.constant 0 : i32
    %c0_i32_1 = arith.constant 0 : i32
    return %c0_i32, %c0_i32_0 : i32, i32
  }
  func.func @transform_11(%arg0: i32, %arg1: i32) -> (i32, i32) {
    %c0_i32 = arith.constant 0 : i32
    %c0_i32_0 = arith.constant 0 : i32
    %c0_i32_1 = arith.constant 0 : i32
    return %c0_i32, %c0_i32_0 : i32, i32
  }
  func.func @transform_12(%arg0: i32, %arg1: i32) -> (i32, i32) {
    %c0_i32 = arith.constant 0 : i32
    %c0_i32_0 = arith.constant 0 : i32
    %c0_i32_1 = arith.constant 0 : i32
    return %c0_i32, %c0_i32_0 : i32, i32
  }
  func.func @transform_13(%arg0: i32, %arg1: i32) -> (i32, i32) {
    %c0_i32 = arith.constant 0 : i32
    %c0_i32_0 = arith.constant 0 : i32
    %c0_i32_1 = arith.constant 0 : i32
    return %c0_i32, %c0_i32_0 : i32, i32
  }
  func.func @transform_14(%arg0: i32, %arg1: i32) -> (i32, i32) {
    %c0_i32 = arith.constant 0 : i32
    %c0_i32_0 = arith.constant 0 : i32
    %c0_i32_1 = arith.constant 0 : i32
    return %c0_i32, %c0_i32_0 : i32, i32
  }
  func.func @transform_15(%arg0: i32, %arg1: i32) -> (i32, i32, i32) {
    %c0_i32 = arith.constant 0 : i32
    %c0_i32_0 = arith.constant 0 : i32
    return %arg0, %arg1, %c0_i32 : i32, i32, i32
  }
}

</mosaic_0001>

<llo_original>
// kernel: tpu_custom_call.1
$region0: #{tpu_custom_call.1}
  #allocation0 [shape = 'u32[]', space=smem, size = 0x4, offset = 0x4, fixed_abs, tag = 'smem constant byte address 0x4 - core index']
  #allocation1 [shape = 'u32[144,128]{1,0:T(1,128)}', space=vmem, size = 0x12000, scoped, tag = 'internal scratch']
  #allocation2 [shape = 'bf16[4,8,16]{2,1,0:T(8,128)(2,1)}', space=vmem, size = 0x2000, scoped, tag = 'scratch operand']
  #allocation3 [shape = 'bf16[4,16,8]{2,1,0:T(16,128)(2,1)}', space=vmem, size = 0x4000, scoped, tag = 'scratch operand']
  %s0 = inlined_call_operand.vmem [shape: f32[2,16,32], index: 0, kind: input, shape index: {}]
  %s1 = inlined_call_operand.vmem [shape: f32[1,32], index: 1, kind: input, shape index: {}]
  %s2 = inlined_call_operand.vmem [shape: f32[1,32], index: 2, kind: input, shape index: {}]
  %s3 = inlined_call_operand.vmem [shape: bf16[32,32], index: 3, kind: input, shape index: {}]
  %s4 = inlined_call_operand.hbm [shape: f32[1,32], index: 4, kind: input, shape index: {}]
  %s5 = inlined_call_operand.vmem [shape: bf16[32,64], index: 5, kind: input, shape index: {}]
  %s6 = inlined_call_operand.hbm [shape: f32[1,64], index: 6, kind: input, shape index: {}]
  %s7 = inlined_call_operand.vmem [shape: bf16[32,32], index: 7, kind: input, shape index: {}]
  %s8 = inlined_call_operand.hbm [shape: f32[1,32], index: 8, kind: input, shape index: {}]
  %s9 = inlined_call_operand.hbm [shape: f32[1,32], index: 9, kind: input, shape index: {}]
  %s10 = inlined_call_operand.vmem [shape: f32[1,32], index: 10, kind: input, shape index: {}]
  %s11 = inlined_call_operand.vmem [shape: bf16[32,128], index: 11, kind: input, shape index: {}]
  %s12 = inlined_call_operand.vmem [shape: f32[1,128], index: 12, kind: input, shape index: {}]
  %s13 = inlined_call_operand.vmem [shape: bf16[128,32], index: 13, kind: input, shape index: {}]
  %s14 = inlined_call_operand.vmem [shape: f32[1,32], index: 14, kind: input, shape index: {}]
  %s15 = inlined_call_operand.hbm [shape: f32[2,16,32], index: 15, kind: output, shape index: {}]
  %s16 = sld [smem:[#allocation0]]
  $region113: #{tpu_custom_call.1} parent=0
    _
  %s18 = ssub.s32 1, %s16
  %s19 = scalar_select 0, %s18, %s16
  $region1: #{tpu_custom_call.1} parent=0
    #allocation4 [shape = 'u8[512]{0}', space=vmem, size = 0x400, scoped, tag = 'input window, operand 4, single buffered']
    #allocation5 [shape = 's32[2]{0}', space=sflag, size = 0x8, scoped, tag = 'scoped memory for tpu_custom_call.1']
    #allocation6 [shape = 's32[2]{0}', space=sflag, size = 0x8, scoped, tag = 'scoped memory for tpu_custom_call.1']
    #allocation7 [shape = 'u8[512]{0}', space=vmem, size = 0x400, scoped, tag = 'input window, operand 6, single buffered']
    #allocation8 [shape = 's32[1]{0}', space=sflag, size = 0x4, scoped, tag = 'scoped memory for tpu_custom_call.1']
    #allocation9 [shape = 'u8[512]{0}', space=vmem, size = 0x400, scoped, tag = 'input window, operand 8, single buffered']
    #allocation10 [shape = 'u8[512]{0}', space=vmem, size = 0x400, scoped, tag = 'input window, operand 9, single buffered']
    #allocation11 [shape = 's32[1]{0}', space=sflag, size = 0x4, scoped, tag = 'scoped memory for tpu_custom_call.1']
    #allocation12 [shape = 'u8[8192]{0}', space=vmem, size = 0x2000, scoped, tag = 'output window, operand 0']
    %20 = vsyncpa [#allocation5], 0
    %21 = vsyncpa [#allocation8], 0
    %22 = vsyncpa [#allocation11], 0
    %23 = vsyncpa [#allocation6], 0
    %s24 = scalar_lea.sflag [#allocation6], 1
    %25 = vsyncpa %s24, 0
    loop: start=0, step=1, limit=6
    $region2: #{tpu_custom_call.1} parent=1 // loop_pre_header
      _
    $region3: #{tpu_custom_call.1} parent=1 // loop_header
      %s27 = sphi 0, %s31
      %p28 = scmp.ge.s32.totalorder %s27, 6
      %s34 = sphi 0, %s46
      %s35 = sphi 0, %s42
      %s36 = sphi 0, %s34
      %s37 = sphi 0, %s35
      %s38 = sphi 0, %s36
      %s39 = sphi 0, %s37
      %s49 = sphi 0, %s51
      %s52 = sphi 0, %s49
      %s53 = sphi 0, %s52
      %s69 = sphi 0, %s53
      %s73 = sphi 0, %s73
      %s75 = sphi 0, %s73
      %s76 = sphi 0, %s75
      %s90 = sphi 0, %s76
      %s94 = sphi 0, %s94
      %s96 = sphi 0, %s94
      %s97 = sphi 0, %s96
      %s111 = sphi 0, %s97
      %s115 = sphi 0, %s115
      %s117 = sphi 0, %s115
      %s118 = sphi 0, %s117
      %s132 = sphi 0, %s118
      %s136 = sphi 0, %s136
      %s138 = sphi 0, %s136
      %s139 = sphi 0, %s138
      %s153 = sphi 0, %s139
      %s157 = sphi 0, %s157
      %s159 = sphi 0, %s157
      %s160 = sphi 0, %s159
      %s174 = sphi 0, %s160
      %s178 = sphi 0, %s178
      %s180 = sphi 0, %s178
      %s181 = sphi 0, %s180
      %s195 = sphi 0, %s181
      %s199 = sphi 0, %s199
      %s201 = sphi 0, %s199
      %s202 = sphi 0, %s201
      %s216 = sphi 0, %s202
      %s220 = sphi 0, %s220
      %s222 = sphi 0, %s220
      %s223 = sphi 0, %s222
      %s237 = sphi 0, %s223
      %s241 = sphi 0, %s241
      %s243 = sphi 0, %s241
      %s244 = sphi 0, %s243
      %s258 = sphi 0, %s244
      %s262 = sphi 0, %s262
      %s264 = sphi 0, %s262
      %s265 = sphi 0, %s264
      %s279 = sphi 0, %s265
      %s283 = sphi 0, %s283
      %s285 = sphi 0, %s283
      %s286 = sphi 0, %s285
      %s300 = sphi 0, %s286
      %s304 = sphi 0, %s304
      %s306 = sphi 0, %s304
      %s307 = sphi 0, %s306
      %s321 = sphi 0, %s307
      %s325 = sphi 0, %s325
      %s327 = sphi 0, %s325
      %s328 = sphi 0, %s327
      %s342 = sphi 0, %s328
      %s346 = sphi 0, %s346
      %s348 = sphi 0, %s346
      %s349 = sphi 0, %s348
      %s363 = sphi 0, %s349
      %s371 = sphi 0, %s373
      %s374 = sphi 0, %s371
      %s375 = sphi 0, %s374
      %s391 = sphi 0, %s375
    $region4: #{tpu_custom_call.1} parent=1 // loop_header_branch
      %30 = sbr.rel (%p28) target = $region8
    $region5: #{tpu_custom_call.1} parent=1 // loop_body
      %s32 = ssub.s32 %s27, 1
      %s33 = ssub.s32 %s27, 2
      %s40 = sadd.s32 1, %s35
      %p41 = scmp.ge.s32.totalorder %s40, 2
      %s42 = scalar_select %p41, 0, %s40
      %s43 = sadd.s32 1, %s34
      %s44 = scalar_select %p41, %s43, %s34
      %p45 = scmp.ge.s32.totalorder %s44, 2
      %s46 = scalar_select %p45, 0, %s44
      %s47 = ssub.s32 %s34, %s46
      %p48 = scmp.eq.s32.totalorder %s47, 0
      %s50 = sadd.s32 %s49, 1
      %s51 = scalar_select %p48, %s49, %s50
      %p54 = pneg %p48
      %p55 = scmp.eq.s32.totalorder %s27, 3
      %p56 = por %p54, %p55
      %p57 = scmp.ne.s32.totalorder %s49, %s52
      %p58 = scmp.eq.s32.totalorder %s27, 0
      %p59 = por %p57, %p58
      %p60 = scmp.ne.s32.totalorder %s49, %s52
      %p61 = scmp.eq.s32.totalorder %s32, 3
      %p62 = por %p60, %p61
      %p63 = scmp.ne.s32.totalorder %s52, %s53
      %p64 = scmp.eq.s32.totalorder %s32, 0
      %p65 = por %p63, %p64
      %p66 = scmp.ne.s32.totalorder %s52, %s53
      %p67 = scmp.eq.s32.totalorder %s33, 3
      %p68 = por %p66, %p67
      %p70 = scmp.ne.s32.totalorder %s53, %s69
      %p71 = scmp.eq.s32.totalorder %s33, 0
      %p72 = por %p70, %p71
      %s74 = sadd.s32 %s73, 1
      %p77 = scmp.eq.s32.totalorder %s27, 3
      %p78 = scmp.ne.s32.totalorder %s73, %s75
      %p79 = scmp.eq.s32.totalorder %s27, 0
      %p80 = por %p78, %p79
      %p81 = scmp.ne.s32.totalorder %s73, %s75
      %p82 = scmp.eq.s32.totalorder %s32, 3
      %p83 = por %p81, %p82
      %p84 = scmp.ne.s32.totalorder %s75, %s76
      %p85 = scmp.eq.s32.totalorder %s32, 0
      %p86 = por %p84, %p85
      %p87 = scmp.ne.s32.totalorder %s75, %s76
      %p88 = scmp.eq.s32.totalorder %s33, 3
      %p89 = por %p87, %p88
      %p91 = scmp.ne.s32.totalorder %s76, %s90
      %p92 = scmp.eq.s32.totalorder %s33, 0
      %p93 = por %p91, %p92
      %s95 = sadd.s32 %s94, 1
      %p98 = scmp.eq.s32.totalorder %s27, 3
      %p99 = scmp.ne.s32.totalorder %s94, %s96
      %p100 = scmp.eq.s32.totalorder %s27, 0
      %p101 = por %p99, %p100
      %p102 = scmp.ne.s32.totalorder %s94, %s96
      %p103 = scmp.eq.s32.totalorder %s32, 3
      %p104 = por %p102, %p103
      %p105 = scmp.ne.s32.totalorder %s96, %s97
      %p106 = scmp.eq.s32.totalorder %s32, 0
      %p107 = por %p105, %p106
      %p108 = scmp.ne.s32.totalorder %s96, %s97
      %p109 = scmp.eq.s32.totalorder %s33, 3
      %p110 = por %p108, %p109
      %p112 = scmp.ne.s32.totalorder %s97, %s111
      %p113 = scmp.eq.s32.totalorder %s33, 0
      %p114 = por %p112, %p113
      %s116 = sadd.s32 %s115, 1
      %p119 = scmp.eq.s32.totalorder %s27, 3
      %p120 = scmp.ne.s32.totalorder %s115, %s117
      %p121 = scmp.eq.s32.totalorder %s27, 0
      %p122 = por %p120, %p121
      %p123 = scmp.ne.s32.totalorder %s115, %s117
      %p124 = scmp.eq.s32.totalorder %s32, 3
      %p125 = por %p123, %p124
      %p126 = scmp.ne.s32.totalorder %s117, %s118
      %p127 = scmp.eq.s32.totalorder %s32, 0
      %p128 = por %p126, %p127
      %p129 = scmp.ne.s32.totalorder %s117, %s118
      %p130 = scmp.eq.s32.totalorder %s33, 3
      %p131 = por %p129, %p130
      %p133 = scmp.ne.s32.totalorder %s118, %s132
      %p134 = scmp.eq.s32.totalorder %s33, 0
      %p135 = por %p133, %p134
      %s137 = sadd.s32 %s136, 1
      %p140 = scmp.eq.s32.totalorder %s27, 3
      %p141 = scmp.ne.s32.totalorder %s136, %s138
      %p142 = scmp.eq.s32.totalorder %s27, 0
      %p143 = por %p141, %p142
      %p144 = scmp.ne.s32.totalorder %s136, %s138
      %p145 = scmp.eq.s32.totalorder %s32, 3
      %p146 = por %p144, %p145
      %p147 = scmp.ne.s32.totalorder %s138, %s139
      %p148 = scmp.eq.s32.totalorder %s32, 0
      %p149 = por %p147, %p148
      %p150 = scmp.ne.s32.totalorder %s138, %s139
      %p151 = scmp.eq.s32.totalorder %s33, 3
      %p152 = por %p150, %p151
      %p154 = scmp.ne.s32.totalorder %s139, %s153
      %p155 = scmp.eq.s32.totalorder %s33, 0
      %p156 = por %p154, %p155
      %s158 = sadd.s32 %s157, 1
      %p161 = scmp.eq.s32.totalorder %s27, 3
      %p162 = scmp.ne.s32.totalorder %s157, %s159
      %p163 = scmp.eq.s32.totalorder %s27, 0
      %p164 = por %p162, %p163
      %p165 = scmp.ne.s32.totalorder %s157, %s159
      %p166 = scmp.eq.s32.totalorder %s32, 3
      %p167 = por %p165, %p166
      %p168 = scmp.ne.s32.totalorder %s159, %s160
      %p169 = scmp.eq.s32.totalorder %s32, 0
      %p170 = por %p168, %p169
      %p171 = scmp.ne.s32.totalorder %s159, %s160
      %p172 = scmp.eq.s32.totalorder %s33, 3
      %p173 = por %p171, %p172
      %p175 = scmp.ne.s32.totalorder %s160, %s174
      %p176 = scmp.eq.s32.totalorder %s33, 0
      %p177 = por %p175, %p176
      %s179 = sadd.s32 %s178, 1
      %p182 = scmp.eq.s32.totalorder %s27, 3
      %p183 = scmp.ne.s32.totalorder %s178, %s180
      %p184 = scmp.eq.s32.totalorder %s27, 0
      %p185 = por %p183, %p184
      %p186 = scmp.ne.s32.totalorder %s178, %s180
      %p187 = scmp.eq.s32.totalorder %s32, 3
      %p188 = por %p186, %p187
      %p189 = scmp.ne.s32.totalorder %s180, %s181
      %p190 = scmp.eq.s32.totalorder %s32, 0
      %p191 = por %p189, %p190
      %p192 = scmp.ne.s32.totalorder %s180, %s181
      %p193 = scmp.eq.s32.totalorder %s33, 3
      %p194 = por %p192, %p193
      %p196 = scmp.ne.s32.totalorder %s181, %s195
      %p197 = scmp.eq.s32.totalorder %s33, 0
      %p198 = por %p196, %p197
      %s200 = sadd.s32 %s199, 1
      %p203 = scmp.eq.s32.totalorder %s27, 3
      %p204 = scmp.ne.s32.totalorder %s199, %s201
      %p205 = scmp.eq.s32.totalorder %s27, 0
      %p206 = por %p204, %p205
      %p207 = scmp.ne.s32.totalorder %s199, %s201
      %p208 = scmp.eq.s32.totalorder %s32, 3
      %p209 = por %p207, %p208
      %p210 = scmp.ne.s32.totalorder %s201, %s202
      %p211 = scmp.eq.s32.totalorder %s32, 0
      %p212 = por %p210, %p211
      %p213 = scmp.ne.s32.totalorder %s201, %s202
      %p214 = scmp.eq.s32.totalorder %s33, 3
      %p215 = por %p213, %p214
      %p217 = scmp.ne.s32.totalorder %s202, %s216
      %p218 = scmp.eq.s32.totalorder %s33, 0
      %p219 = por %p217, %p218
      %s221 = sadd.s32 %s220, 1
      %p224 = scmp.eq.s32.totalorder %s27, 3
      %p225 = scmp.ne.s32.totalorder %s220, %s222
      %p226 = scmp.eq.s32.totalorder %s27, 0
      %p227 = por %p225, %p226
      %p228 = scmp.ne.s32.totalorder %s220, %s222
      %p229 = scmp.eq.s32.totalorder %s32, 3
      %p230 = por %p228, %p229
      %p231 = scmp.ne.s32.totalorder %s222, %s223
      %p232 = scmp.eq.s32.totalorder %s32, 0
      %p233 = por %p231, %p232
      %p234 = scmp.ne.s32.totalorder %s222, %s223
      %p235 = scmp.eq.s32.totalorder %s33, 3
      %p236 = por %p234, %p235
      %p238 = scmp.ne.s32.totalorder %s223, %s237
      %p239 = scmp.eq.s32.totalorder %s33, 0
      %p240 = por %p238, %p239
      %s242 = sadd.s32 %s241, 1
      %p245 = scmp.eq.s32.totalorder %s27, 3
      %p246 = scmp.ne.s32.totalorder %s241, %s243
      %p247 = scmp.eq.s32.totalorder %s27, 0
      %p248 = por %p246, %p247
      %p249 = scmp.ne.s32.totalorder %s241, %s243
      %p250 = scmp.eq.s32.totalorder %s32, 3
      %p251 = por %p249, %p250
      %p252 = scmp.ne.s32.totalorder %s243, %s244
      %p253 = scmp.eq.s32.totalorder %s32, 0
      %p254 = por %p252, %p253
      %p255 = scmp.ne.s32.totalorder %s243, %s244
      %p256 = scmp.eq.s32.totalorder %s33, 3
      %p257 = por %p255, %p256
      %p259 = scmp.ne.s32.totalorder %s244, %s258
      %p260 = scmp.eq.s32.totalorder %s33, 0
      %p261 = por %p259, %p260
      %s263 = sadd.s32 %s262, 1
      %p266 = scmp.eq.s32.totalorder %s27, 3
      %p267 = scmp.ne.s32.totalorder %s262, %s264
      %p268 = scmp.eq.s32.totalorder %s27, 0
      %p269 = por %p267, %p268
      %p270 = scmp.ne.s32.totalorder %s262, %s264
      %p271 = scmp.eq.s32.totalorder %s32, 3
      %p272 = por %p270, %p271
      %p273 = scmp.ne.s32.totalorder %s264, %s265
      %p274 = scmp.eq.s32.totalorder %s32, 0
      %p275 = por %p273, %p274
      %p276 = scmp.ne.s32.totalorder %s264, %s265
      %p277 = scmp.eq.s32.totalorder %s33, 3
      %p278 = por %p276, %p277
      %p280 = scmp.ne.s32.totalorder %s265, %s279
      %p281 = scmp.eq.s32.totalorder %s33, 0
      %p282 = por %p280, %p281
      %s284 = sadd.s32 %s283, 1
      %p287 = scmp.eq.s32.totalorder %s27, 3
      %p288 = scmp.ne.s32.totalorder %s283, %s285
      %p289 = scmp.eq.s32.totalorder %s27, 0
      %p290 = por %p288, %p289
      %p291 = scmp.ne.s32.totalorder %s283, %s285
      %p292 = scmp.eq.s32.totalorder %s32, 3
      %p293 = por %p291, %p292
      %p294 = scmp.ne.s32.totalorder %s285, %s286
      %p295 = scmp.eq.s32.totalorder %s32, 0
      %p296 = por %p294, %p295
      %p297 = scmp.ne.s32.totalorder %s285, %s286
      %p298 = scmp.eq.s32.totalorder %s33, 3
      %p299 = por %p297, %p298
      %p301 = scmp.ne.s32.totalorder %s286, %s300
      %p302 = scmp.eq.s32.totalorder %s33, 0
      %p303 = por %p301, %p302
      %s305 = sadd.s32 %s304, 1
      %p308 = scmp.eq.s32.totalorder %s27, 3
      %p309 = scmp.ne.s32.totalorder %s304, %s306
      %p310 = scmp.eq.s32.totalorder %s27, 0
      %p311 = por %p309, %p310
      %p312 = scmp.ne.s32.totalorder %s304, %s306
      %p313 = scmp.eq.s32.totalorder %s32, 3
      %p314 = por %p312, %p313
      %p315 = scmp.ne.s32.totalorder %s306, %s307
      %p316 = scmp.eq.s32.totalorder %s32, 0
      %p317 = por %p315, %p316
      %p318 = scmp.ne.s32.totalorder %s306, %s307
      %p319 = scmp.eq.s32.totalorder %s33, 3
      %p320 = por %p318, %p319
      %p322 = scmp.ne.s32.totalorder %s307, %s321
      %p323 = scmp.eq.s32.totalorder %s33, 0
      %p324 = por %p322, %p323
      %s326 = sadd.s32 %s325, 1
      %p329 = scmp.eq.s32.totalorder %s27, 3
      %p330 = scmp.ne.s32.totalorder %s325, %s327
      %p331 = scmp.eq.s32.totalorder %s27, 0
      %p332 = por %p330, %p331
      %p333 = scmp.ne.s32.totalorder %s325, %s327
      %p334 = scmp.eq.s32.totalorder %s32, 3
      %p335 = por %p333, %p334
      %p336 = scmp.ne.s32.totalorder %s327, %s328
      %p337 = scmp.eq.s32.totalorder %s32, 0
      %p338 = por %p336, %p337
      %p339 = scmp.ne.s32.totalorder %s327, %s328
      %p340 = scmp.eq.s32.totalorder %s33, 3
      %p341 = por %p339, %p340
      %p343 = scmp.ne.s32.totalorder %s328, %s342
      %p344 = scmp.eq.s32.totalorder %s33, 0
      %p345 = por %p343, %p344
      %s347 = sadd.s32 %s346, 1
      %p350 = scmp.eq.s32.totalorder %s27, 3
      %p351 = scmp.ne.s32.totalorder %s346, %s348
      %p352 = scmp.eq.s32.totalorder %s27, 0
      %p353 = por %p351, %p352
      %p354 = scmp.ne.s32.totalorder %s346, %s348
      %p355 = scmp.eq.s32.totalorder %s32, 3
      %p356 = por %p354, %p355
      %p357 = scmp.ne.s32.totalorder %s348, %s349
      %p358 = scmp.eq.s32.totalorder %s32, 0
      %p359 = por %p357, %p358
      %p360 = scmp.ne.s32.totalorder %s348, %s349
      %p361 = scmp.eq.s32.totalorder %s33, 3
      %p362 = por %p360, %p361
      %p364 = scmp.ne.s32.totalorder %s349, %s363
      %p365 = scmp.eq.s32.totalorder %s33, 0
      %p366 = por %p364, %p365
      %s367 = ssub.s32 %s34, %s46
      %s368 = ssub.s32 %s35, %s42
      %s369 = sor.u32 %s367, %s368
      %p370 = scmp.eq.s32.totalorder %s369, 0
      %s372 = sadd.s32 %s371, 1
      %s373 = scalar_select %p370, %s371, %s372
      %p376 = pneg %p370
      %p377 = scmp.eq.s32.totalorder %s27, 3
      %p378 = por %p376, %p377
      %p379 = scmp.ne.s32.totalorder %s371, %s374
      %p380 = scmp.eq.s32.totalorder %s27, 0
      %p381 = por %p379, %p380
      %p382 = scmp.ne.s32.totalorder %s371, %s374
      %p383 = scmp.eq.s32.totalorder %s32, 3
      %p384 = por %p382, %p383
      %p385 = scmp.ne.s32.totalorder %s374, %s375
      %p386 = scmp.eq.s32.totalorder %s32, 0
      %p387 = por %p385, %p386
      %p388 = scmp.ne.s32.totalorder %s374, %s375
      %p389 = scmp.eq.s32.totalorder %s33, 3
      %p390 = por %p388, %p389
      %p392 = scmp.ne.s32.totalorder %s375, %s391
      %p393 = scmp.eq.s32.totalorder %s33, 0
      %p394 = por %p392, %p393
      %p395 = scmp.le.s32.totalorder 1, %s27
      %p396 = scmp.lt.s32.totalorder %s27, 5
      %p397 = pnand %p395, %p396
      %p398 = pneg %p397
      // Predicated region
      $region9: #{tpu_custom_call.1} parent=5 // pred_check
        _
      $region10: #{tpu_custom_call.1} parent=5 // pred_check_branch
        %400 = sbr.rel (%p397) target = $region12
      $region11: #{tpu_custom_call.1} parent=5 // pred_region
        %s401 = ssub.s32 %s27, 1
        // Predicated region
        $region13: #{tpu_custom_call.1} parent=11 // pred_check
          %p402 = pneg %p86
        $region14: #{tpu_custom_call.1} parent=11 // pred_check_branch
          %404 = sbr.rel (%p402) target = $region16
        $region15: #{tpu_custom_call.1} parent=11 // pred_region
          _
        $region16: #{tpu_custom_call.1} parent=11 // pred_fallthru
          _
        // Predicated region
        $region17: #{tpu_custom_call.1} parent=11 // pred_check
          %p405 = pneg %p107
        $region18: #{tpu_custom_call.1} parent=11 // pred_check_branch
          %407 = sbr.rel (%p405) target = $region20
        $region19: #{tpu_custom_call.1} parent=11 // pred_region
          _
        $region20: #{tpu_custom_call.1} parent=11 // pred_fallthru
          _
        // Predicated region
        $region21: #{tpu_custom_call.1} parent=11 // pred_check
          %p408 = pneg %p128
        $region22: #{tpu_custom_call.1} parent=11 // pred_check_branch
          %410 = sbr.rel (%p408) target = $region24
        $region23: #{tpu_custom_call.1} parent=11 // pred_region
          _
        $region24: #{tpu_custom_call.1} parent=11 // pred_fallthru
          _
        // Predicated region
        $region25: #{tpu_custom_call.1} parent=11 // pred_check
          %p411 = pneg %p149
        $region26: #{tpu_custom_call.1} parent=11 // pred_check_branch
          %413 = sbr.rel (%p411) target = $region28
        $region27: #{tpu_custom_call.1} parent=11 // pred_region
          %s415 = ssub.s32 16, 16
          %416 = vsyncadd [#allocation5], %s415
          %s418 = sshll.u32 [#allocation4], 4
          %s419 = int_to_ptr.vmem [resolvable:$true] %s418
          %421 = dma.hbm_to_vmem [thread:$0]  %s4, 16, %s419, [#allocation5]
        $region28: #{tpu_custom_call.1} parent=11 // pred_fallthru
          _
        // Predicated region
        $region29: #{tpu_custom_call.1} parent=11 // pred_check
          %p422 = pneg %p170
        $region30: #{tpu_custom_call.1} parent=11 // pred_check_branch
          %424 = sbr.rel (%p422) target = $region32
        $region31: #{tpu_custom_call.1} parent=11 // pred_region
          _
        $region32: #{tpu_custom_call.1} parent=11 // pred_fallthru
          _
        // Predicated region
        $region33: #{tpu_custom_call.1} parent=11 // pred_check
          %p425 = pneg %p191
        $region34: #{tpu_custom_call.1} parent=11 // pred_check_branch
          %427 = sbr.rel (%p425) target = $region36
        $region35: #{tpu_custom_call.1} parent=11 // pred_region
          %s429 = ssub.s32 16, 16
          %430 = vsyncadd [#allocation8], %s429
          %s432 = sshll.u32 [#allocation7], 4
          %s433 = int_to_ptr.vmem [resolvable:$true] %s432
          %435 = dma.hbm_to_vmem [thread:$0]  %s6, 16, %s433, [#allocation8]
        $region36: #{tpu_custom_call.1} parent=11 // pred_fallthru
          _
        // Predicated region
        $region37: #{tpu_custom_call.1} parent=11 // pred_check
          %p436 = pneg %p212
        $region38: #{tpu_custom_call.1} parent=11 // pred_check_branch
          %438 = sbr.rel (%p436) target = $region40
        $region39: #{tpu_custom_call.1} parent=11 // pred_region
          _
        $region40: #{tpu_custom_call.1} parent=11 // pred_fallthru
          _
        // Predicated region
        $region41: #{tpu_custom_call.1} parent=11 // pred_check
          %p439 = pneg %p233
        $region42: #{tpu_custom_call.1} parent=11 // pred_check_branch
          %441 = sbr.rel (%p439) target = $region44
        $region43: #{tpu_custom_call.1} parent=11 // pred_region
          %s443 = ssub.s32 16, 16
          %444 = vsyncadd [#allocation8], %s443
          %s446 = sshll.u32 [#allocation9], 4
          %s447 = int_to_ptr.vmem [resolvable:$true] %s446
          %449 = dma.hbm_to_vmem [thread:$0]  %s8, 16, %s447, [#allocation8]
        $region44: #{tpu_custom_call.1} parent=11 // pred_fallthru
          _
        // Predicated region
        $region45: #{tpu_custom_call.1} parent=11 // pred_check
          %p450 = pneg %p254
        $region46: #{tpu_custom_call.1} parent=11 // pred_check_branch
          %452 = sbr.rel (%p450) target = $region48
        $region47: #{tpu_custom_call.1} parent=11 // pred_region
          %s454 = ssub.s32 16, 16
          %455 = vsyncadd [#allocation11], %s454
          %s457 = sshll.u32 [#allocation10], 4
          %s458 = int_to_ptr.vmem [resolvable:$true] %s457
          %460 = dma.hbm_to_vmem [thread:$0]  %s9, 16, %s458, [#allocation11]
        $region48: #{tpu_custom_call.1} parent=11 // pred_fallthru
          _
        // Predicated region
        $region49: #{tpu_custom_call.1} parent=11 // pred_check
          %p461 = pneg %p275
        $region50: #{tpu_custom_call.1} parent=11 // pred_check_branch
          %463 = sbr.rel (%p461) target = $region52
        $region51: #{tpu_custom_call.1} parent=11 // pred_region
          _
        $region52: #{tpu_custom_call.1} parent=11 // pred_fallthru
          _
        // Predicated region
        $region53: #{tpu_custom_call.1} parent=11 // pred_check
          %p464 = pneg %p296
        $region54: #{tpu_custom_call.1} parent=11 // pred_check_branch
          %466 = sbr.rel (%p464) target = $region56
        $region55: #{tpu_custom_call.1} parent=11 // pred_region
          _
        $region56: #{tpu_custom_call.1} parent=11 // pred_fallthru
          _
        // Predicated region
        $region57: #{tpu_custom_call.1} parent=11 // pred_check
          %p467 = pneg %p317
        $region58: #{tpu_custom_call.1} parent=11 // pred_check_branch
          %469 = sbr.rel (%p467) target = $region60
        $region59: #{tpu_custom_call.1} parent=11 // pred_region
          _
        $region60: #{tpu_custom_call.1} parent=11 // pred_fallthru
          _
        // Predicated region
        $region61: #{tpu_custom_call.1} parent=11 // pred_check
          %p470 = pneg %p338
        $region62: #{tpu_custom_call.1} parent=11 // pred_check_branch
          %472 = sbr.rel (%p470) target = $region64
        $region63: #{tpu_custom_call.1} parent=11 // pred_region
          _
        $region64: #{tpu_custom_call.1} parent=11 // pred_fallthru
          _
        // Predicated region
        $region65: #{tpu_custom_call.1} parent=11 // pred_check
          %p473 = pneg %p359
        $region66: #{tpu_custom_call.1} parent=11 // pred_check_branch
          %475 = sbr.rel (%p473) target = $region68
        $region67: #{tpu_custom_call.1} parent=11 // pred_region
          _
        $region68: #{tpu_custom_call.1} parent=11 // pred_fallthru
          _
      $region12: #{tpu_custom_call.1} parent=5 // pred_fallthru
        _
      %p476 = scmp.lt.s32.totalorder %s27, 4
      // Predicated region
      $region69: #{tpu_custom_call.1} parent=5 // pred_check
        %p477 = pneg %p476
      $region70: #{tpu_custom_call.1} parent=5 // pred_check_branch
        %479 = sbr.rel (%p477) target = $region72
      $region71: #{tpu_custom_call.1} parent=5 // pred_region
        // Predicated region
        $region73: #{tpu_custom_call.1} parent=71 // pred_check
          %p480 = pneg %p59
        $region74: #{tpu_custom_call.1} parent=71 // pred_check_branch
          %482 = sbr.rel (%p480) target = $region76
        $region75: #{tpu_custom_call.1} parent=71 // pred_region
          %p483 = scmp.lt.s32.totalorder %s34, 1
          %s484 = scalar_select %p483, %s34, 1
          %s485 = smul.addr %s484, 2
          %s486 = smul.addr %s485, 8
          %s487 = scalar_lea.vmem %s0, %s486
        $region76: #{tpu_custom_call.1} parent=71 // pred_fallthru
          _
      $region72: #{tpu_custom_call.1} parent=5 // pred_fallthru
        _
      %p488 = scmp.le.s32.totalorder 1, %s27
      %p489 = scmp.lt.s32.totalorder %s27, 5
      %p490 = pnand %p488, %p489
      %p491 = pneg %p490
      // Predicated region
      $region77: #{tpu_custom_call.1} parent=5 // pred_check
        _
      $region78: #{tpu_custom_call.1} parent=5 // pred_check_branch
        %493 = sbr.rel (%p490) target = $region80
      $region79: #{tpu_custom_call.1} parent=5 // pred_region
        %s494 = ssub.s32 %s27, 1
        // Predicated region
        $region81: #{tpu_custom_call.1} parent=79 // pred_check
          %p495 = pneg %p149
        $region82: #{tpu_custom_call.1} parent=79 // pred_check_branch
          %497 = sbr.rel (%p495) target = $region84
        $region83: #{tpu_custom_call.1} parent=79 // pred_region
          %498 = dma.done [#allocation5], 16
        $region84: #{tpu_custom_call.1} parent=79 // pred_fallthru
          _
        // Predicated region
        $region85: #{tpu_custom_call.1} parent=79 // pred_check
          %p499 = pneg %p191
        $region86: #{tpu_custom_call.1} parent=79 // pred_check_branch
          %501 = sbr.rel (%p499) target = $region88
        $region87: #{tpu_custom_call.1} parent=79 // pred_region
          %502 = dma.done [#allocation8], 16
        $region88: #{tpu_custom_call.1} parent=79 // pred_fallthru
          _
        // Predicated region
        $region89: #{tpu_custom_call.1} parent=79 // pred_check
          %p503 = pneg %p233
        $region90: #{tpu_custom_call.1} parent=79 // pred_check_branch
          %505 = sbr.rel (%p503) target = $region92
        $region91: #{tpu_custom_call.1} parent=79 // pred_region
          %506 = dma.done [#allocation8], 16
        $region92: #{tpu_custom_call.1} parent=79 // pred_fallthru
          _
        // Predicated region
        $region93: #{tpu_custom_call.1} parent=79 // pred_check
          %p507 = pneg %p254
        $region94: #{tpu_custom_call.1} parent=79 // pred_check_branch
          %509 = sbr.rel (%p507) target = $region96
        $region95: #{tpu_custom_call.1} parent=79 // pred_region
          %510 = dma.done [#allocation11], 16
        $region96: #{tpu_custom_call.1} parent=79 // pred_fallthru
          _
        %p511 = scmp.lt.s32.totalorder %s36, 1
        %s512 = scalar_select %p511, %s36, 1
        %s513 = smul.addr %s512, 2
        %s514 = smul.addr %s513, 8
        %s515 = scalar_lea.vmem %s0, %s514
        %p516 = pneg %p65
        %p517 = pneg %p62
        %p518 = pneg %p86
        %p519 = pneg %p83
        %p520 = pneg %p107
        %p521 = pneg %p104
        %p522 = pneg %p128
        %p523 = pneg %p125
        %p524 = pneg %p149
        %p525 = pneg %p146
        %p526 = pneg %p170
        %p527 = pneg %p167
        %p528 = pneg %p191
        %p529 = pneg %p188
        %p530 = pneg %p212
        %p531 = pneg %p209
        %p532 = pneg %p233
        %p533 = pneg %p230
        %p534 = pneg %p254
        %p535 = pneg %p251
        %p536 = pneg %p275
        %p537 = pneg %p272
        %p538 = pneg %p296
        %p539 = pneg %p293
        %p540 = pneg %p317
        %p541 = pneg %p314
        %p542 = pneg %p338
        %p543 = pneg %p335
        %p544 = pneg %p359
        %p545 = pneg %p356
        %p546 = pneg %p387
        %p547 = pneg %p384
        %s548 = sand.u32 %s374, 1
        %s549 = scalar_lea.sflag [#allocation6], %s548
        %s550 = sand.u32 %s374, 1
        %s551 = smul.addr %s550, 8
        %s552 = scalar_lea.vmem [#allocation12], %s551
        %p553 = scmp.lt.s32.totalorder %s36, 1
        %s554 = scalar_select %p553, %s36, 1
        %s555 = smul.addr %s554, 2
        %s556 = smul.addr %s555, 8
        %s557 = scalar_lea.vmem %s0, %s556
        %p559 = scmp.eq.s32.totalorder %s37, 0
        // Predicated region
        $region97: #{tpu_custom_call.1} parent=79 // pred_check
          %p560 = pneg %p559
        $region98: #{tpu_custom_call.1} parent=79 // pred_check_branch
          %562 = sbr.rel (%p560) target = $region100
        $region99: #{tpu_custom_call.1} parent=79 // pred_region
          %v563 = vld [vmem:[%s557] sm:$0xff]
          %v564 = vld [vmem:[%s557 + $0x8] sm:$0xff]
          %v565 = vld [vmem:[%s1] sm:$0x1]
          %v566 = vld [vmem:[%s2] sm:$0x1]
          %vm567 = vcmask 261120
          %v568 = vsel %vm567, %v563, 0.0
          %569 = vadd.xlane.f32.xlu0 %v568
          %v570 = vpop.xlane.xlu0 %569
          %v571 = vsel %vm567, %v564, 0.0
          %572 = vadd.xlane.f32.xlu0 %v571
          %v573 = vpop.xlane.xlu0 %572
          %v574 = vrcp.pop 32.0
          %v575 = vmul.f32 %v570, %v574
          %v576 = vmul.f32 %v573, %v574
          %v577 = vsub.f32 %v563, %v575
          %v578 = vsub.f32 %v564, %v576
          %v579 = vmul.f32 %v577, %v577
          %v580 = vmul.f32 %v578, %v578
          %v581 = vsel %vm567, %v579, 0.0
          %582 = vadd.xlane.f32.xlu0 %v581
          %v583 = vpop.xlane.xlu0 %582
          %v584 = vsel %vm567, %v580, 0.0
          %585 = vadd.xlane.f32.xlu0 %v584
          %v586 = vpop.xlane.xlu0 %585
          %v587 = vmul.f32 %v583, %v574
          %v588 = vmul.f32 %v586, %v574
          %v589 = vadd.f32 %v587, 1e-05
          %v590 = vadd.f32 %v588, 1e-05
          %v591 = vrsqrt.pop %v589
          %v592 = vrsqrt.pop %v590
          %v593 = vmul.f32 %v577, %v591
          %v594 = vmul.f32 %v578, %v592
          %v596 = vlaneseq
          %v597 = vshrl.u32 %v596, 7
          %v598 = vsub.s32 0, %v597
          %v599 = vrot.slane %v565, %v598
          %v601 = vmul.f32 %v593, %v599
          %v602 = vmul.f32 %v594, %v599
          %v604 = vlaneseq
          %v605 = vshrl.u32 %v604, 7
          %v606 = vsub.s32 0, %v605
          %v607 = vrot.slane %v566, %v606
          %v609 = vadd.f32 %v601, %v607
          %v610 = vadd.f32 %v602, %v607
          %v611 = vpack.c.bf16 %v610, %v609
          %v612 = vld [vmem:[%s5] sm:$0xf]
          %v613 = vld [vmem:[%s5 + $0x4] sm:$0xf]
          %v614 = vld [vmem:[%s5 + $0x8] sm:$0xf]
          %v615 = vld [vmem:[%s5 + $0xc] sm:$0xf]
          %v616 = vld [vmem:[#allocation7] sm:$0x1]
          %v618 = vlaneseq
          %v619 = vshrl.u32 %v618, 7
          %v620 = vsub.s32 0, %v619
          %v621 = vrot.slane %v616, %v620
          %v627 = vunpack.c.l.b16 %v612
          %v628 = vunpack.c.l.b16 %v613
          %v629 = vunpack.c.l.b16 %v614
          %v630 = vunpack.c.l.b16 %v615
          %v631 = vpack.c.b16 %v628, %v627
          %v632 = vpack.c.b16 %v630, %v629
          %v636 = vsel %vm567, %v611, 0
          %638 = vmatprep.subr.bf16.mxu0 0
          %639 = vmatpush1.bf16.msra.mxu0 %v631
          %640 = vmatprep.subr.bf16.mxu0 0
          %641 = vmatpush1.bf16.msra.mxu0 %v632
          %642 = vmatprep.subr.bf16.mxu0 0
          %643 = vmatpush1.bf16.msra.mxu0 0
          %644 = vmatprep.subr.bf16.mxu0 0
          %645 = vmatpush1.bf16.msra.mxu0 0
          %646 = vmatprep.subr.bf16.mxu0 0
          %647 = vmatpush1.bf16.msra.mxu0 0
          %648 = vmatprep.subr.bf16.mxu0 0
          %649 = vmatpush1.bf16.msra.mxu0 0
          %650 = vmatprep.subr.bf16.mxu0 0
          %651 = vmatpush1.bf16.msra.mxu0 0
          %652 = vmatprep.subr.bf16.mxu0 0
          %653 = vmatpush1.bf16.msra.mxu0 0
          %654 = vmatprep.subr.bf16.mxu0 0
          %655 = vmatpush1.bf16.msra.mxu0 0
          %656 = vmatprep.subr.bf16.mxu0 0
          %657 = vmatpush1.bf16.msra.mxu0 0
          %658 = vmatprep.subr.bf16.mxu0 0
          %659 = vmatpush1.bf16.msra.mxu0 0
          %660 = vmatprep.subr.bf16.mxu0 0
          %661 = vmatpush1.bf16.msra.mxu0 0
          %662 = vmatprep.subr.bf16.mxu0 0
          %663 = vmatpush1.bf16.msra.mxu0 0
          %664 = vmatprep.subr.bf16.mxu0 0
          %665 = vmatpush1.bf16.msra.mxu0 0
          %666 = vmatprep.subr.bf16.mxu0 0
          %667 = vmatpush1.bf16.msra.mxu0 0
          %668 = vmatprep.subr.bf16.mxu0 0
          %669 = vmatpush1.bf16.msra.mxu0 0
          %670 = vmatprep.mubr.bf16.mxu0 0
          %671 = vmatmul.mubr.bf16.gmra.mrb[0].mxu0 %v636
          %v672 = vpop.f32.mrb[0].mxu0
          %v673 = vadd.f32 %v621, %v672
          %v674 = vpop.f32.mrb[0].mxu0
          %v675 = vpop.f32.mrb[0].mxu0
          %v676 = vadd.f32 %v621, %v675
          %v677 = vpop.f32.mrb[0].mxu0
          %678 = vdwg.mxu0
          %679 = vxpose.xlu0.b32.start [1/16] %v673, 128
          %680 = vxpose.xlu0.b32.cont [2/16] %v676, 128
          %681 = vxpose.xlu0.b32.cont [3/16] 0.0, 128
          %682 = vxpose.xlu0.b32.cont [4/16] 0.0, 128
          %683 = vxpose.xlu0.b32.cont [5/16] 0.0, 128
          %684 = vxpose.xlu0.b32.cont [6/16] 0.0, 128
          %685 = vxpose.xlu0.b32.cont [7/16] 0.0, 128
          %686 = vxpose.xlu0.b32.cont [8/16] 0.0, 128
          %687 = vxpose.xlu0.b32.cont [9/16] 0.0, 128
          %688 = vxpose.xlu0.b32.cont [10/16] 0.0, 128
          %689 = vxpose.xlu0.b32.cont [11/16] 0.0, 128
          %690 = vxpose.xlu0.b32.cont [12/16] 0.0, 128
          %691 = vxpose.xlu0.b32.cont [13/16] 0.0, 128
          %692 = vxpose.xlu0.b32.cont [14/16] 0.0, 128
          %693 = vxpose.xlu0.b32.cont [15/16] 0.0, 128
          %694 = vxpose.xlu0.b32.end [16/16] 0.0, 128
          %v695 = vpop.trf.xlu0
          %v696 = vpop.trf.xlu0
          %v697 = vpop.trf.xlu0
          %v698 = vpop.trf.xlu0
          %v699 = vpop.trf.xlu0
          %v700 = vpop.trf.xlu0
          %v701 = vpop.trf.xlu0
          %v702 = vpop.trf.xlu0
          %v703 = vpop.trf.xlu0
          %v704 = vpop.trf.xlu0
          %v705 = vpop.trf.xlu0
          %v706 = vpop.trf.xlu0
          %v707 = vpop.trf.xlu0
          %v708 = vpop.trf.xlu0
          %v709 = vpop.trf.xlu0
          %v710 = vpop.trf.xlu0
          %v711 = vpack.c.bf16 %v695, %v695
          %vm712 = vcmask 125952
          %713 = vst.msk [vmem:[#allocation2] sm:$0xf] %vm712, %v711
          %v714 = vpack.c.bf16 %v676, %v673
          %716 = vrot.lane.b32.xlu0 %v714, 96
          %v717 = vpop.permute.xlu0 %716
          %vm719 = vcmask 64512
          %720 = vst.msk [vmem:[#allocation3] sm:$0xff] %vm719, %v717
          %v721 = vpack.c.bf16 %v696, %v696
          %s722 = scalar_lea.vmem [#allocation2], 4
          %723 = vst.msk [vmem:[%s722] sm:$0xf] %vm712, %v721
          %724 = vrot.lane.b32.xlu0 %v714, 88
          %v725 = vpop.permute.xlu0 %724
          %s727 = scalar_lea.vmem [#allocation3], 8
          %728 = vst.msk [vmem:[%s727] sm:$0xff] %vm719, %v725
          %v729 = vpack.c.bf16 %v697, %v697
          %s730 = scalar_lea.vmem [#allocation2], 8
          %731 = vst.msk [vmem:[%s730] sm:$0xf] %vm712, %v729
          %732 = vrot.lane.b32.xlu0 %v714, 80
          %v733 = vpop.permute.xlu0 %732
          %s735 = scalar_lea.vmem [#allocation3], 16
          %736 = vst.msk [vmem:[%s735] sm:$0xff] %vm719, %v733
          %v737 = vpack.c.bf16 %v698, %v698
          %s738 = scalar_lea.vmem [#allocation2], 12
          %739 = vst.msk [vmem:[%s738] sm:$0xf] %vm712, %v737
          %740 = vrot.lane.b32.xlu0 %v714, 72
          %v741 = vpop.permute.xlu0 %740
          %s743 = scalar_lea.vmem [#allocation3], 24
          %744 = vst.msk [vmem:[%s743] sm:$0xff] %vm719, %v741
        $region100: #{tpu_custom_call.1} parent=79 // pred_fallthru
          _
        %s745 = smul.u32 %s37, 8
        %s746 = scalar_lea.vmem %s557, %s745
        %v747 = vld [vmem:[%s746] sm:$0xff]
        %v748 = vld [vmem:[%s1] sm:$0x1]
        %v749 = vld [vmem:[%s2] sm:$0x1]
        %vm750 = vcmask 261120
        %v751 = vsel %vm750, %v747, 0.0
        %752 = vadd.xlane.f32.xlu0 %v751
        %v753 = vpop.xlane.xlu0 %752
        %v754 = vrcp.pop 32.0
        %v755 = vmul.f32 %v753, %v754
        %v756 = vsub.f32 %v747, %v755
        %v757 = vmul.f32 %v756, %v756
        %v758 = vsel %vm750, %v757, 0.0
        %759 = vadd.xlane.f32.xlu0 %v758
        %v760 = vpop.xlane.xlu0 %759
        %v761 = vmul.f32 %v760, %v754
        %v762 = vadd.f32 %v761, 1e-05
        %v763 = vrsqrt.pop %v762
        %v764 = vmul.f32 %v756, %v763
        %v766 = vlaneseq
        %v767 = vshrl.u32 %v766, 7
        %v768 = vsub.s32 0, %v767
        %v769 = vrot.slane %v748, %v768
        %v771 = vmul.f32 %v764, %v769
        %v773 = vlaneseq
        %v774 = vshrl.u32 %v773, 7
        %v775 = vsub.s32 0, %v774
        %v776 = vrot.slane %v749, %v775
        %v778 = vadd.f32 %v771, %v776
        %v779 = vpack.c.bf16 %v778, %v778
        %v780 = vld [vmem:[%s3] sm:$0xf]
        %v781 = vld [vmem:[%s3 + $0x4] sm:$0xf]
        %v782 = vld [vmem:[%s3 + $0x8] sm:$0xf]
        %v783 = vld [vmem:[%s3 + $0xc] sm:$0xf]
        %v784 = vld [vmem:[#allocation4] sm:$0x1]
        %v786 = vlaneseq
        %v787 = vshrl.u32 %v786, 7
        %v788 = vsub.s32 0, %v787
        %v789 = vrot.slane %v784, %v788
        %v795 = vunpack.c.l.b16 %v780
        %v796 = vunpack.c.l.b16 %v781
        %v797 = vunpack.c.l.b16 %v782
        %v798 = vunpack.c.l.b16 %v783
        %v799 = vpack.c.b16 %v796, %v795
        %v800 = vpack.c.b16 %v798, %v797
        %v804 = vsel %vm750, %v779, 0
        %806 = vmatprep.subr.bf16.mxu0 0
        %807 = vmatpush1.bf16.msra.mxu0 %v799
        %808 = vmatprep.subr.bf16.mxu0 0
        %809 = vmatpush1.bf16.msra.mxu0 %v800
        %810 = vmatprep.subr.bf16.mxu0 0
        %811 = vmatpush1.bf16.msra.mxu0 0
        %812 = vmatprep.subr.bf16.mxu0 0
        %813 = vmatpush1.bf16.msra.mxu0 0
        %814 = vmatprep.subr.bf16.mxu0 0
        %815 = vmatpush1.bf16.msra.mxu0 0
        %816 = vmatprep.subr.bf16.mxu0 0
        %817 = vmatpush1.bf16.msra.mxu0 0
        %818 = vmatprep.subr.bf16.mxu0 0
        %819 = vmatpush1.bf16.msra.mxu0 0
        %820 = vmatprep.subr.bf16.mxu0 0
        %821 = vmatpush1.bf16.msra.mxu0 0
        %822 = vmatprep.subr.bf16.mxu0 0
        %823 = vmatpush1.bf16.msra.mxu0 0
        %824 = vmatprep.subr.bf16.mxu0 0
        %825 = vmatpush1.bf16.msra.mxu0 0
        %826 = vmatprep.subr.bf16.mxu0 0
        %827 = vmatpush1.bf16.msra.mxu0 0
        %828 = vmatprep.subr.bf16.mxu0 0
        %829 = vmatpush1.bf16.msra.mxu0 0
        %830 = vmatprep.subr.bf16.mxu0 0
        %831 = vmatpush1.bf16.msra.mxu0 0
        %832 = vmatprep.subr.bf16.mxu0 0
        %833 = vmatpush1.bf16.msra.mxu0 0
        %834 = vmatprep.subr.bf16.mxu0 0
        %835 = vmatpush1.bf16.msra.mxu0 0
        %836 = vmatprep.subr.bf16.mxu0 0
        %837 = vmatpush1.bf16.msra.mxu0 0
        %838 = vmatprep.mubr.bf16.mxu0 0
        %839 = vmatmul.mubr.bf16.gmra.mrb[0].mxu0 %v804
        %v840 = vpop.f32.mrb[0].mxu0
        %v841 = vadd.f32 %v789, %v840
        %v842 = vpop.f32.mrb[0].mxu0
        %v843 = vpop.f32.mrb[0].mxu0
        %v844 = vpop.f32.mrb[0].mxu0
        %845 = vdwg.mxu0
        %v846 = vmul.f32 %v841, 0.35355338
        %v847 = vpack.c.bf16 %v846, %v846
        %849 = vrot.lane.b32.xlu0 %v847, 120
        %v850 = vpop.permute.xlu0 %849
        %851 = vrot.lane.b32.xlu0 %v847, 112
        %v852 = vpop.permute.xlu0 %851
        %853 = vrot.lane.b32.xlu0 %v847, 104
        %v854 = vpop.permute.xlu0 %853
        %v855 = vld [vmem:[#allocation2] sm:$0xf]
        %v856 = vld [vmem:[#allocation2 + $0x4] sm:$0xf]
        %v857 = vld [vmem:[#allocation2 + $0x8] sm:$0xf]
        %v858 = vld [vmem:[#allocation2 + $0xc] sm:$0xf]
        %vm859 = vcmask 64512
        %v861 = vsel %vm859, %v847, 0
        %vm863 = vcmask 1043456
        %v865 = vsel %vm863, %v855, 0
        %867 = vmatprep.subr.bf16.mxu0 0
        %868 = vmatpush1.bf16.msra.mxu0 %v865
        %869 = vmatprep.subr.bf16.mxu0 0
        %870 = vmatpush1.bf16.msra.mxu0 0
        %871 = vmatprep.subr.bf16.mxu0 0
        %872 = vmatpush1.bf16.msra.mxu0 0
        %873 = vmatprep.subr.bf16.mxu0 0
        %874 = vmatpush1.bf16.msra.mxu0 0
        %875 = vmatprep.subr.bf16.mxu0 0
        %876 = vmatpush1.bf16.msra.mxu0 0
        %877 = vmatprep.subr.bf16.mxu0 0
        %878 = vmatpush1.bf16.msra.mxu0 0
        %879 = vmatprep.subr.bf16.mxu0 0
        %880 = vmatpush1.bf16.msra.mxu0 0
        %881 = vmatprep.subr.bf16.mxu0 0
        %882 = vmatpush1.bf16.msra.mxu0 0
        %883 = vmatprep.subr.bf16.mxu0 0
        %884 = vmatpush1.bf16.msra.mxu0 0
        %885 = vmatprep.subr.bf16.mxu0 0
        %886 = vmatpush1.bf16.msra.mxu0 0
        %887 = vmatprep.subr.bf16.mxu0 0
        %888 = vmatpush1.bf16.msra.mxu0 0
        %889 = vmatprep.subr.bf16.mxu0 0
        %890 = vmatpush1.bf16.msra.mxu0 0
        %891 = vmatprep.subr.bf16.mxu0 0
        %892 = vmatpush1.bf16.msra.mxu0 0
        %893 = vmatprep.subr.bf16.mxu0 0
        %894 = vmatpush1.bf16.msra.mxu0 0
        %895 = vmatprep.subr.bf16.mxu0 0
        %896 = vmatpush1.bf16.msra.mxu0 0
        %897 = vmatprep.subr.bf16.mxu0 0
        %898 = vmatpush1.bf16.msra.mxu0 0
        %899 = vmatprep.mubr.bf16.mxu0 0
        %900 = vmatmul.mubr.bf16.gmra.mrb[0].mxu0 %v861
        %v901 = vpop.f32.mrb[0].mxu0
        %v902 = vadd.f32 0.0, %v901
        %v903 = vpop.f32.mrb[0].mxu0
        %v904 = vpop.f32.mrb[0].mxu0
        %v905 = vpop.f32.mrb[0].mxu0
        %906 = vdwg.mxu0
        %v908 = vsel %vm859, %v850, 0
        %v911 = vsel %vm863, %v856, 0
        %913 = vmatprep.subr.bf16.mxu0 0
        %914 = vmatpush1.bf16.msra.mxu0 %v911
        %915 = vmatprep.subr.bf16.mxu0 0
        %916 = vmatpush1.bf16.msra.mxu0 0
        %917 = vmatprep.subr.bf16.mxu0 0
        %918 = vmatpush1.bf16.msra.mxu0 0
        %919 = vmatprep.subr.bf16.mxu0 0
        %920 = vmatpush1.bf16.msra.mxu0 0
        %921 = vmatprep.subr.bf16.mxu0 0
        %922 = vmatpush1.bf16.msra.mxu0 0
        %923 = vmatprep.subr.bf16.mxu0 0
        %924 = vmatpush1.bf16.msra.mxu0 0
        %925 = vmatprep.subr.bf16.mxu0 0
        %926 = vmatpush1.bf16.msra.mxu0 0
        %927 = vmatprep.subr.bf16.mxu0 0
        %928 = vmatpush1.bf16.msra.mxu0 0
        %929 = vmatprep.subr.bf16.mxu0 0
        %930 = vmatpush1.bf16.msra.mxu0 0
        %931 = vmatprep.subr.bf16.mxu0 0
        %932 = vmatpush1.bf16.msra.mxu0 0
        %933 = vmatprep.subr.bf16.mxu0 0
        %934 = vmatpush1.bf16.msra.mxu0 0
        %935 = vmatprep.subr.bf16.mxu0 0
        %936 = vmatpush1.bf16.msra.mxu0 0
        %937 = vmatprep.subr.bf16.mxu0 0
        %938 = vmatpush1.bf16.msra.mxu0 0
        %939 = vmatprep.subr.bf16.mxu0 0
        %940 = vmatpush1.bf16.msra.mxu0 0
        %941 = vmatprep.subr.bf16.mxu0 0
        %942 = vmatpush1.bf16.msra.mxu0 0
        %943 = vmatprep.subr.bf16.mxu0 0
        %944 = vmatpush1.bf16.msra.mxu0 0
        %945 = vmatprep.mubr.bf16.mxu0 0
        %946 = vmatmul.mubr.bf16.gmra.mrb[0].mxu0 %v908
        %v947 = vpop.f32.mrb[0].mxu0
        %v948 = vadd.f32 0.0, %v947
        %v949 = vpop.f32.mrb[0].mxu0
        %v950 = vpop.f32.mrb[0].mxu0
        %v951 = vpop.f32.mrb[0].mxu0
        %952 = vdwg.mxu0
        %v954 = vsel %vm859, %v852, 0
        %v957 = vsel %vm863, %v857, 0
        %959 = vmatprep.subr.bf16.mxu0 0
        %960 = vmatpush1.bf16.msra.mxu0 %v957
        %961 = vmatprep.subr.bf16.mxu0 0
        %962 = vmatpush1.bf16.msra.mxu0 0
        %963 = vmatprep.subr.bf16.mxu0 0
        %964 = vmatpush1.bf16.msra.mxu0 0
        %965 = vmatprep.subr.bf16.mxu0 0
        %966 = vmatpush1.bf16.msra.mxu0 0
        %967 = vmatprep.subr.bf16.mxu0 0
        %968 = vmatpush1.bf16.msra.mxu0 0
        %969 = vmatprep.subr.bf16.mxu0 0
        %970 = vmatpush1.bf16.msra.mxu0 0
        %971 = vmatprep.subr.bf16.mxu0 0
        %972 = vmatpush1.bf16.msra.mxu0 0
        %973 = vmatprep.subr.bf16.mxu0 0
        %974 = vmatpush1.bf16.msra.mxu0 0
        %975 = vmatprep.subr.bf16.mxu0 0
        %976 = vmatpush1.bf16.msra.mxu0 0
        %977 = vmatprep.subr.bf16.mxu0 0
        %978 = vmatpush1.bf16.msra.mxu0 0
        %979 = vmatprep.subr.bf16.mxu0 0
        %980 = vmatpush1.bf16.msra.mxu0 0
        %981 = vmatprep.subr.bf16.mxu0 0
        %982 = vmatpush1.bf16.msra.mxu0 0
        %983 = vmatprep.subr.bf16.mxu0 0
        %984 = vmatpush1.bf16.msra.mxu0 0
        %985 = vmatprep.subr.bf16.mxu0 0
        %986 = vmatpush1.bf16.msra.mxu0 0
        %987 = vmatprep.subr.bf16.mxu0 0
        %988 = vmatpush1.bf16.msra.mxu0 0
        %989 = vmatprep.subr.bf16.mxu0 0
        %990 = vmatpush1.bf16.msra.mxu0 0
        %991 = vmatprep.mubr.bf16.mxu0 0
        %992 = vmatmul.mubr.bf16.gmra.mrb[0].mxu0 %v954
        %v993 = vpop.f32.mrb[0].mxu0
        %v994 = vadd.f32 0.0, %v993
        %v995 = vpop.f32.mrb[0].mxu0
        %v996 = vpop.f32.mrb[0].mxu0
        %v997 = vpop.f32.mrb[0].mxu0
        %998 = vdwg.mxu0
        %v1000 = vsel %vm859, %v854, 0
        %v1003 = vsel %vm863, %v858, 0
        %1005 = vmatprep.subr.bf16.mxu0 0
        %1006 = vmatpush1.bf16.msra.mxu0 %v1003
        %1007 = vmatprep.subr.bf16.mxu0 0
        %1008 = vmatpush1.bf16.msra.mxu0 0
        %1009 = vmatprep.subr.bf16.mxu0 0
        %1010 = vmatpush1.bf16.msra.mxu0 0
        %1011 = vmatprep.subr.bf16.mxu0 0
        %1012 = vmatpush1.bf16.msra.mxu0 0
        %1013 = vmatprep.subr.bf16.mxu0 0
        %1014 = vmatpush1.bf16.msra.mxu0 0
        %1015 = vmatprep.subr.bf16.mxu0 0
        %1016 = vmatpush1.bf16.msra.mxu0 0
        %1017 = vmatprep.subr.bf16.mxu0 0
        %1018 = vmatpush1.bf16.msra.mxu0 0
        %1019 = vmatprep.subr.bf16.mxu0 0
        %1020 = vmatpush1.bf16.msra.mxu0 0
        %1021 = vmatprep.subr.bf16.mxu0 0
        %1022 = vmatpush1.bf16.msra.mxu0 0
        %1023 = vmatprep.subr.bf16.mxu0 0
        %1024 = vmatpush1.bf16.msra.mxu0 0
        %1025 = vmatprep.subr.bf16.mxu0 0
        %1026 = vmatpush1.bf16.msra.mxu0 0
        %1027 = vmatprep.subr.bf16.mxu0 0
        %1028 = vmatpush1.bf16.msra.mxu0 0
        %1029 = vmatprep.subr.bf16.mxu0 0
        %1030 = vmatpush1.bf16.msra.mxu0 0
        %1031 = vmatprep.subr.bf16.mxu0 0
        %1032 = vmatpush1.bf16.msra.mxu0 0
        %1033 = vmatprep.subr.bf16.mxu0 0
        %1034 = vmatpush1.bf16.msra.mxu0 0
        %1035 = vmatprep.subr.bf16.mxu0 0
        %1036 = vmatpush1.bf16.msra.mxu0 0
        %1037 = vmatprep.mubr.bf16.mxu0 0
        %1038 = vmatmul.mubr.bf16.gmra.mrb[0].mxu0 %v1000
        %v1039 = vpop.f32.mrb[0].mxu0
        %v1040 = vadd.f32 0.0, %v1039
        %v1041 = vpop.f32.mrb[0].mxu0
        %v1042 = vpop.f32.mrb[0].mxu0
        %v1043 = vpop.f32.mrb[0].mxu0
        %1044 = vdwg.mxu0
        %vm1045 = vcmask 130048
        %v1046 = vsel %vm1045, %v902, -inf
        %1047 = vmax.xlane.f32.xlu0 %v1046
        %v1048 = vpop.xlane.xlu0 %1047
        %v1049 = vsel %vm1045, %v948, -inf
        %1050 = vmax.xlane.f32.xlu0 %v1049
        %v1051 = vpop.xlane.xlu0 %1050
        %v1052 = vsel %vm1045, %v994, -inf
        %1053 = vmax.xlane.f32.xlu0 %v1052
        %v1054 = vpop.xlane.xlu0 %1053
        %v1055 = vsel %vm1045, %v1040, -inf
        %1056 = vmax.xlane.f32.xlu0 %v1055
        %v1057 = vpop.xlane.xlu0 %1056
        %v1058 = vsub.f32 %v902, %v1048
        %v1059 = vsub.f32 %v948, %v1051
        %v1060 = vsub.f32 %v994, %v1054
        %v1061 = vsub.f32 %v1040, %v1057
        %v1062 = vmul.f32 %v1058, 1.442695
        %v1063 = vpow.pop %v1062
        %v1064 = vmul.f32 %v1059, 1.442695
        %v1065 = vpow.pop %v1064
        %v1066 = vmul.f32 %v1060, 1.442695
        %v1067 = vpow.pop %v1066
        %v1068 = vmul.f32 %v1061, 1.442695
        %v1069 = vpow.pop %v1068
        %v1070 = vsel %vm1045, %v1063, 0.0
        %1071 = vadd.xlane.f32.xlu0 %v1070
        %v1072 = vpop.xlane.xlu0 %1071
        %v1073 = vsel %vm1045, %v1065, 0.0
        %1074 = vadd.xlane.f32.xlu0 %v1073
        %v1075 = vpop.xlane.xlu0 %1074
        %v1076 = vsel %vm1045, %v1067, 0.0
        %1077 = vadd.xlane.f32.xlu0 %v1076
        %v1078 = vpop.xlane.xlu0 %1077
        %v1079 = vsel %vm1045, %v1069, 0.0
        %1080 = vadd.xlane.f32.xlu0 %v1079
        %v1081 = vpop.xlane.xlu0 %1080
        %v1082 = vrcp.pop %v1072
        %v1083 = vrcp.pop %v1075
        %v1084 = vrcp.pop %v1078
        %v1085 = vrcp.pop %v1081
        %v1086 = vmul.f32 %v1063, %v1082
        %v1087 = vmul.f32 %v1065, %v1083
        %v1088 = vmul.f32 %v1067, %v1084
        %v1089 = vmul.f32 %v1069, %v1085
        %v1090 = vpack.c.bf16 %v1086, %v1086
        %v1091 = vpack.c.bf16 %v1087, %v1087
        %v1092 = vpack.c.bf16 %v1088, %v1088
        %v1093 = vpack.c.bf16 %v1089, %v1089
        %v1094 = vld [vmem:[#allocation3] sm:$0xff]
        %v1095 = vld [vmem:[#allocation3 + $0x8] sm:$0xff]
        %v1096 = vld [vmem:[#allocation3 + $0x10] sm:$0xff]
        %v1097 = vld [vmem:[#allocation3 + $0x18] sm:$0xff]
        %v1099 = vsel %vm1045, %v1090, 0
        %1101 = vmatprep.subr.bf16.mxu0 0
        %1102 = vmatpush1.bf16.msra.mxu0 %v1094
        %1103 = vmatprep.subr.bf16.mxu0 0
        %1104 = vmatpush1.bf16.msra.mxu0 0
        %1105 = vmatprep.subr.bf16.mxu0 0
        %1106 = vmatpush1.bf16.msra.mxu0 0
        %1107 = vmatprep.subr.bf16.mxu0 0
        %1108 = vmatpush1.bf16.msra.mxu0 0
        %1109 = vmatprep.subr.bf16.mxu0 0
        %1110 = vmatpush1.bf16.msra.mxu0 0
        %1111 = vmatprep.subr.bf16.mxu0 0
        %1112 = vmatpush1.bf16.msra.mxu0 0
        %1113 = vmatprep.subr.bf16.mxu0 0
        %1114 = vmatpush1.bf16.msra.mxu0 0
        %1115 = vmatprep.subr.bf16.mxu0 0
        %1116 = vmatpush1.bf16.msra.mxu0 0
        %1117 = vmatprep.subr.bf16.mxu0 0
        %1118 = vmatpush1.bf16.msra.mxu0 0
        %1119 = vmatprep.subr.bf16.mxu0 0
        %1120 = vmatpush1.bf16.msra.mxu0 0
        %1121 = vmatprep.subr.bf16.mxu0 0
        %1122 = vmatpush1.bf16.msra.mxu0 0
        %1123 = vmatprep.subr.bf16.mxu0 0
        %1124 = vmatpush1.bf16.msra.mxu0 0
        %1125 = vmatprep.subr.bf16.mxu0 0
        %1126 = vmatpush1.bf16.msra.mxu0 0
        %1127 = vmatprep.subr.bf16.mxu0 0
        %1128 = vmatpush1.bf16.msra.mxu0 0
        %1129 = vmatprep.subr.bf16.mxu0 0
        %1130 = vmatpush1.bf16.msra.mxu0 0
        %1131 = vmatprep.subr.bf16.mxu0 0
        %1132 = vmatpush1.bf16.msra.mxu0 0
        %1133 = vmatprep.mubr.bf16.mxu0 0
        %1134 = vmatmul.mubr.bf16.gmra.mrb[0].mxu0 %v1099
        %v1135 = vpop.f32.mrb[0].mxu0
        %v1136 = vadd.f32 0.0, %v1135
        %v1137 = vpop.f32.mrb[0].mxu0
        %v1138 = vpop.f32.mrb[0].mxu0
        %v1139 = vpop.f32.mrb[0].mxu0
        %1140 = vdwg.mxu0
        %v1142 = vsel %vm1045, %v1091, 0
        %1144 = vmatprep.subr.bf16.mxu0 0
        %1145 = vmatpush1.bf16.msra.mxu0 %v1095
        %1146 = vmatprep.subr.bf16.mxu0 0
        %1147 = vmatpush1.bf16.msra.mxu0 0
        %1148 = vmatprep.subr.bf16.mxu0 0
        %1149 = vmatpush1.bf16.msra.mxu0 0
        %1150 = vmatprep.subr.bf16.mxu0 0
        %1151 = vmatpush1.bf16.msra.mxu0 0
        %1152 = vmatprep.subr.bf16.mxu0 0
        %1153 = vmatpush1.bf16.msra.mxu0 0
        %1154 = vmatprep.subr.bf16.mxu0 0
        %1155 = vmatpush1.bf16.msra.mxu0 0
        %1156 = vmatprep.subr.bf16.mxu0 0
        %1157 = vmatpush1.bf16.msra.mxu0 0
        %1158 = vmatprep.subr.bf16.mxu0 0
        %1159 = vmatpush1.bf16.msra.mxu0 0
        %1160 = vmatprep.subr.bf16.mxu0 0
        %1161 = vmatpush1.bf16.msra.mxu0 0
        %1162 = vmatprep.subr.bf16.mxu0 0
        %1163 = vmatpush1.bf16.msra.mxu0 0
        %1164 = vmatprep.subr.bf16.mxu0 0
        %1165 = vmatpush1.bf16.msra.mxu0 0
        %1166 = vmatprep.subr.bf16.mxu0 0
        %1167 = vmatpush1.bf16.msra.mxu0 0
        %1168 = vmatprep.subr.bf16.mxu0 0
        %1169 = vmatpush1.bf16.msra.mxu0 0
        %1170 = vmatprep.subr.bf16.mxu0 0
        %1171 = vmatpush1.bf16.msra.mxu0 0
        %1172 = vmatprep.subr.bf16.mxu0 0
        %1173 = vmatpush1.bf16.msra.mxu0 0
        %1174 = vmatprep.subr.bf16.mxu0 0
        %1175 = vmatpush1.bf16.msra.mxu0 0
        %1176 = vmatprep.mubr.bf16.mxu0 0
        %1177 = vmatmul.mubr.bf16.gmra.mrb[0].mxu0 %v1142
        %v1178 = vpop.f32.mrb[0].mxu0
        %v1179 = vadd.f32 0.0, %v1178
        %v1180 = vpop.f32.mrb[0].mxu0
        %v1181 = vpop.f32.mrb[0].mxu0
        %v1182 = vpop.f32.mrb[0].mxu0
        %1183 = vdwg.mxu0
        %v1185 = vsel %vm1045, %v1092, 0
        %1187 = vmatprep.subr.bf16.mxu0 0
        %1188 = vmatpush1.bf16.msra.mxu0 %v1096
        %1189 = vmatprep.subr.bf16.mxu0 0
        %1190 = vmatpush1.bf16.msra.mxu0 0
        %1191 = vmatprep.subr.bf16.mxu0 0
        %1192 = vmatpush1.bf16.msra.mxu0 0
        %1193 = vmatprep.subr.bf16.mxu0 0
        %1194 = vmatpush1.bf16.msra.mxu0 0
        %1195 = vmatprep.subr.bf16.mxu0 0
        %1196 = vmatpush1.bf16.msra.mxu0 0
        %1197 = vmatprep.subr.bf16.mxu0 0
        %1198 = vmatpush1.bf16.msra.mxu0 0
        %1199 = vmatprep.subr.bf16.mxu0 0
        %1200 = vmatpush1.bf16.msra.mxu0 0
        %1201 = vmatprep.subr.bf16.mxu0 0
        %1202 = vmatpush1.bf16.msra.mxu0 0
        %1203 = vmatprep.subr.bf16.mxu0 0
        %1204 = vmatpush1.bf16.msra.mxu0 0
        %1205 = vmatprep.subr.bf16.mxu0 0
        %1206 = vmatpush1.bf16.msra.mxu0 0
        %1207 = vmatprep.subr.bf16.mxu0 0
        %1208 = vmatpush1.bf16.msra.mxu0 0
        %1209 = vmatprep.subr.bf16.mxu0 0
        %1210 = vmatpush1.bf16.msra.mxu0 0
        %1211 = vmatprep.subr.bf16.mxu0 0
        %1212 = vmatpush1.bf16.msra.mxu0 0
        %1213 = vmatprep.subr.bf16.mxu0 0
        %1214 = vmatpush1.bf16.msra.mxu0 0
        %1215 = vmatprep.subr.bf16.mxu0 0
        %1216 = vmatpush1.bf16.msra.mxu0 0
        %1217 = vmatprep.subr.bf16.mxu0 0
        %1218 = vmatpush1.bf16.msra.mxu0 0
        %1219 = vmatprep.mubr.bf16.mxu0 0
        %1220 = vmatmul.mubr.bf16.gmra.mrb[0].mxu0 %v1185
        %v1221 = vpop.f32.mrb[0].mxu0
        %v1222 = vadd.f32 0.0, %v1221
        %v1223 = vpop.f32.mrb[0].mxu0
        %v1224 = vpop.f32.mrb[0].mxu0
        %v1225 = vpop.f32.mrb[0].mxu0
        %1226 = vdwg.mxu0
        %v1228 = vsel %vm1045, %v1093, 0
        %1230 = vmatprep.subr.bf16.mxu0 0
        %1231 = vmatpush1.bf16.msra.mxu0 %v1097
        %1232 = vmatprep.subr.bf16.mxu0 0
        %1233 = vmatpush1.bf16.msra.mxu0 0
        %1234 = vmatprep.subr.bf16.mxu0 0
        %1235 = vmatpush1.bf16.msra.mxu0 0
        %1236 = vmatprep.subr.bf16.mxu0 0
        %1237 = vmatpush1.bf16.msra.mxu0 0
        %1238 = vmatprep.subr.bf16.mxu0 0
        %1239 = vmatpush1.bf16.msra.mxu0 0
        %1240 = vmatprep.subr.bf16.mxu0 0
        %1241 = vmatpush1.bf16.msra.mxu0 0
        %1242 = vmatprep.subr.bf16.mxu0 0
        %1243 = vmatpush1.bf16.msra.mxu0 0
        %1244 = vmatprep.subr.bf16.mxu0 0
        %1245 = vmatpush1.bf16.msra.mxu0 0
        %1246 = vmatprep.subr.bf16.mxu0 0
        %1247 = vmatpush1.bf16.msra.mxu0 0
        %1248 = vmatprep.subr.bf16.mxu0 0
        %1249 = vmatpush1.bf16.msra.mxu0 0
        %1250 = vmatprep.subr.bf16.mxu0 0
        %1251 = vmatpush1.bf16.msra.mxu0 0
        %1252 = vmatprep.subr.bf16.mxu0 0
        %1253 = vmatpush1.bf16.msra.mxu0 0
        %1254 = vmatprep.subr.bf16.mxu0 0
        %1255 = vmatpush1.bf16.msra.mxu0 0
        %1256 = vmatprep.subr.bf16.mxu0 0
        %1257 = vmatpush1.bf16.msra.mxu0 0
        %1258 = vmatprep.subr.bf16.mxu0 0
        %1259 = vmatpush1.bf16.msra.mxu0 0
        %1260 = vmatprep.subr.bf16.mxu0 0
        %1261 = vmatpush1.bf16.msra.mxu0 0
        %1262 = vmatprep.mubr.bf16.mxu0 0
        %1263 = vmatmul.mubr.bf16.gmra.mrb[0].mxu0 %v1228
        %v1264 = vpop.f32.mrb[0].mxu0
        %v1265 = vadd.f32 0.0, %v1264
        %v1266 = vpop.f32.mrb[0].mxu0
        %v1267 = vpop.f32.mrb[0].mxu0
        %v1268 = vpop.f32.mrb[0].mxu0
        %1269 = vdwg.mxu0
        %v1270 = vpack.c.bf16 %v1136, %v1136
        %v1271 = vpack.c.bf16 %v1179, %v1179
        %v1272 = vpack.c.bf16 %v1222, %v1222
        %v1273 = vpack.c.bf16 %v1265, %v1265
        %1275 = vrot.lane.b32.xlu0 %v1271, 8
        %v1276 = vpop.permute.xlu0 %1275
        %1278 = vrot.lane.b32.xlu0 %v1272, 16
        %v1279 = vpop.permute.xlu0 %1278
        %1281 = vrot.lane.b32.xlu0 %v1273, 24
        %v1282 = vpop.permute.xlu0 %1281
        %v1285 = vsel %vm859, %v1270, %v1276
        %v1287 = vsel %vm1045, %v1285, %v1279
        %vm1288 = vcmask 195584
        %v1290 = vsel %vm1288, %v1287, %v1282
        %v1291 = vld [vmem:[%s7] sm:$0xf]
        %v1292 = vld [vmem:[%s7 + $0x4] sm:$0xf]
        %v1293 = vld [vmem:[%s7 + $0x8] sm:$0xf]
        %v1294 = vld [vmem:[%s7 + $0xc] sm:$0xf]
        %v1295 = vld [vmem:[#allocation9] sm:$0x1]
        %v1297 = vlaneseq
        %v1298 = vshrl.u32 %v1297, 7
        %v1299 = vsub.s32 0, %v1298
        %v1300 = vrot.slane %v1295, %v1299
        %v1306 = vunpack.c.l.b16 %v1291
        %v1307 = vunpack.c.l.b16 %v1292
        %v1308 = vunpack.c.l.b16 %v1293
        %v1309 = vunpack.c.l.b16 %v1294
        %v1310 = vpack.c.b16 %v1307, %v1306
        %v1311 = vpack.c.b16 %v1309, %v1308
        %v1314 = vsel %vm750, %v1290, 0
        %1316 = vmatprep.subr.bf16.mxu0 0
        %1317 = vmatpush1.bf16.msra.mxu0 %v1310
        %1318 = vmatprep.subr.bf16.mxu0 0
        %1319 = vmatpush1.bf16.msra.mxu0 %v1311
        %1320 = vmatprep.subr.bf16.mxu0 0
        %1321 = vmatpush1.bf16.msra.mxu0 0
        %1322 = vmatprep.subr.bf16.mxu0 0
        %1323 = vmatpush1.bf16.msra.mxu0 0
        %1324 = vmatprep.subr.bf16.mxu0 0
        %1325 = vmatpush1.bf16.msra.mxu0 0
        %1326 = vmatprep.subr.bf16.mxu0 0
        %1327 = vmatpush1.bf16.msra.mxu0 0
        %1328 = vmatprep.subr.bf16.mxu0 0
        %1329 = vmatpush1.bf16.msra.mxu0 0
        %1330 = vmatprep.subr.bf16.mxu0 0
        %1331 = vmatpush1.bf16.msra.mxu0 0
        %1332 = vmatprep.subr.bf16.mxu0 0
        %1333 = vmatpush1.bf16.msra.mxu0 0
        %1334 = vmatprep.subr.bf16.mxu0 0
        %1335 = vmatpush1.bf16.msra.mxu0 0
        %1336 = vmatprep.subr.bf16.mxu0 0
        %1337 = vmatpush1.bf16.msra.mxu0 0
        %1338 = vmatprep.subr.bf16.mxu0 0
        %1339 = vmatpush1.bf16.msra.mxu0 0
        %1340 = vmatprep.subr.bf16.mxu0 0
        %1341 = vmatpush1.bf16.msra.mxu0 0
        %1342 = vmatprep.subr.bf16.mxu0 0
        %1343 = vmatpush1.bf16.msra.mxu0 0
        %1344 = vmatprep.subr.bf16.mxu0 0
        %1345 = vmatpush1.bf16.msra.mxu0 0
        %1346 = vmatprep.subr.bf16.mxu0 0
        %1347 = vmatpush1.bf16.msra.mxu0 0
        %1348 = vmatprep.mubr.bf16.mxu0 0
        %1349 = vmatmul.mubr.bf16.gmra.mrb[0].mxu0 %v1314
        %v1350 = vpop.f32.mrb[0].mxu0
        %v1351 = vadd.f32 %v1300, %v1350
        %v1352 = vpop.f32.mrb[0].mxu0
        %v1353 = vpop.f32.mrb[0].mxu0
        %v1354 = vpop.f32.mrb[0].mxu0
        %1355 = vdwg.mxu0
        %v1356 = vadd.f32 %v747, %v1351
        %v1357 = vld [vmem:[#allocation10] sm:$0x1]
        %v1358 = vld [vmem:[%s10] sm:$0x1]
        %v1359 = vsel %vm750, %v1356, 0.0
        %1360 = vadd.xlane.f32.xlu0 %v1359
        %v1361 = vpop.xlane.xlu0 %1360
        %v1362 = vmul.f32 %v1361, %v754
        %v1363 = vsub.f32 %v1356, %v1362
        %v1364 = vmul.f32 %v1363, %v1363
        %v1365 = vsel %vm750, %v1364, 0.0
        %1366 = vadd.xlane.f32.xlu0 %v1365
        %v1367 = vpop.xlane.xlu0 %1366
        %v1368 = vmul.f32 %v1367, %v754
        %v1369 = vadd.f32 %v1368, 1e-05
        %v1370 = vrsqrt.pop %v1369
        %v1371 = vmul.f32 %v1363, %v1370
        %v1373 = vlaneseq
        %v1374 = vshrl.u32 %v1373, 7
        %v1375 = vsub.s32 0, %v1374
        %v1376 = vrot.slane %v1357, %v1375
        %v1378 = vmul.f32 %v1371, %v1376
        %v1380 = vlaneseq
        %v1381 = vshrl.u32 %v1380, 7
        %v1382 = vsub.s32 0, %v1381
        %v1383 = vrot.slane %v1358, %v1382
        %v1385 = vadd.f32 %v1378, %v1383
        %v1386 = vpack.c.bf16 %v1385, %v1385
        %v1387 = vld [vmem:[%s11] sm:$0xf]
        %v1388 = vld [vmem:[%s11 + $0x4] sm:$0xf]
        %v1389 = vld [vmem:[%s11 + $0x8] sm:$0xf]
        %v1390 = vld [vmem:[%s11 + $0xc] sm:$0xf]
        %v1391 = vld [vmem:[%s12] sm:$0x1]
        %v1393 = vlaneseq
        %v1394 = vshrl.u32 %v1393, 7
        %v1395 = vsub.s32 0, %v1394
        %v1396 = vrot.slane %v1391, %v1395
        %v1402 = vunpack.c.l.b16 %v1387
        %v1403 = vunpack.c.l.b16 %v1388
        %v1404 = vunpack.c.l.b16 %v1389
        %v1405 = vunpack.c.l.b16 %v1390
        %v1406 = vpack.c.b16 %v1403, %v1402
        %v1407 = vpack.c.b16 %v1405, %v1404
        %v1411 = vsel %vm750, %v1386, 0
        %1413 = vmatprep.subr.bf16.mxu0 0
        %1414 = vmatpush1.bf16.msra.mxu0 %v1406
        %1415 = vmatprep.subr.bf16.mxu0 0
        %1416 = vmatpush1.bf16.msra.mxu0 %v1407
        %1417 = vmatprep.subr.bf16.mxu0 0
        %1418 = vmatpush1.bf16.msra.mxu0 0
        %1419 = vmatprep.subr.bf16.mxu0 0
        %1420 = vmatpush1.bf16.msra.mxu0 0
        %1421 = vmatprep.subr.bf16.mxu0 0
        %1422 = vmatpush1.bf16.msra.mxu0 0
        %1423 = vmatprep.subr.bf16.mxu0 0
        %1424 = vmatpush1.bf16.msra.mxu0 0
        %1425 = vmatprep.subr.bf16.mxu0 0
        %1426 = vmatpush1.bf16.msra.mxu0 0
        %1427 = vmatprep.subr.bf16.mxu0 0
        %1428 = vmatpush1.bf16.msra.mxu0 0
        %1429 = vmatprep.subr.bf16.mxu0 0
        %1430 = vmatpush1.bf16.msra.mxu0 0
        %1431 = vmatprep.subr.bf16.mxu0 0
        %1432 = vmatpush1.bf16.msra.mxu0 0
        %1433 = vmatprep.subr.bf16.mxu0 0
        %1434 = vmatpush1.bf16.msra.mxu0 0
        %1435 = vmatprep.subr.bf16.mxu0 0
        %1436 = vmatpush1.bf16.msra.mxu0 0
        %1437 = vmatprep.subr.bf16.mxu0 0
        %1438 = vmatpush1.bf16.msra.mxu0 0
        %1439 = vmatprep.subr.bf16.mxu0 0
        %1440 = vmatpush1.bf16.msra.mxu0 0
        %1441 = vmatprep.subr.bf16.mxu0 0
        %1442 = vmatpush1.bf16.msra.mxu0 0
        %1443 = vmatprep.subr.bf16.mxu0 0
        %1444 = vmatpush1.bf16.msra.mxu0 0
        %1445 = vmatprep.mubr.bf16.mxu0 0
        %1446 = vmatmul.mubr.bf16.gmra.mrb[0].mxu0 %v1411
        %v1447 = vpop.f32.mrb[0].mxu0
        %v1448 = vadd.f32 %v1396, %v1447
        %v1449 = vpop.f32.mrb[0].mxu0
        %v1450 = vpop.f32.mrb[0].mxu0
        %v1451 = vpop.f32.mrb[0].mxu0
        %1452 = vdwg.mxu0
        %v1453 = vmul.f32 %v1448, 0.5
        %v1454 = vmul.f32 %v1448, %v1448
        %v1455 = vmul.f32 %v1454, %v1448
        %v1456 = vmul.f32 %v1455, 0.044715
        %v1457 = vadd.f32 %v1448, %v1456
        %v1458 = vmul.f32 %v1457, 0.7978846
        %v1459 = vtanh.pop %v1458
        %v1460 = vadd.f32 %v1459, 1.0
        %v1461 = vmul.f32 %v1453, %v1460
        %v1462 = vpack.c.bf16 %v1461, %v1461
        %v1463 = vld [vmem:[%s13] sm:$0xf]
        %v1464 = vld [vmem:[%s13 + $0x4] sm:$0xf]
        %v1465 = vld [vmem:[%s13 + $0x8] sm:$0xf]
        %v1466 = vld [vmem:[%s13 + $0xc] sm:$0xf]
        %v1467 = vld [vmem:[%s13 + $0x10] sm:$0xf]
        %v1468 = vld [vmem:[%s13 + $0x14] sm:$0xf]
        %v1469 = vld [vmem:[%s13 + $0x18] sm:$0xf]
        %v1470 = vld [vmem:[%s13 + $0x1c] sm:$0xf]
        %v1471 = vld [vmem:[%s13 + $0x20] sm:$0xf]
        %v1472 = vld [vmem:[%s13 + $0x24] sm:$0xf]
        %v1473 = vld [vmem:[%s13 + $0x28] sm:$0xf]
        %v1474 = vld [vmem:[%s13 + $0x2c] sm:$0xf]
        %v1475 = vld [vmem:[%s13 + $0x30] sm:$0xf]
        %v1476 = vld [vmem:[%s13 + $0x34] sm:$0xf]
        %v1477 = vld [vmem:[%s13 + $0x38] sm:$0xf]
        %v1478 = vld [vmem:[%s13 + $0x3c] sm:$0xf]
        %v1479 = vld [vmem:[%s14] sm:$0x1]
        %v1481 = vlaneseq
        %v1482 = vshrl.u32 %v1481, 7
        %v1483 = vsub.s32 0, %v1482
        %v1484 = vrot.slane %v1479, %v1483
        %v1502 = vunpack.c.l.b16 %v1463
        %v1503 = vunpack.c.l.b16 %v1464
        %v1504 = vunpack.c.l.b16 %v1465
        %v1505 = vunpack.c.l.b16 %v1466
        %v1506 = vunpack.c.l.b16 %v1467
        %v1507 = vunpack.c.l.b16 %v1468
        %v1508 = vunpack.c.l.b16 %v1469
        %v1509 = vunpack.c.l.b16 %v1470
        %v1510 = vunpack.c.l.b16 %v1471
        %v1511 = vunpack.c.l.b16 %v1472
        %v1512 = vunpack.c.l.b16 %v1473
        %v1513 = vunpack.c.l.b16 %v1474
        %v1514 = vunpack.c.l.b16 %v1475
        %v1515 = vunpack.c.l.b16 %v1476
        %v1516 = vunpack.c.l.b16 %v1477
        %v1517 = vunpack.c.l.b16 %v1478
        %v1518 = vpack.c.b16 %v1503, %v1502
        %v1519 = vpack.c.b16 %v1505, %v1504
        %v1520 = vpack.c.b16 %v1507, %v1506
        %v1521 = vpack.c.b16 %v1509, %v1508
        %v1522 = vpack.c.b16 %v1511, %v1510
        %v1523 = vpack.c.b16 %v1513, %v1512
        %v1524 = vpack.c.b16 %v1515, %v1514
        %v1525 = vpack.c.b16 %v1517, %v1516
        %1534 = vmatprep.subr.bf16.mxu0 0
        %1535 = vmatpush1.bf16.msra.mxu0 %v1518
        %1536 = vmatprep.subr.bf16.mxu0 0
        %1537 = vmatpush1.bf16.msra.mxu0 %v1519
        %1538 = vmatprep.subr.bf16.mxu0 0
        %1539 = vmatpush1.bf16.msra.mxu0 %v1520
        %1540 = vmatprep.subr.bf16.mxu0 0
        %1541 = vmatpush1.bf16.msra.mxu0 %v1521
        %1542 = vmatprep.subr.bf16.mxu0 0
        %1543 = vmatpush1.bf16.msra.mxu0 %v1522
        %1544 = vmatprep.subr.bf16.mxu0 0
        %1545 = vmatpush1.bf16.msra.mxu0 %v1523
        %1546 = vmatprep.subr.bf16.mxu0 0
        %1547 = vmatpush1.bf16.msra.mxu0 %v1524
        %1548 = vmatprep.subr.bf16.mxu0 0
        %1549 = vmatpush1.bf16.msra.mxu0 %v1525
        %1550 = vmatprep.subr.bf16.mxu0 0
        %1551 = vmatpush1.bf16.msra.mxu0 0
        %1552 = vmatprep.subr.bf16.mxu0 0
        %1553 = vmatpush1.bf16.msra.mxu0 0
        %1554 = vmatprep.subr.bf16.mxu0 0
        %1555 = vmatpush1.bf16.msra.mxu0 0
        %1556 = vmatprep.subr.bf16.mxu0 0
        %1557 = vmatpush1.bf16.msra.mxu0 0
        %1558 = vmatprep.subr.bf16.mxu0 0
        %1559 = vmatpush1.bf16.msra.mxu0 0
        %1560 = vmatprep.subr.bf16.mxu0 0
        %1561 = vmatpush1.bf16.msra.mxu0 0
        %1562 = vmatprep.subr.bf16.mxu0 0
        %1563 = vmatpush1.bf16.msra.mxu0 0
        %1564 = vmatprep.subr.bf16.mxu0 0
        %1565 = vmatpush1.bf16.msra.mxu0 0
        %1566 = vmatprep.mubr.bf16.mxu0 0
        %1567 = vmatmul.mubr.bf16.gmra.mrb[0].mxu0 %v1462
        %v1568 = vpop.f32.mrb[0].mxu0
        %v1569 = vadd.f32 %v1484, %v1568
        %v1570 = vpop.f32.mrb[0].mxu0
        %v1571 = vpop.f32.mrb[0].mxu0
        %v1572 = vpop.f32.mrb[0].mxu0
        %1573 = vdwg.mxu0
        %v1574 = vadd.f32 %v1356, %v1569
        %1575 = vst.msk [vmem:[%s552] sm:$0xff] %vm750, %v1574
        %s1576 = sand.u32 %s374, 1
        %s1577 = scalar_lea.sflag [#allocation6], %s1576
        %s1578 = sand.u32 %s374, 1
        %s1579 = smul.addr %s1578, 8
        %s1580 = scalar_lea.vmem [#allocation12], %s1579
        // Predicated region
        $region101: #{tpu_custom_call.1} parent=79 // pred_check
          %p1581 = pneg %p384
        $region102: #{tpu_custom_call.1} parent=79 // pred_check_branch
          %1583 = sbr.rel (%p1581) target = $region104
        $region103: #{tpu_custom_call.1} parent=79 // pred_region
          %s1585 = ssub.s32 128, 128
          %1586 = vsyncadd %s1577, %s1585
          %s1587 = smul.addr %s36, 2
          %s1588 = sadd.s32 %s37, %s1587
          %s1589 = smul.addr %s1588, 128
          %s1590 = scalar_lea.hbm %s15, %s1589
          %s1592 = sshll.u32 %s1580, 4
          %s1593 = int_to_ptr.vmem [resolvable:$true] %s1592
          %1595 = dma.vmem_to_hbm [thread:$0]  %s1593, 128, %s1590, %s1577
        $region104: #{tpu_custom_call.1} parent=79 // pred_fallthru
          _
      $region80: #{tpu_custom_call.1} parent=5 // pred_fallthru
        _
      %p1596 = scmp.le.s32.totalorder 2, %s27
      // Predicated region
      $region105: #{tpu_custom_call.1} parent=5 // pred_check
        %p1597 = pneg %p1596
      $region106: #{tpu_custom_call.1} parent=5 // pred_check_branch
        %1599 = sbr.rel (%p1597) target = $region108
      $region107: #{tpu_custom_call.1} parent=5 // pred_region
        %s1600 = ssub.s32 %s27, 2
        // Predicated region
        $region109: #{tpu_custom_call.1} parent=107 // pred_check
          %p1601 = pneg %p390
        $region110: #{tpu_custom_call.1} parent=107 // pred_check_branch
          %1603 = sbr.rel (%p1601) target = $region112
        $region111: #{tpu_custom_call.1} parent=107 // pred_region
          %s1604 = sand.u32 %s375, 1
          %s1605 = scalar_lea.sflag [#allocation6], %s1604
          %s1606 = sand.u32 %s375, 1
          %s1607 = smul.addr %s1606, 8
          %s1608 = scalar_lea.vmem [#allocation12], %s1607
          %1609 = dma.done %s1605, 128
        $region112: #{tpu_custom_call.1} parent=107 // pred_fallthru
          _
      $region108: #{tpu_custom_call.1} parent=5 // pred_fallthru
        _
    $region6: #{tpu_custom_call.1} parent=1 // loop_footer
      %s31 = sadd.s32 1, %s27
    $region7: #{tpu_custom_call.1} parent=1 // loop_footer_branch
      %26 = sbr.rel target = $region3
    $region8: #{tpu_custom_call.1} parent=1 // loop_exit
      _
    %1610 = vsyncpa [#allocation5], 1
    %s1611 = scalar_lea.sflag [#allocation5], 1
    %1612 = vsyncpa %s1611, 1
    %1613 = vsyncpa [#allocation8], 1
    %1614 = vsyncpa [#allocation11], 1
    %1615 = vsyncpa [#allocation6], 1
    %s1616 = scalar_lea.sflag [#allocation6], 1
    %1617 = vsyncpa %s1616, 1

// kernel: tpu_custom_call.1
$region0: #{tpu_custom_call.1}
  #allocation0 [shape = 'u32[]', space=smem, size = 0x4, offset = 0x4, fixed_abs, tag = 'smem constant byte address 0x4 - core index']
  #allocation1 [shape = 'u32[144,128]{1,0:T(1,128)}', space=vmem, size = 0x12000, scoped, tag = 'internal scratch']
  #allocation2 [shape = 'bf16[4,8,16]{2,1,0:T(8,128)(2,1)}', space=vmem, size = 0x2000, scoped, tag = 'scratch operand']
  #allocation3 [shape = 'bf16[4,16,8]{2,1,0:T(16,128)(2,1)}', space=vmem, size = 0x4000, scoped, tag = 'scratch operand']
  %s0 = inlined_call_operand.vmem [shape: f32[2,16,32], index: 0, kind: input, shape index: {}]
  %s1 = inlined_call_operand.vmem [shape: f32[1,32], index: 1, kind: input, shape index: {}]
  %s2 = inlined_call_operand.vmem [shape: f32[1,32], index: 2, kind: input, shape index: {}]
  %s3 = inlined_call_operand.vmem [shape: bf16[32,32], index: 3, kind: input, shape index: {}]
  %s4 = inlined_call_operand.hbm [shape: f32[1,32], index: 4, kind: input, shape index: {}]
  %s5 = inlined_call_operand.vmem [shape: bf16[32,64], index: 5, kind: input, shape index: {}]
  %s6 = inlined_call_operand.hbm [shape: f32[1,64], index: 6, kind: input, shape index: {}]
  %s7 = inlined_call_operand.vmem [shape: bf16[32,32], index: 7, kind: input, shape index: {}]
  %s8 = inlined_call_operand.hbm [shape: f32[1,32], index: 8, kind: input, shape index: {}]
  %s9 = inlined_call_operand.hbm [shape: f32[1,32], index: 9, kind: input, shape index: {}]
  %s10 = inlined_call_operand.vmem [shape: f32[1,32], index: 10, kind: input, shape index: {}]
  %s11 = inlined_call_operand.vmem [shape: bf16[32,128], index: 11, kind: input, shape index: {}]
  %s12 = inlined_call_operand.vmem [shape: f32[1,128], index: 12, kind: input, shape index: {}]
  %s13 = inlined_call_operand.vmem [shape: bf16[128,32], index: 13, kind: input, shape index: {}]
  %s14 = inlined_call_operand.vmem [shape: f32[1,32], index: 14, kind: input, shape index: {}]
  %s15 = inlined_call_operand.hbm [shape: f32[2,16,32], index: 15, kind: output, shape index: {}]
  %s16 = sld [smem:[#allocation0]]
  $region113: #{tpu_custom_call.1} parent=0
    _
  %s18 = ssub.s32 1, %s16
  %s19 = scalar_select 0, %s18, %s16
  $region1: #{tpu_custom_call.1} parent=0
    #allocation4 [shape = 'u8[512]{0}', space=vmem, size = 0x400, scoped, tag = 'input window, operand 4, single buffered']
    #allocation5 [shape = 's32[2]{0}', space=sflag, size = 0x8, scoped, tag = 'scoped memory for tpu_custom_call.1']
    #allocation6 [shape = 's32[2]{0}', space=sflag, size = 0x8, scoped, tag = 'scoped memory for tpu_custom_call.1']
    #allocation7 [shape = 'u8[512]{0}', space=vmem, size = 0x400, scoped, tag = 'input window, operand 6, single buffered']
    #allocation8 [shape = 's32[1]{0}', space=sflag, size = 0x4, scoped, tag = 'scoped memory for tpu_custom_call.1']
    #allocation9 [shape = 'u8[512]{0}', space=vmem, size = 0x400, scoped, tag = 'input window, operand 8, single buffered']
    #allocation10 [shape = 'u8[512]{0}', space=vmem, size = 0x400, scoped, tag = 'input window, operand 9, single buffered']
    #allocation11 [shape = 's32[1]{0}', space=sflag, size = 0x4, scoped, tag = 'scoped memory for tpu_custom_call.1']
    #allocation12 [shape = 'u8[8192]{0}', space=vmem, size = 0x2000, scoped, tag = 'output window, operand 0']
    %20 = vsyncpa [#allocation5], 0
    %21 = vsyncpa [#allocation8], 0
    %22 = vsyncpa [#allocation11], 0
    %23 = vsyncpa [#allocation6], 0
    %s24 = scalar_lea.sflag [#allocation6], 1
    %25 = vsyncpa %s24, 0
    loop: start=0, step=1, limit=6
    $region2: #{tpu_custom_call.1} parent=1 // loop_pre_header
      _
    $region3: #{tpu_custom_call.1} parent=1 // loop_header
      %s27 = sphi 0, %s31
      %p28 = scmp.ge.s32.totalorder %s27, 6
      %s34 = sphi 0, %s46
      %s35 = sphi 0, %s42
      %s36 = sphi 0, %s34
      %s37 = sphi 0, %s35
      %s38 = sphi 0, %s36
      %s39 = sphi 0, %s37
      %s49 = sphi 0, %s51
      %s52 = sphi 0, %s49
      %s53 = sphi 0, %s52
      %s69 = sphi 0, %s53
      %s73 = sphi 0, %s73
      %s75 = sphi 0, %s73
      %s76 = sphi 0, %s75
      %s90 = sphi 0, %s76
      %s94 = sphi 0, %s94
      %s96 = sphi 0, %s94
      %s97 = sphi 0, %s96
      %s111 = sphi 0, %s97
      %s115 = sphi 0, %s115
      %s117 = sphi 0, %s115
      %s118 = sphi 0, %s117
      %s132 = sphi 0, %s118
      %s136 = sphi 0, %s136
      %s138 = sphi 0, %s136
      %s139 = sphi 0, %s138
      %s153 = sphi 0, %s139
      %s157 = sphi 0, %s157
      %s159 = sphi 0, %s157
      %s160 = sphi 0, %s159
      %s174 = sphi 0, %s160
      %s178 = sphi 0, %s178
      %s180 = sphi 0, %s178
      %s181 = sphi 0, %s180
      %s195 = sphi 0, %s181
      %s199 = sphi 0, %s199
      %s201 = sphi 0, %s199
      %s202 = sphi 0, %s201
      %s216 = sphi 0, %s202
      %s220 = sphi 0, %s220
      %s222 = sphi 0, %s220
      %s223 = sphi 0, %s222
      %s237 = sphi 0, %s223
      %s241 = sphi 0, %s241
      %s243 = sphi 0, %s241
      %s244 = sphi 0, %s243
      %s258 = sphi 0, %s244
      %s262 = sphi 0, %s262
      %s264 = sphi 0, %s262
      %s265 = sphi 0, %s264
      %s279 = sphi 0, %s265
      %s283 = sphi 0, %s283
      %s285 = sphi 0, %s283
      %s286 = sphi 0, %s285
      %s300 = sphi 0, %s286
      %s304 = sphi 0, %s304
      %s306 = sphi 0, %s304
      %s307 = sphi 0, %s306
      %s321 = sphi 0, %s307
      %s325 = sphi 0, %s325
      %s327 = sphi 0, %s325
      %s328 = sphi 0, %s327
      %s342 = sphi 0, %s328
      %s346 = sphi 0, %s346
      %s348 = sphi 0, %s346
      %s349 = sphi 0, %s348
      %s363 = sphi 0, %s349
      %s371 = sphi 0, %s373
      %s374 = sphi 0, %s371
      %s375 = sphi 0, %s374
      %s391 = sphi 0, %s375
    $region4: #{tpu_custom_call.1} parent=1 // loop_header_branch
      %30 = sbr.rel (%p28) target = $region8
    $region5: #{tpu_custom_call.1} parent=1 // loop_body
      %s32 = ssub.s32 %s27, 1
      %s33 = ssub.s32 %s27, 2
      %s40 = sadd.s32 1, %s35
      %p41 = scmp.ge.s32.totalorder %s40, 2
      %s42 = scalar_select %p41, 0, %s40
      %s43 = sadd.s32 1, %s34
      %s44 = scalar_select %p41, %s43, %s34
      %p45 = scmp.ge.s32.totalorder %s44, 2
      %s46 = scalar_select %p45, 0, %s44
      %s47 = ssub.s32 %s34, %s46
      %p48 = scmp.eq.s32.totalorder %s47, 0
      %s50 = sadd.s32 %s49, 1
      %s51 = scalar_select %p48, %s49, %s50
      %p54 = pneg %p48
      %p55 = scmp.eq.s32.totalorder %s27, 3
      %p56 = por %p54, %p55
      %p57 = scmp.ne.s32.totalorder %s49, %s52
      %p58 = scmp.eq.s32.totalorder %s27, 0
      %p59 = por %p57, %p58
      %p60 = scmp.ne.s32.totalorder %s49, %s52
      %p61 = scmp.eq.s32.totalorder %s32, 3
      %p62 = por %p60, %p61
      %p63 = scmp.ne.s32.totalorder %s52, %s53
      %p64 = scmp.eq.s32.totalorder %s32, 0
      %p65 = por %p63, %p64
      %p66 = scmp.ne.s32.totalorder %s52, %s53
      %p67 = scmp.eq.s32.totalorder %s33, 3
      %p68 = por %p66, %p67
      %p70 = scmp.ne.s32.totalorder %s53, %s69
      %p71 = scmp.eq.s32.totalorder %s33, 0
      %p72 = por %p70, %p71
      %s74 = sadd.s32 %s73, 1
      %p77 = scmp.eq.s32.totalorder %s27, 3
      %p78 = scmp.ne.s32.totalorder %s73, %s75
      %p79 = scmp.eq.s32.totalorder %s27, 0
      %p80 = por %p78, %p79
      %p81 = scmp.ne.s32.totalorder %s73, %s75
      %p82 = scmp.eq.s32.totalorder %s32, 3
      %p83 = por %p81, %p82
      %p84 = scmp.ne.s32.totalorder %s75, %s76
      %p85 = scmp.eq.s32.totalorder %s32, 0
      %p86 = por %p84, %p85
      %p87 = scmp.ne.s32.totalorder %s75, %s76
      %p88 = scmp.eq.s32.totalorder %s33, 3
      %p89 = por %p87, %p88
      %p91 = scmp.ne.s32.totalorder %s76, %s90
      %p92 = scmp.eq.s32.totalorder %s33, 0
      %p93 = por %p91, %p92
      %s95 = sadd.s32 %s94, 1
      %p98 = scmp.eq.s32.totalorder %s27, 3
      %p99 = scmp.ne.s32.totalorder %s94, %s96
      %p100 = scmp.eq.s32.totalorder %s27, 0
      %p101 = por %p99, %p100
      %p102 = scmp.ne.s32.totalorder %s94, %s96
      %p103 = scmp.eq.s32.totalorder %s32, 3
      %p104 = por %p102, %p103
      %p105 = scmp.ne.s32.totalorder %s96, %s97
      %p106 = scmp.eq.s32.totalorder %s32, 0
      %p107 = por %p105, %p106
      %p108 = scmp.ne.s32.totalorder %s96, %s97
      %p109 = scmp.eq.s32.totalorder %s33, 3
      %p110 = por %p108, %p109
      %p112 = scmp.ne.s32.totalorder %s97, %s111
      %p113 = scmp.eq.s32.totalorder %s33, 0
      %p114 = por %p112, %p113
      %s116 = sadd.s32 %s115, 1
      %p119 = scmp.eq.s32.totalorder %s27, 3
      %p120 = scmp.ne.s32.totalorder %s115, %s117
      %p121 = scmp.eq.s32.totalorder %s27, 0
      %p122 = por %p120, %p121
      %p123 = scmp.ne.s32.totalorder %s115, %s117
      %p124 = scmp.eq.s32.totalorder %s32, 3
      %p125 = por %p123, %p124
      %p126 = scmp.ne.s32.totalorder %s117, %s118
      %p127 = scmp.eq.s32.totalorder %s32, 0
      %p128 = por %p126, %p127
      %p129 = scmp.ne.s32.totalorder %s117, %s118
      %p130 = scmp.eq.s32.totalorder %s33, 3
      %p131 = por %p129, %p130
      %p133 = scmp.ne.s32.totalorder %s118, %s132
      %p134 = scmp.eq.s32.totalorder %s33, 0
      %p135 = por %p133, %p134
      %s137 = sadd.s32 %s136, 1
      %p140 = scmp.eq.s32.totalorder %s27, 3
      %p141 = scmp.ne.s32.totalorder %s136, %s138
      %p142 = scmp.eq.s32.totalorder %s27, 0
      %p143 = por %p141, %p142
      %p144 = scmp.ne.s32.totalorder %s136, %s138
      %p145 = scmp.eq.s32.totalorder %s32, 3
      %p146 = por %p144, %p145
      %p147 = scmp.ne.s32.totalorder %s138, %s139
      %p148 = scmp.eq.s32.totalorder %s32, 0
      %p149 = por %p147, %p148
      %p150 = scmp.ne.s32.totalorder %s138, %s139
      %p151 = scmp.eq.s32.totalorder %s33, 3
      %p152 = por %p150, %p151
      %p154 = scmp.ne.s32.totalorder %s139, %s153
      %p155 = scmp.eq.s32.totalorder %s33, 0
      %p156 = por %p154, %p155
      %s158 = sadd.s32 %s157, 1
      %p161 = scmp.eq.s32.totalorder %s27, 3
      %p162 = scmp.ne.s32.totalorder %s157, %s159
      %p163 = scmp.eq.s32.totalorder %s27, 0
      %p164 = por %p162, %p163
      %p165 = scmp.ne.s32.totalorder %s157, %s159
      %p166 = scmp.eq.s32.totalorder %s32, 3
      %p167 = por %p165, %p166
      %p168 = scmp.ne.s32.totalorder %s159, %s160
      %p169 = scmp.eq.s32.totalorder %s32, 0
      %p170 = por %p168, %p169
      %p171 = scmp.ne.s32.totalorder %s159, %s160
      %p172 = scmp.eq.s32.totalorder %s33, 3
      %p173 = por %p171, %p172
      %p175 = scmp.ne.s32.totalorder %s160, %s174
      %p176 = scmp.eq.s32.totalorder %s33, 0
      %p177 = por %p175, %p176
      %s179 = sadd.s32 %s178, 1
      %p182 = scmp.eq.s32.totalorder %s27, 3
      %p183 = scmp.ne.s32.totalorder %s178, %s180
      %p184 = scmp.eq.s32.totalorder %s27, 0
      %p185 = por %p183, %p184
      %p186 = scmp.ne.s32.totalorder %s178, %s180
      %p187 = scmp.eq.s32.totalorder %s32, 3
      %p188 = por %p186, %p187
      %p189 = scmp.ne.s32.totalorder %s180, %s181
      %p190 = scmp.eq.s32.totalorder %s32, 0
      %p191 = por %p189, %p190
      %p192 = scmp.ne.s32.totalorder %s180, %s181
      %p193 = scmp.eq.s32.totalorder %s33, 3
      %p194 = por %p192, %p193
      %p196 = scmp.ne.s32.totalorder %s181, %s195
      %p197 = scmp.eq.s32.totalorder %s33, 0
      %p198 = por %p196, %p197
      %s200 = sadd.s32 %s199, 1
      %p203 = scmp.eq.s32.totalorder %s27, 3
      %p204 = scmp.ne.s32.totalorder %s199, %s201
      %p205 = scmp.eq.s32.totalorder %s27, 0
      %p206 = por %p204, %p205
      %p207 = scmp.ne.s32.totalorder %s199, %s201
      %p208 = scmp.eq.s32.totalorder %s32, 3
      %p209 = por %p207, %p208
      %p210 = scmp.ne.s32.totalorder %s201, %s202
      %p211 = scmp.eq.s32.totalorder %s32, 0
      %p212 = por %p210, %p211
      %p213 = scmp.ne.s32.totalorder %s201, %s202
      %p214 = scmp.eq.s32.totalorder %s33, 3
      %p215 = por %p213, %p214
      %p217 = scmp.ne.s32.totalorder %s202, %s216
      %p218 = scmp.eq.s32.totalorder %s33, 0
      %p219 = por %p217, %p218
      %s221 = sadd.s32 %s220, 1
      %p224 = scmp.eq.s32.totalorder %s27, 3
      %p225 = scmp.ne.s32.totalorder %s220, %s222
      %p226 = scmp.eq.s32.totalorder %s27, 0
      %p227 = por %p225, %p226
      %p228 = scmp.ne.s32.totalorder %s220, %s222
      %p229 = scmp.eq.s32.totalorder %s32, 3
      %p230 = por %p228, %p229
      %p231 = scmp.ne.s32.totalorder %s222, %s223
      %p232 = scmp.eq.s32.totalorder %s32, 0
      %p233 = por %p231, %p232
      %p234 = scmp.ne.s32.totalorder %s222, %s223
      %p235 = scmp.eq.s32.totalorder %s33, 3
      %p236 = por %p234, %p235
      %p238 = scmp.ne.s32.totalorder %s223, %s237
      %p239 = scmp.eq.s32.totalorder %s33, 0
      %p240 = por %p238, %p239
      %s242 = sadd.s32 %s241, 1
      %p245 = scmp.eq.s32.totalorder %s27, 3
      %p246 = scmp.ne.s32.totalorder %s241, %s243
      %p247 = scmp.eq.s32.totalorder %s27, 0
      %p248 = por %p246, %p247
      %p249 = scmp.ne.s32.totalorder %s241, %s243
      %p250 = scmp.eq.s32.totalorder %s32, 3
      %p251 = por %p249, %p250
      %p252 = scmp.ne.s32.totalorder %s243, %s244
      %p253 = scmp.eq.s32.totalorder %s32, 0
      %p254 = por %p252, %p253
      %p255 = scmp.ne.s32.totalorder %s243, %s244
      %p256 = scmp.eq.s32.totalorder %s33, 3
      %p257 = por %p255, %p256
      %p259 = scmp.ne.s32.totalorder %s244, %s258
      %p260 = scmp.eq.s32.totalorder %s33, 0
      %p261 = por %p259, %p260
      %s263 = sadd.s32 %s262, 1
      %p266 = scmp.eq.s32.totalorder %s27, 3
      %p267 = scmp.ne.s32.totalorder %s262, %s264
      %p268 = scmp.eq.s32.totalorder %s27, 0
      %p269 = por %p267, %p268
      %p270 = scmp.ne.s32.totalorder %s262, %s264
      %p271 = scmp.eq.s32.totalorder %s32, 3
      %p272 = por %p270, %p271
      %p273 = scmp.ne.s32.totalorder %s264, %s265
      %p274 = scmp.eq.s32.totalorder %s32, 0
      %p275 = por %p273, %p274
      %p276 = scmp.ne.s32.totalorder %s264, %s265
      %p277 = scmp.eq.s32.totalorder %s33, 3
      %p278 = por %p276, %p277
      %p280 = scmp.ne.s32.totalorder %s265, %s279
      %p281 = scmp.eq.s32.totalorder %s33, 0
      %p282 = por %p280, %p281
      %s284 = sadd.s32 %s283, 1
      %p287 = scmp.eq.s32.totalorder %s27, 3
      %p288 = scmp.ne.s32.totalorder %s283, %s285
      %p289 = scmp.eq.s32.totalorder %s27, 0
      %p290 = por %p288, %p289
      %p291 = scmp.ne.s32.totalorder %s283, %s285
      %p292 = scmp.eq.s32.totalorder %s32, 3
      %p293 = por %p291, %p292
      %p294 = scmp.ne.s32.totalorder %s285, %s286
      %p295 = scmp.eq.s32.totalorder %s32, 0
      %p296 = por %p294, %p295
      %p297 = scmp.ne.s32.totalorder %s285, %s286
      %p298 = scmp.eq.s32.totalorder %s33, 3
      %p299 = por %p297, %p298
      %p301 = scmp.ne.s32.totalorder %s286, %s300
      %p302 = scmp.eq.s32.totalorder %s33, 0
      %p303 = por %p301, %p302
      %s305 = sadd.s32 %s304, 1
      %p308 = scmp.eq.s32.totalorder %s27, 3
      %p309 = scmp.ne.s32.totalorder %s304, %s306
      %p310 = scmp.eq.s32.totalorder %s27, 0
      %p311 = por %p309, %p310
      %p312 = scmp.ne.s32.totalorder %s304, %s306
      %p313 = scmp.eq.s32.totalorder %s32, 3
      %p314 = por %p312, %p313
      %p315 = scmp.ne.s32.totalorder %s306, %s307
      %p316 = scmp.eq.s32.totalorder %s32, 0
      %p317 = por %p315, %p316
      %p318 = scmp.ne.s32.totalorder %s306, %s307
      %p319 = scmp.eq.s32.totalorder %s33, 3
      %p320 = por %p318, %p319
      %p322 = scmp.ne.s32.totalorder %s307, %s321
      %p323 = scmp.eq.s32.totalorder %s33, 0
      %p324 = por %p322, %p323
      %s326 = sadd.s32 %s325, 1
      %p329 = scmp.eq.s32.totalorder %s27, 3
      %p330 = scmp.ne.s32.totalorder %s325, %s327
      %p331 = scmp.eq.s32.totalorder %s27, 0
      %p332 = por %p330, %p331
      %p333 = scmp.ne.s32.totalorder %s325, %s327
      %p334 = scmp.eq.s32.totalorder %s32, 3
      %p335 = por %p333, %p334
      %p336 = scmp.ne.s32.totalorder %s327, %s328
      %p337 = scmp.eq.s32.totalorder %s32, 0
      %p338 = por %p336, %p337
      %p339 = scmp.ne.s32.totalorder %s327, %s328
      %p340 = scmp.eq.s32.totalorder %s33, 3
      %p341 = por %p339, %p340
      %p343 = scmp.ne.s32.totalorder %s328, %s342
      %p344 = scmp.eq.s32.totalorder %s33, 0
      %p345 = por %p343, %p344
      %s347 = sadd.s32 %s346, 1
      %p350 = scmp.eq.s32.totalorder %s27, 3
      %p351 = scmp.ne.s32.totalorder %s346, %s348
      %p352 = scmp.eq.s32.totalorder %s27, 0
      %p353 = por %p351, %p352
      %p354 = scmp.ne.s32.totalorder %s346, %s348
      %p355 = scmp.eq.s32.totalorder %s32, 3
      %p356 = por %p354, %p355
      %p357 = scmp.ne.s32.totalorder %s348, %s349
      %p358 = scmp.eq.s32.totalorder %s32, 0
      %p359 = por %p357, %p358
      %p360 = scmp.ne.s32.totalorder %s348, %s349
      %p361 = scmp.eq.s32.totalorder %s33, 3
      %p362 = por %p360, %p361
      %p364 = scmp.ne.s32.totalorder %s349, %s363
      %p365 = scmp.eq.s32.totalorder %s33, 0
      %p366 = por %p364, %p365
      %s367 = ssub.s32 %s34, %s46
      %s368 = ssub.s32 %s35, %s42
      %s369 = sor.u32 %s367, %s368
      %p370 = scmp.eq.s32.totalorder %s369, 0
      %s372 = sadd.s32 %s371, 1
      %s373 = scalar_select %p370, %s371, %s372
      %p376 = pneg %p370
      %p377 = scmp.eq.s32.totalorder %s27, 3
      %p378 = por %p376, %p377
      %p379 = scmp.ne.s32.totalorder %s371, %s374
      %p380 = scmp.eq.s32.totalorder %s27, 0
      %p381 = por %p379, %p380
      %p382 = scmp.ne.s32.totalorder %s371, %s374
      %p383 = scmp.eq.s32.totalorder %s32, 3
      %p384 = por %p382, %p383
      %p385 = scmp.ne.s32.totalorder %s374, %s375
      %p386 = scmp.eq.s32.totalorder %s32, 0
      %p387 = por %p385, %p386
      %p388 = scmp.ne.s32.totalorder %s374, %s375
      %p389 = scmp.eq.s32.totalorder %s33, 3
      %p390 = por %p388, %p389
      %p392 = scmp.ne.s32.totalorder %s375, %s391
      %p393 = scmp.eq.s32.totalorder %s33, 0
      %p394 = por %p392, %p393
      %p395 = scmp.le.s32.totalorder 1, %s27
      %p396 = scmp.lt.s32.totalorder %s27, 5
      %p397 = pnand %p395, %p396
      %p398 = pneg %p397
      // Predicated region
      $region9: #{tpu_custom_call.1} parent=5 // pred_check
        _
      $region10: #{tpu_custom_call.1} parent=5 // pred_check_branch
        %400 = sbr.rel (%p397) target = $region12
      $region11: #{tpu_custom_call.1} parent=5 // pred_region
        %s401 = ssub.s32 %s27, 1
        // Predicated region
        $region13: #{tpu_custom_call.1} parent=11 // pred_check
          %p402 = pneg %p86
        $region14: #{tpu_custom_call.1} parent=11 // pred_check_branch
          %404 = sbr.rel (%p402) target = $region16
        $region15: #{tpu_custom_call.1} parent=11 // pred_region
          _
        $region16: #{tpu_custom_call.1} parent=11 // pred_fallthru
          _
        // Predicated region
        $region17: #{tpu_custom_call.1} parent=11 // pred_check
          %p405 = pneg %p107
        $region18: #{tpu_custom_call.1} parent=11 // pred_check_branch
          %407 = sbr.rel (%p405) target = $region20
        $region19: #{tpu_custom_call.1} parent=11 // pred_region
          _
        $region20: #{tpu_custom_call.1} parent=11 // pred_fallthru
          _
        // Predicated region
        $region21: #{tpu_custom_call.1} parent=11 // pred_check
          %p408 = pneg %p128
        $region22: #{tpu_custom_call.1} parent=11 // pred_check_branch
          %410 = sbr.rel (%p408) target = $region24
        $region23: #{tpu_custom_call.1} parent=11 // pred_region
          _
        $region24: #{tpu_custom_call.1} parent=11 // pred_fallthru
          _
        // Predicated region
        $region25: #{tpu_custom_call.1} parent=11 // pred_check
          %p411 = pneg %p149
        $region26: #{tpu_custom_call.1} parent=11 // pred_check_branch
          %413 = sbr.rel (%p411) target = $region28
        $region27: #{tpu_custom_call.1} parent=11 // pred_region
          %s415 = ssub.s32 16, 16
          %416 = vsyncadd [#allocation5], %s415
          %s418 = sshll.u32 [#allocation4], 4
          %s419 = int_to_ptr.vmem [resolvable:$true] %s418
          %421 = dma.hbm_to_vmem [thread:$0]  %s4, 16, %s419, [#allocation5]
        $region28: #{tpu_custom_call.1} parent=11 // pred_fallthru
          _
        // Predicated region
        $region29: #{tpu_custom_call.1} parent=11 // pred_check
          %p422 = pneg %p170
        $region30: #{tpu_custom_call.1} parent=11 // pred_check_branch
          %424 = sbr.rel (%p422) target = $region32
        $region31: #{tpu_custom_call.1} parent=11 // pred_region
          _
        $region32: #{tpu_custom_call.1} parent=11 // pred_fallthru
          _
        // Predicated region
        $region33: #{tpu_custom_call.1} parent=11 // pred_check
          %p425 = pneg %p191
        $region34: #{tpu_custom_call.1} parent=11 // pred_check_branch
          %427 = sbr.rel (%p425) target = $region36
        $region35: #{tpu_custom_call.1} parent=11 // pred_region
          %s429 = ssub.s32 16, 16
          %430 = vsyncadd [#allocation8], %s429
          %s432 = sshll.u32 [#allocation7], 4
          %s433 = int_to_ptr.vmem [resolvable:$true] %s432
          %435 = dma.hbm_to_vmem [thread:$0]  %s6, 16, %s433, [#allocation8]
        $region36: #{tpu_custom_call.1} parent=11 // pred_fallthru
          _
        // Predicated region
        $region37: #{tpu_custom_call.1} parent=11 // pred_check
          %p436 = pneg %p212
        $region38: #{tpu_custom_call.1} parent=11 // pred_check_branch
          %438 = sbr.rel (%p436) target = $region40
        $region39: #{tpu_custom_call.1} parent=11 // pred_region
          _
        $region40: #{tpu_custom_call.1} parent=11 // pred_fallthru
          _
        // Predicated region
        $region41: #{tpu_custom_call.1} parent=11 // pred_check
          %p439 = pneg %p233
        $region42: #{tpu_custom_call.1} parent=11 // pred_check_branch
          %441 = sbr.rel (%p439) target = $region44
        $region43: #{tpu_custom_call.1} parent=11 // pred_region
          %s443 = ssub.s32 16, 16
          %444 = vsyncadd [#allocation8], %s443
          %s446 = sshll.u32 [#allocation9], 4
          %s447 = int_to_ptr.vmem [resolvable:$true] %s446
          %449 = dma.hbm_to_vmem [thread:$0]  %s8, 16, %s447, [#allocation8]
        $region44: #{tpu_custom_call.1} parent=11 // pred_fallthru
          _
        // Predicated region
        $region45: #{tpu_custom_call.1} parent=11 // pred_check
          %p450 = pneg %p254
        $region46: #{tpu_custom_call.1} parent=11 // pred_check_branch
          %452 = sbr.rel (%p450) target = $region48
        $region47: #{tpu_custom_call.1} parent=11 // pred_region
          %s454 = ssub.s32 16, 16
          %455 = vsyncadd [#allocation11], %s454
          %s457 = sshll.u32 [#allocation10], 4
          %s458 = int_to_ptr.vmem [resolvable:$true] %s457
          %460 = dma.hbm_to_vmem [thread:$0]  %s9, 16, %s458, [#allocation11]
        $region48: #{tpu_custom_call.1} parent=11 // pred_fallthru
          _
        // Predicated region
        $region49: #{tpu_custom_call.1} parent=11 // pred_check
          %p461 = pneg %p275
        $region50: #{tpu_custom_call.1} parent=11 // pred_check_branch
          %463 = sbr.rel (%p461) target = $region52
        $region51: #{tpu_custom_call.1} parent=11 // pred_region
          _
        $region52: #{tpu_custom_call.1} parent=11 // pred_fallthru
          _
        // Predicated region
        $region53: #{tpu_custom_call.1} parent=11 // pred_check
          %p464 = pneg %p296
        $region54: #{tpu_custom_call.1} parent=11 // pred_check_branch
          %466 = sbr.rel (%p464) target = $region56
        $region55: #{tpu_custom_call.1} parent=11 // pred_region
          _
        $region56: #{tpu_custom_call.1} parent=11 // pred_fallthru
          _
        // Predicated region
        $region57: #{tpu_custom_call.1} parent=11 // pred_check
          %p467 = pneg %p317
        $region58: #{tpu_custom_call.1} parent=11 // pred_check_branch
          %469 = sbr.rel (%p467) target = $region60
        $region59: #{tpu_custom_call.1} parent=11 // pred_region
          _
        $region60: #{tpu_custom_call.1} parent=11 // pred_fallthru
          _
        // Predicated region
        $region61: #{tpu_custom_call.1} parent=11 // pred_check
          %p470 = pneg %p338
        $region62: #{tpu_custom_call.1} parent=11 // pred_check_branch
          %472 = sbr.rel (%p470) target = $region64
        $region63: #{tpu_custom_call.1} parent=11 // pred_region
          _
        $region64: #{tpu_custom_call.1} parent=11 // pred_fallthru
          _
        // Predicated region
        $region65: #{tpu_custom_call.1} parent=11 // pred_check
          %p473 = pneg %p359
        $region66: #{tpu_custom_call.1} parent=11 // pred_check_branch
          %475 = sbr.rel (%p473) target = $region68
        $region67: #{tpu_custom_call.1} parent=11 // pred_region
          _
        $region68: #{tpu_custom_call.1} parent=11 // pred_fallthru
          _
      $region12: #{tpu_custom_call.1} parent=5 // pred_fallthru
        _
      %p476 = scmp.lt.s32.totalorder %s27, 4
      // Predicated region
      $region69: #{tpu_custom_call.1} parent=5 // pred_check
        %p477 = pneg %p476
      $region70: #{tpu_custom_call.1} parent=5 // pred_check_branch
        %479 = sbr.rel (%p477) target = $region72
      $region71: #{tpu_custom_call.1} parent=5 // pred_region
        // Predicated region
        $region73: #{tpu_custom_call.1} parent=71 // pred_check
          %p480 = pneg %p59
        $region74: #{tpu_custom_call.1} parent=71 // pred_check_branch
          %482 = sbr.rel (%p480) target = $region76
        $region75: #{tpu_custom_call.1} parent=71 // pred_region
          %p483 = scmp.lt.s32.totalorder %s34, 1
          %s484 = scalar_select %p483, %s34, 1
          %s485 = smul.addr %s484, 2
          %s486 = smul.addr %s485, 8
          %s487 = scalar_lea.vmem %s0, %s486
        $region76: #{tpu_custom_call.1} parent=71 // pred_fallthru
          _
      $region72: #{tpu_custom_call.1} parent=5 // pred_fallthru
        _
      %p488 = scmp.le.s32.totalorder 1, %s27
      %p489 = scmp.lt.s32.totalorder %s27, 5
      %p490 = pnand %p488, %p489
      %p491 = pneg %p490
      // Predicated region
      $region77: #{tpu_custom_call.1} parent=5 // pred_check
        _
      $region78: #{tpu_custom_call.1} parent=5 // pred_check_branch
        %493 = sbr.rel (%p490) target = $region80
      $region79: #{tpu_custom_call.1} parent=5 // pred_region
        %s494 = ssub.s32 %s27, 1
        // Predicated region
        $region81: #{tpu_custom_call.1} parent=79 // pred_check
          %p495 = pneg %p149
        $region82: #{tpu_custom_call.1} parent=79 // pred_check_branch
          %497 = sbr.rel (%p495) target = $region84
        $region83: #{tpu_custom_call.1} parent=79 // pred_region
          %498 = dma.done [#allocation5], 16
        $region84: #{tpu_custom_call.1} parent=79 // pred_fallthru
          _
        // Predicated region
        $region85: #{tpu_custom_call.1} parent=79 // pred_check
          %p499 = pneg %p191
        $region86: #{tpu_custom_call.1} parent=79 // pred_check_branch
          %501 = sbr.rel (%p499) target = $region88
        $region87: #{tpu_custom_call.1} parent=79 // pred_region
          %502 = dma.done [#allocation8], 16
        $region88: #{tpu_custom_call.1} parent=79 // pred_fallthru
          _
        // Predicated region
        $region89: #{tpu_custom_call.1} parent=79 // pred_check
          %p503 = pneg %p233
        $region90: #{tpu_custom_call.1} parent=79 // pred_check_branch
          %505 = sbr.rel (%p503) target = $region92
        $region91: #{tpu_custom_call.1} parent=79 // pred_region
          %506 = dma.done [#allocation8], 16
        $region92: #{tpu_custom_call.1} parent=79 // pred_fallthru
          _
        // Predicated region
        $region93: #{tpu_custom_call.1} parent=79 // pred_check
          %p507 = pneg %p254
        $region94: #{tpu_custom_call.1} parent=79 // pred_check_branch
          %509 = sbr.rel (%p507) target = $region96
        $region95: #{tpu_custom_call.1} parent=79 // pred_region
          %510 = dma.done [#allocation11], 16
        $region96: #{tpu_custom_call.1} parent=79 // pred_fallthru
          _
        %p511 = scmp.lt.s32.totalorder %s36, 1
        %s512 = scalar_select %p511, %s36, 1
        %s513 = smul.addr %s512, 2
        %s514 = smul.addr %s513, 8
        %s515 = scalar_lea.vmem %s0, %s514
        %p516 = pneg %p65
        %p517 = pneg %p62
        %p518 = pneg %p86
        %p519 = pneg %p83
        %p520 = pneg %p107
        %p521 = pneg %p104
        %p522 = pneg %p128
        %p523 = pneg %p125
        %p524 = pneg %p149
        %p525 = pneg %p146
        %p526 = pneg %p170
        %p527 = pneg %p167
        %p528 = pneg %p191
        %p529 = pneg %p188
        %p530 = pneg %p212
        %p531 = pneg %p209
        %p532 = pneg %p233
        %p533 = pneg %p230
        %p534 = pneg %p254
        %p535 = pneg %p251
        %p536 = pneg %p275
        %p537 = pneg %p272
        %p538 = pneg %p296
        %p539 = pneg %p293
        %p540 = pneg %p317
        %p541 = pneg %p314
        %p542 = pneg %p338
        %p543 = pneg %p335
        %p544 = pneg %p359
        %p545 = pneg %p356
        %p546 = pneg %p387
        %p547 = pneg %p384
        %s548 = sand.u32 %s374, 1
        %s549 = scalar_lea.sflag [#allocation6], %s548
        %s550 = sand.u32 %s374, 1
        %s551 = smul.addr %s550, 8
        %s552 = scalar_lea.vmem [#allocation12], %s551
        %p553 = scmp.lt.s32.totalorder %s36, 1
        %s554 = scalar_select %p553, %s36, 1
        %s555 = smul.addr %s554, 2
        %s556 = smul.addr %s555, 8
        %s557 = scalar_lea.vmem %s0, %s556
        %p559 = scmp.eq.s32.totalorder %s37, 0
        // Predicated region
        $region97: #{tpu_custom_call.1} parent=79 // pred_check
          %p560 = pneg %p559
        $region98: #{tpu_custom_call.1} parent=79 // pred_check_branch
          %562 = sbr.rel (%p560) target = $region100
        $region99: #{tpu_custom_call.1} parent=79 // pred_region
          %v563 = vld [vmem:[%s557] sm:$0xff]
          %v564 = vld [vmem:[%s557 + $0x8] sm:$0xff]
          %v565 = vld [vmem:[%s1] sm:$0x1]
          %v566 = vld [vmem:[%s2] sm:$0x1]
          %vm567 = vcmask 261120
          %v568 = vsel %vm567, %v563, 0.0
          %569 = vadd.xlane.f32.xlu0 %v568
          %v570 = vpop.xlane.xlu0 %569
          %v571 = vsel %vm567, %v564, 0.0
          %572 = vadd.xlane.f32.xlu0 %v571
          %v573 = vpop.xlane.xlu0 %572
          %v574 = vrcp.pop 32.0
          %v575 = vmul.f32 %v570, %v574
          %v576 = vmul.f32 %v573, %v574
          %v577 = vsub.f32 %v563, %v575
          %v578 = vsub.f32 %v564, %v576
          %v579 = vmul.f32 %v577, %v577
          %v580 = vmul.f32 %v578, %v578
          %v581 = vsel %vm567, %v579, 0.0
          %582 = vadd.xlane.f32.xlu0 %v581
          %v583 = vpop.xlane.xlu0 %582
          %v584 = vsel %vm567, %v580, 0.0
          %585 = vadd.xlane.f32.xlu0 %v584
          %v586 = vpop.xlane.xlu0 %585
          %v587 = vmul.f32 %v583, %v574
          %v588 = vmul.f32 %v586, %v574
          %v589 = vadd.f32 %v587, 1e-05
          %v590 = vadd.f32 %v588, 1e-05
          %v591 = vrsqrt.pop %v589
          %v592 = vrsqrt.pop %v590
          %v593 = vmul.f32 %v577, %v591
          %v594 = vmul.f32 %v578, %v592
          %v596 = vlaneseq
          %v597 = vshrl.u32 %v596, 7
          %v598 = vsub.s32 0, %v597
          %v599 = vrot.slane %v565, %v598
          %v601 = vmul.f32 %v593, %v599
          %v602 = vmul.f32 %v594, %v599
          %v604 = vlaneseq
          %v605 = vshrl.u32 %v604, 7
          %v606 = vsub.s32 0, %v605
          %v607 = vrot.slane %v566, %v606
          %v609 = vadd.f32 %v601, %v607
          %v610 = vadd.f32 %v602, %v607
          %v611 = vpack.c.bf16 %v610, %v609
          %v612 = vld [vmem:[%s5] sm:$0xf]
          %v613 = vld [vmem:[%s5 + $0x4] sm:$0xf]
          %v614 = vld [vmem:[%s5 + $0x8] sm:$0xf]
          %v615 = vld [vmem:[%s5 + $0xc] sm:$0xf]
          %v616 = vld [vmem:[#allocation7] sm:$0x1]
          %v618 = vlaneseq
          %v619 = vshrl.u32 %v618, 7
          %v620 = vsub.s32 0, %v619
          %v621 = vrot.slane %v616, %v620
          %v627 = vunpack.c.l.b16 %v612
          %v628 = vunpack.c.l.b16 %v613
          %v629 = vunpack.c.l.b16 %v614
          %v630 = vunpack.c.l.b16 %v615
          %v631 = vpack.c.b16 %v628, %v627
          %v632 = vpack.c.b16 %v630, %v629
          %v636 = vsel %vm567, %v611, 0
          %638 = vmatprep.subr.bf16.mxu0 0
          %639 = vmatpush1.bf16.msra.mxu0 %v631
          %640 = vmatprep.subr.bf16.mxu0 0
          %641 = vmatpush1.bf16.msra.mxu0 %v632
          %642 = vmatprep.subr.bf16.mxu0 0
          %643 = vmatpush1.bf16.msra.mxu0 0
          %644 = vmatprep.subr.bf16.mxu0 0
          %645 = vmatpush1.bf16.msra.mxu0 0
          %646 = vmatprep.subr.bf16.mxu0 0
          %647 = vmatpush1.bf16.msra.mxu0 0
          %648 = vmatprep.subr.bf16.mxu0 0
          %649 = vmatpush1.bf16.msra.mxu0 0
          %650 = vmatprep.subr.bf16.mxu0 0
          %651 = vmatpush1.bf16.msra.mxu0 0
          %652 = vmatprep.subr.bf16.mxu0 0
          %653 = vmatpush1.bf16.msra.mxu0 0
          %654 = vmatprep.subr.bf16.mxu0 0
          %655 = vmatpush1.bf16.msra.mxu0 0
          %656 = vmatprep.subr.bf16.mxu0 0
          %657 = vmatpush1.bf16.msra.mxu0 0
          %658 = vmatprep.subr.bf16.mxu0 0
          %659 = vmatpush1.bf16.msra.mxu0 0
          %660 = vmatprep.subr.bf16.mxu0 0
          %661 = vmatpush1.bf16.msra.mxu0 0
          %662 = vmatprep.subr.bf16.mxu0 0
          %663 = vmatpush1.bf16.msra.mxu0 0
          %664 = vmatprep.subr.bf16.mxu0 0
          %665 = vmatpush1.bf16.msra.mxu0 0
          %666 = vmatprep.subr.bf16.mxu0 0
          %667 = vmatpush1.bf16.msra.mxu0 0
          %668 = vmatprep.subr.bf16.mxu0 0
          %669 = vmatpush1.bf16.msra.mxu0 0
          %670 = vmatprep.mubr.bf16.mxu0 0
          %671 = vmatmul.mubr.bf16.gmra.mrb[0].mxu0 %v636
          %v672 = vpop.f32.mrb[0].mxu0
          %v673 = vadd.f32 %v621, %v672
          %v674 = vpop.f32.mrb[0].mxu0
          %v675 = vpop.f32.mrb[0].mxu0
          %v676 = vadd.f32 %v621, %v675
          %v677 = vpop.f32.mrb[0].mxu0
          %678 = vdwg.mxu0
          %679 = vxpose.xlu0.b32.start [1/16] %v673, 128
          %680 = vxpose.xlu0.b32.cont [2/16] %v676, 128
          %681 = vxpose.xlu0.b32.cont [3/16] 0.0, 128
          %682 = vxpose.xlu0.b32.cont [4/16] 0.0, 128
          %683 = vxpose.xlu0.b32.cont [5/16] 0.0, 128
          %684 = vxpose.xlu0.b32.cont [6/16] 0.0, 128
          %685 = vxpose.xlu0.b32.cont [7/16] 0.0, 128
          %686 = vxpose.xlu0.b32.cont [8/16] 0.0, 128
          %687 = vxpose.xlu0.b32.cont [9/16] 0.0, 128
          %688 = vxpose.xlu0.b32.cont [10/16] 0.0, 128
          %689 = vxpose.xlu0.b32.cont [11/16] 0.0, 128
          %690 = vxpose.xlu0.b32.cont [12/16] 0.0, 128
          %691 = vxpose.xlu0.b32.cont [13/16] 0.0, 128
          %692 = vxpose.xlu0.b32.cont [14/16] 0.0, 128
          %693 = vxpose.xlu0.b32.cont [15/16] 0.0, 128
          %694 = vxpose.xlu0.b32.end [16/16] 0.0, 128
          %v695 = vpop.trf.xlu0
          %v696 = vpop.trf.xlu0
          %v697 = vpop.trf.xlu0
          %v698 = vpop.trf.xlu0
          %v699 = vpop.trf.xlu0
          %v700 = vpop.trf.xlu0
          %v701 = vpop.trf.xlu0
          %v702 = vpop.trf.xlu0
          %v703 = vpop.trf.xlu0
          %v704 = vpop.trf.xlu0
          %v705 = vpop.trf.xlu0
          %v706 = vpop.trf.xlu0
          %v707 = vpop.trf.xlu0
          %v708 = vpop.trf.xlu0
          %v709 = vpop.trf.xlu0
          %v710 = vpop.trf.xlu0
          %v711 = vpack.c.bf16 %v695, %v695
          %vm712 = vcmask 125952
          %713 = vst.msk [vmem:[#allocation2] sm:$0xf] %vm712, %v711
          %v714 = vpack.c.bf16 %v676, %v673
          %716 = vrot.lane.b32.xlu0 %v714, 96
          %v717 = vpop.permute.xlu0 %716
          %vm719 = vcmask 64512
          %720 = vst.msk [vmem:[#allocation3] sm:$0xff] %vm719, %v717
          %v721 = vpack.c.bf16 %v696, %v696
          %s722 = scalar_lea.vmem [#allocation2], 4
          %723 = vst.msk [vmem:[%s722] sm:$0xf] %vm712, %v721
          %724 = vrot.lane.b32.xlu0 %v714, 88
          %v725 = vpop.permute.xlu0 %724
          %s727 = scalar_lea.vmem [#allocation3], 8
          %728 = vst.msk [vmem:[%s727] sm:$0xff] %vm719, %v725
          %v729 = vpack.c.bf16 %v697, %v697
          %s730 = scalar_lea.vmem [#allocation2], 8
          %731 = vst.msk [vmem:[%s730] sm:$0xf] %vm712, %v729
          %732 = vrot.lane.b32.xlu0 %v714, 80
          %v733 = vpop.permute.xlu0 %732
          %s735 = scalar_lea.vmem [#allocation3], 16
          %736 = vst.msk [vmem:[%s735] sm:$0xff] %vm719, %v733
          %v737 = vpack.c.bf16 %v698, %v698
          %s738 = scalar_lea.vmem [#allocation2], 12
          %739 = vst.msk [vmem:[%s738] sm:$0xf] %vm712, %v737
          %740 = vrot.lane.b32.xlu0 %v714, 72
          %v741 = vpop.permute.xlu0 %740
          %s743 = scalar_lea.vmem [#allocation3], 24
          %744 = vst.msk [vmem:[%s743] sm:$0xff] %vm719, %v741
        $region100: #{tpu_custom_call.1} parent=79 // pred_fallthru
          _
        %s745 = smul.u32 %s37, 8
        %s746 = scalar_lea.vmem %s557, %s745
        %v747 = vld [vmem:[%s746] sm:$0xff]
        %v748 = vld [vmem:[%s1] sm:$0x1]
        %v749 = vld [vmem:[%s2] sm:$0x1]
        %vm750 = vcmask 261120
        %v751 = vsel %vm750, %v747, 0.0
        %752 = vadd.xlane.f32.xlu0 %v751
        %v753 = vpop.xlane.xlu0 %752
        %v754 = vrcp.pop 32.0
        %v755 = vmul.f32 %v753, %v754
        %v756 = vsub.f32 %v747, %v755
        %v757 = vmul.f32 %v756, %v756
        %v758 = vsel %vm750, %v757, 0.0
        %759 = vadd.xlane.f32.xlu0 %v758
        %v760 = vpop.xlane.xlu0 %759
        %v761 = vmul.f32 %v760, %v754
        %v762 = vadd.f32 %v761, 1e-05
        %v763 = vrsqrt.pop %v762
        %v764 = vmul.f32 %v756, %v763
        %v766 = vlaneseq
        %v767 = vshrl.u32 %v766, 7
        %v768 = vsub.s32 0, %v767
        %v769 = vrot.slane %v748, %v768
        %v771 = vmul.f32 %v764, %v769
        %v773 = vlaneseq
        %v774 = vshrl.u32 %v773, 7
        %v775 = vsub.s32 0, %v774
        %v776 = vrot.slane %v749, %v775
        %v778 = vadd.f32 %v771, %v776
        %v779 = vpack.c.bf16 %v778, %v778
        %v780 = vld [vmem:[%s3] sm:$0xf]
        %v781 = vld [vmem:[%s3 + $0x4] sm:$0xf]
        %v782 = vld [vmem:[%s3 + $0x8] sm:$0xf]
        %v783 = vld [vmem:[%s3 + $0xc] sm:$0xf]
        %v784 = vld [vmem:[#allocation4] sm:$0x1]
        %v786 = vlaneseq
        %v787 = vshrl.u32 %v786, 7
        %v788 = vsub.s32 0, %v787
        %v789 = vrot.slane %v784, %v788
        %v795 = vunpack.c.l.b16 %v780
        %v796 = vunpack.c.l.b16 %v781
        %v797 = vunpack.c.l.b16 %v782
        %v798 = vunpack.c.l.b16 %v783
        %v799 = vpack.c.b16 %v796, %v795
        %v800 = vpack.c.b16 %v798, %v797
        %v804 = vsel %vm750, %v779, 0
        %806 = vmatprep.subr.bf16.mxu0 0
        %807 = vmatpush1.bf16.msra.mxu0 %v799
        %808 = vmatprep.subr.bf16.mxu0 0
        %809 = vmatpush1.bf16.msra.mxu0 %v800
        %810 = vmatprep.subr.bf16.mxu0 0
        %811 = vmatpush1.bf16.msra.mxu0 0
        %812 = vmatprep.subr.bf16.mxu0 0
        %813 = vmatpush1.bf16.msra.mxu0 0
        %814 = vmatprep.subr.bf16.mxu0 0
        %815 = vmatpush1.bf16.msra.mxu0 0
        %816 = vmatprep.subr.bf16.mxu0 0
        %817 = vmatpush1.bf16.msra.mxu0 0
        %818 = vmatprep.subr.bf16.mxu0 0
        %819 = vmatpush1.bf16.msra.mxu0 0
        %820 = vmatprep.subr.bf16.mxu0 0
        %821 = vmatpush1.bf16.msra.mxu0 0
        %822 = vmatprep.subr.bf16.mxu0 0
        %823 = vmatpush1.bf16.msra.mxu0 0
        %824 = vmatprep.subr.bf16.mxu0 0
        %825 = vmatpush1.bf16.msra.mxu0 0
        %826 = vmatprep.subr.bf16.mxu0 0
        %827 = vmatpush1.bf16.msra.mxu0 0
        %828 = vmatprep.subr.bf16.mxu0 0
        %829 = vmatpush1.bf16.msra.mxu0 0
        %830 = vmatprep.subr.bf16.mxu0 0
        %831 = vmatpush1.bf16.msra.mxu0 0
        %832 = vmatprep.subr.bf16.mxu0 0
        %833 = vmatpush1.bf16.msra.mxu0 0
        %834 = vmatprep.subr.bf16.mxu0 0
        %835 = vmatpush1.bf16.msra.mxu0 0
        %836 = vmatprep.subr.bf16.mxu0 0
        %837 = vmatpush1.bf16.msra.mxu0 0
        %838 = vmatprep.mubr.bf16.mxu0 0
        %839 = vmatmul.mubr.bf16.gmra.mrb[0].mxu0 %v804
        %v840 = vpop.f32.mrb[0].mxu0
        %v841 = vadd.f32 %v789, %v840
        %v842 = vpop.f32.mrb[0].mxu0
        %v843 = vpop.f32.mrb[0].mxu0
        %v844 = vpop.f32.mrb[0].mxu0
        %845 = vdwg.mxu0
        %v846 = vmul.f32 %v841, 0.35355338
        %v847 = vpack.c.bf16 %v846, %v846
        %849 = vrot.lane.b32.xlu0 %v847, 120
        %v850 = vpop.permute.xlu0 %849
        %851 = vrot.lane.b32.xlu0 %v847, 112
        %v852 = vpop.permute.xlu0 %851
        %853 = vrot.lane.b32.xlu0 %v847, 104
        %v854 = vpop.permute.xlu0 %853
        %v855 = vld [vmem:[#allocation2] sm:$0xf]
        %v856 = vld [vmem:[#allocation2 + $0x4] sm:$0xf]
        %v857 = vld [vmem:[#allocation2 + $0x8] sm:$0xf]
        %v858 = vld [vmem:[#allocation2 + $0xc] sm:$0xf]
        %vm859 = vcmask 64512
        %v861 = vsel %vm859, %v847, 0
        %vm863 = vcmask 1043456
        %v865 = vsel %vm863, %v855, 0
        %867 = vmatprep.subr.bf16.mxu0 0
        %868 = vmatpush1.bf16.msra.mxu0 %v865
        %869 = vmatprep.subr.bf16.mxu0 0
        %870 = vmatpush1.bf16.msra.mxu0 0
        %871 = vmatprep.subr.bf16.mxu0 0
        %872 = vmatpush1.bf16.msra.mxu0 0
        %873 = vmatprep.subr.bf16.mxu0 0
        %874 = vmatpush1.bf16.msra.mxu0 0
        %875 = vmatprep.subr.bf16.mxu0 0
        %876 = vmatpush1.bf16.msra.mxu0 0
        %877 = vmatprep.subr.bf16.mxu0 0
        %878 = vmatpush1.bf16.msra.mxu0 0
        %879 = vmatprep.subr.bf16.mxu0 0
        %880 = vmatpush1.bf16.msra.mxu0 0
        %881 = vmatprep.subr.bf16.mxu0 0
        %882 = vmatpush1.bf16.msra.mxu0 0
        %883 = vmatprep.subr.bf16.mxu0 0
        %884 = vmatpush1.bf16.msra.mxu0 0
        %885 = vmatprep.subr.bf16.mxu0 0
        %886 = vmatpush1.bf16.msra.mxu0 0
        %887 = vmatprep.subr.bf16.mxu0 0
        %888 = vmatpush1.bf16.msra.mxu0 0
        %889 = vmatprep.subr.bf16.mxu0 0
        %890 = vmatpush1.bf16.msra.mxu0 0
        %891 = vmatprep.subr.bf16.mxu0 0
        %892 = vmatpush1.bf16.msra.mxu0 0
        %893 = vmatprep.subr.bf16.mxu0 0
        %894 = vmatpush1.bf16.msra.mxu0 0
        %895 = vmatprep.subr.bf16.mxu0 0
        %896 = vmatpush1.bf16.msra.mxu0 0
        %897 = vmatprep.subr.bf16.mxu0 0
        %898 = vmatpush1.bf16.msra.mxu0 0
        %899 = vmatprep.mubr.bf16.mxu0 0
        %900 = vmatmul.mubr.bf16.gmra.mrb[0].mxu0 %v861
        %v901 = vpop.f32.mrb[0].mxu0
        %v902 = vadd.f32 0.0, %v901
        %v903 = vpop.f32.mrb[0].mxu0
        %v904 = vpop.f32.mrb[0].mxu0
        %v905 = vpop.f32.mrb[0].mxu0
        %906 = vdwg.mxu0
        %v908 = vsel %vm859, %v850, 0
        %v911 = vsel %vm863, %v856, 0
        %913 = vmatprep.subr.bf16.mxu0 0
        %914 = vmatpush1.bf16.msra.mxu0 %v911
        %915 = vmatprep.subr.bf16.mxu0 0
        %916 = vmatpush1.bf16.msra.mxu0 0
        %917 = vmatprep.subr.bf16.mxu0 0
        %918 = vmatpush1.bf16.msra.mxu0 0
        %919 = vmatprep.subr.bf16.mxu0 0
        %920 = vmatpush1.bf16.msra.mxu0 0
        %921 = vmatprep.subr.bf16.mxu0 0
        %922 = vmatpush1.bf16.msra.mxu0 0
        %923 = vmatprep.subr.bf16.mxu0 0
        %924 = vmatpush1.bf16.msra.mxu0 0
        %925 = vmatprep.subr.bf16.mxu0 0
        %926 = vmatpush1.bf16.msra.mxu0 0
        %927 = vmatprep.subr.bf16.mxu0 0
        %928 = vmatpush1.bf16.msra.mxu0 0
        %929 = vmatprep.subr.bf16.mxu0 0
        %930 = vmatpush1.bf16.msra.mxu0 0
        %931 = vmatprep.subr.bf16.mxu0 0
        %932 = vmatpush1.bf16.msra.mxu0 0
        %933 = vmatprep.subr.bf16.mxu0 0
        %934 = vmatpush1.bf16.msra.mxu0 0
        %935 = vmatprep.subr.bf16.mxu0 0
        %936 = vmatpush1.bf16.msra.mxu0 0
        %937 = vmatprep.subr.bf16.mxu0 0
        %938 = vmatpush1.bf16.msra.mxu0 0
        %939 = vmatprep.subr.bf16.mxu0 0
        %940 = vmatpush1.bf16.msra.mxu0 0
        %941 = vmatprep.subr.bf16.mxu0 0
        %942 = vmatpush1.bf16.msra.mxu0 0
        %943 = vmatprep.subr.bf16.mxu0 0
        %944 = vmatpush1.bf16.msra.mxu0 0
        %945 = vmatprep.mubr.bf16.mxu0 0
        %946 = vmatmul.mubr.bf16.gmra.mrb[0].mxu0 %v908
        %v947 = vpop.f32.mrb[0].mxu0
        %v948 = vadd.f32 0.0, %v947
        %v949 = vpop.f32.mrb[0].mxu0
        %v950 = vpop.f32.mrb[0].mxu0
        %v951 = vpop.f32.mrb[0].mxu0
        %952 = vdwg.mxu0
        %v954 = vsel %vm859, %v852, 0
        %v957 = vsel %vm863, %v857, 0
        %959 = vmatprep.subr.bf16.mxu0 0
        %960 = vmatpush1.bf16.msra.mxu0 %v957
        %961 = vmatprep.subr.bf16.mxu0 0
        %962 = vmatpush1.bf16.msra.mxu0 0
        %963 = vmatprep.subr.bf16.mxu0 0
        %964 = vmatpush1.bf16.msra.mxu0 0
        %965 = vmatprep.subr.bf16.mxu0 0
        %966 = vmatpush1.bf16.msra.mxu0 0
        %967 = vmatprep.subr.bf16.mxu0 0
        %968 = vmatpush1.bf16.msra.mxu0 0
        %969 = vmatprep.subr.bf16.mxu0 0
        %970 = vmatpush1.bf16.msra.mxu0 0
        %971 = vmatprep.subr.bf16.mxu0 0
        %972 = vmatpush1.bf16.msra.mxu0 0
        %973 = vmatprep.subr.bf16.mxu0 0
        %974 = vmatpush1.bf16.msra.mxu0 0
        %975 = vmatprep.subr.bf16.mxu0 0
        %976 = vmatpush1.bf16.msra.mxu0 0
        %977 = vmatprep.subr.bf16.mxu0 0
        %978 = vmatpush1.bf16.msra.mxu0 0
        %979 = vmatprep.subr.bf16.mxu0 0
        %980 = vmatpush1.bf16.msra.mxu0 0
        %981 = vmatprep.subr.bf16.mxu0 0
        %982 = vmatpush1.bf16.msra.mxu0 0
        %983 = vmatprep.subr.bf16.mxu0 0
        %984 = vmatpush1.bf16.msra.mxu0 0
        %985 = vmatprep.subr.bf16.mxu0 0
        %986 = vmatpush1.bf16.msra.mxu0 0
        %987 = vmatprep.subr.bf16.mxu0 0
        %988 = vmatpush1.bf16.msra.mxu0 0
        %989 = vmatprep.subr.bf16.mxu0 0
        %990 = vmatpush1.bf16.msra.mxu0 0
        %991 = vmatprep.mubr.bf16.mxu0 0
        %992 = vmatmul.mubr.bf16.gmra.mrb[0].mxu0 %v954
        %v993 = vpop.f32.mrb[0].mxu0
        %v994 = vadd.f32 0.0, %v993
        %v995 = vpop.f32.mrb[0].mxu0
        %v996 = vpop.f32.mrb[0].mxu0
        %v997 = vpop.f32.mrb[0].mxu0
        %998 = vdwg.mxu0
        %v1000 = vsel %vm859, %v854, 0
        %v1003 = vsel %vm863, %v858, 0
        %1005 = vmatprep.subr.bf16.mxu0 0
        %1006 = vmatpush1.bf16.msra.mxu0 %v1003
        %1007 = vmatprep.subr.bf16.mxu0 0
        %1008 = vmatpush1.bf16.msra.mxu0 0
        %1009 = vmatprep.subr.bf16.mxu0 0
        %1010 = vmatpush1.bf16.msra.mxu0 0
        %1011 = vmatprep.subr.bf16.mxu0 0
        %1012 = vmatpush1.bf16.msra.mxu0 0
        %1013 = vmatprep.subr.bf16.mxu0 0
        %1014 = vmatpush1.bf16.msra.mxu0 0
        %1015 = vmatprep.subr.bf16.mxu0 0
        %1016 = vmatpush1.bf16.msra.mxu0 0
        %1017 = vmatprep.subr.bf16.mxu0 0
        %1018 = vmatpush1.bf16.msra.mxu0 0
        %1019 = vmatprep.subr.bf16.mxu0 0
        %1020 = vmatpush1.bf16.msra.mxu0 0
        %1021 = vmatprep.subr.bf16.mxu0 0
        %1022 = vmatpush1.bf16.msra.mxu0 0
        %1023 = vmatprep.subr.bf16.mxu0 0
        %1024 = vmatpush1.bf16.msra.mxu0 0
        %1025 = vmatprep.subr.bf16.mxu0 0
        %1026 = vmatpush1.bf16.msra.mxu0 0
        %1027 = vmatprep.subr.bf16.mxu0 0
        %1028 = vmatpush1.bf16.msra.mxu0 0
        %1029 = vmatprep.subr.bf16.mxu0 0
        %1030 = vmatpush1.bf16.msra.mxu0 0
        %1031 = vmatprep.subr.bf16.mxu0 0
        %1032 = vmatpush1.bf16.msra.mxu0 0
        %1033 = vmatprep.subr.bf16.mxu0 0
        %1034 = vmatpush1.bf16.msra.mxu0 0
        %1035 = vmatprep.subr.bf16.mxu0 0
        %1036 = vmatpush1.bf16.msra.mxu0 0
        %1037 = vmatprep.mubr.bf16.mxu0 0
        %1038 = vmatmul.mubr.bf16.gmra.mrb[0].mxu0 %v1000
        %v1039 = vpop.f32.mrb[0].mxu0
        %v1040 = vadd.f32 0.0, %v1039
        %v1041 = vpop.f32.mrb[0].mxu0
        %v1042 = vpop.f32.mrb[0].mxu0
        %v1043 = vpop.f32.mrb[0].mxu0
        %1044 = vdwg.mxu0
        %vm1045 = vcmask 130048
        %v1046 = vsel %vm1045, %v902, -inf
        %1047 = vmax.xlane.f32.xlu0 %v1046
        %v1048 = vpop.xlane.xlu0 %1047
        %v1049 = vsel %vm1045, %v948, -inf
        %1050 = vmax.xlane.f32.xlu0 %v1049
        %v1051 = vpop.xlane.xlu0 %1050
        %v1052 = vsel %vm1045, %v994, -inf
        %1053 = vmax.xlane.f32.xlu0 %v1052
        %v1054 = vpop.xlane.xlu0 %1053
        %v1055 = vsel %vm1045, %v1040, -inf
        %1056 = vmax.xlane.f32.xlu0 %v1055
        %v1057 = vpop.xlane.xlu0 %1056
        %v1058 = vsub.f32 %v902, %v1048
        %v1059 = vsub.f32 %v948, %v1051
        %v1060 = vsub.f32 %v994, %v1054
        %v1061 = vsub.f32 %v1040, %v1057
        %v1062 = vmul.f32 %v1058, 1.442695
        %v1063 = vpow.pop %v1062
        %v1064 = vmul.f32 %v1059, 1.442695
        %v1065 = vpow.pop %v1064
        %v1066 = vmul.f32 %v1060, 1.442695
        %v1067 = vpow.pop %v1066
        %v1068 = vmul.f32 %v1061, 1.442695
        %v1069 = vpow.pop %v1068
        %v1070 = vsel %vm1045, %v1063, 0.0
        %1071 = vadd.xlane.f32.xlu0 %v1070
        %v1072 = vpop.xlane.xlu0 %1071
        %v1073 = vsel %vm1045, %v1065, 0.0
        %1074 = vadd.xlane.f32.xlu0 %v1073
        %v1075 = vpop.xlane.xlu0 %1074
        %v1076 = vsel %vm1045, %v1067, 0.0
        %1077 = vadd.xlane.f32.xlu0 %v1076
        %v1078 = vpop.xlane.xlu0 %1077
        %v1079 = vsel %vm1045, %v1069, 0.0
        %1080 = vadd.xlane.f32.xlu0 %v1079
        %v1081 = vpop.xlane.xlu0 %1080
        %v1082 = vrcp.pop %v1072
        %v1083 = vrcp.pop %v1075
        %v1084 = vrcp.pop %v1078
        %v1085 = vrcp.pop %v1081
        %v1086 = vmul.f32 %v1063, %v1082
        %v1087 = vmul.f32 %v1065, %v1083
        %v1088 = vmul.f32 %v1067, %v1084
        %v1089 = vmul.f32 %v1069, %v1085
        %v1090 = vpack.c.bf16 %v1086, %v1086
        %v1091 = vpack.c.bf16 %v1087, %v1087
        %v1092 = vpack.c.bf16 %v1088, %v1088
        %v1093 = vpack.c.bf16 %v1089, %v1089
        %v1094 = vld [vmem:[#allocation3] sm:$0xff]
        %v1095 = vld [vmem:[#allocation3 + $0x8] sm:$0xff]
        %v1096 = vld [vmem:[#allocation3 + $0x10] sm:$0xff]
        %v1097 = vld [vmem:[#allocation3 + $0x18] sm:$0xff]
        %v1099 = vsel %vm1045, %v1090, 0
        %1101 = vmatprep.subr.bf16.mxu0 0
        %1102 = vmatpush1.bf16.msra.mxu0 %v1094
        %1103 = vmatprep.subr.bf16.mxu0 0
        %1104 = vmatpush1.bf16.msra.mxu0 0
        %1105 = vmatprep.subr.bf16.mxu0 0
        %1106 = vmatpush1.bf16.msra.mxu0 0
        %1107 = vmatprep.subr.bf16.mxu0 0
        %1108 = vmatpush1.bf16.msra.mxu0 0
        %1109 = vmatprep.subr.bf16.mxu0 0
        %1110 = vmatpush1.bf16.msra.mxu0 0
        %1111 = vmatprep.subr.bf16.mxu0 0
        %1112 = vmatpush1.bf16.msra.mxu0 0
        %1113 = vmatprep.subr.bf16.mxu0 0
        %1114 = vmatpush1.bf16.msra.mxu0 0
        %1115 = vmatprep.subr.bf16.mxu0 0
        %1116 = vmatpush1.bf16.msra.mxu0 0
        %1117 = vmatprep.subr.bf16.mxu0 0
        %1118 = vmatpush1.bf16.msra.mxu0 0
        %1119 = vmatprep.subr.bf16.mxu0 0
        %1120 = vmatpush1.bf16.msra.mxu0 0
        %1121 = vmatprep.subr.bf16.mxu0 0
        %1122 = vmatpush1.bf16.msra.mxu0 0
        %1123 = vmatprep.subr.bf16.mxu0 0
        %1124 = vmatpush1.bf16.msra.mxu0 0
        %1125 = vmatprep.subr.bf16.mxu0 0
        %1126 = vmatpush1.bf16.msra.mxu0 0
        %1127 = vmatprep.subr.bf16.mxu0 0
        %1128 = vmatpush1.bf16.msra.mxu0 0
        %1129 = vmatprep.subr.bf16.mxu0 0
        %1130 = vmatpush1.bf16.msra.mxu0 0
        %1131 = vmatprep.subr.bf16.mxu0 0
        %1132 = vmatpush1.bf16.msra.mxu0 0
        %1133 = vmatprep.mubr.bf16.mxu0 0
        %1134 = vmatmul.mubr.bf16.gmra.mrb[0].mxu0 %v1099
        %v1135 = vpop.f32.mrb[0].mxu0
        %v1136 = vadd.f32 0.0, %v1135
        %v1137 = vpop.f32.mrb[0].mxu0
        %v1138 = vpop.f32.mrb[0].mxu0
        %v1139 = vpop.f32.mrb[0].mxu0
        %1140 = vdwg.mxu0
        %v1142 = vsel %vm1045, %v1091, 0
        %1144 = vmatprep.subr.bf16.mxu0 0
        %1145 = vmatpush1.bf16.msra.mxu0 %v1095
        %1146 = vmatprep.subr.bf16.mxu0 0
        %1147 = vmatpush1.bf16.msra.mxu0 0
        %1148 = vmatprep.subr.bf16.mxu0 0
        %1149 = vmatpush1.bf16.msra.mxu0 0
        %1150 = vmatprep.subr.bf16.mxu0 0
        %1151 = vmatpush1.bf16.msra.mxu0 0
        %1152 = vmatprep.subr.bf16.mxu0 0
        %1153 = vmatpush1.bf16.msra.mxu0 0
        %1154 = vmatprep.subr.bf16.mxu0 0
        %1155 = vmatpush1.bf16.msra.mxu0 0
        %1156 = vmatprep.subr.bf16.mxu0 0
        %1157 = vmatpush1.bf16.msra.mxu0 0
        %1158 = vmatprep.subr.bf16.mxu0 0
        %1159 = vmatpush1.bf16.msra.mxu0 0
        %1160 = vmatprep.subr.bf16.mxu0 0
        %1161 = vmatpush1.bf16.msra.mxu0 0
        %1162 = vmatprep.subr.bf16.mxu0 0
        %1163 = vmatpush1.bf16.msra.mxu0 0
        %1164 = vmatprep.subr.bf16.mxu0 0
        %1165 = vmatpush1.bf16.msra.mxu0 0
        %1166 = vmatprep.subr.bf16.mxu0 0
        %1167 = vmatpush1.bf16.msra.mxu0 0
        %1168 = vmatprep.subr.bf16.mxu0 0
        %1169 = vmatpush1.bf16.msra.mxu0 0
        %1170 = vmatprep.subr.bf16.mxu0 0
        %1171 = vmatpush1.bf16.msra.mxu0 0
        %1172 = vmatprep.subr.bf16.mxu0 0
        %1173 = vmatpush1.bf16.msra.mxu0 0
        %1174 = vmatprep.subr.bf16.mxu0 0
        %1175 = vmatpush1.bf16.msra.mxu0 0
        %1176 = vmatprep.mubr.bf16.mxu0 0
        %1177 = vmatmul.mubr.bf16.gmra.mrb[0].mxu0 %v1142
        %v1178 = vpop.f32.mrb[0].mxu0
        %v1179 = vadd.f32 0.0, %v1178
        %v1180 = vpop.f32.mrb[0].mxu0
        %v1181 = vpop.f32.mrb[0].mxu0
        %v1182 = vpop.f32.mrb[0].mxu0
        %1183 = vdwg.mxu0
        %v1185 = vsel %vm1045, %v1092, 0
        %1187 = vmatprep.subr.bf16.mxu0 0
        %1188 = vmatpush1.bf16.msra.mxu0 %v1096
        %1189 = vmatprep.subr.bf16.mxu0 0
        %1190 = vmatpush1.bf16.msra.mxu0 0
        %1191 = vmatprep.subr.bf16.mxu0 0
        %1192 = vmatpush1.bf16.msra.mxu0 0
        %1193 = vmatprep.subr.bf16.mxu0 0
        %1194 = vmatpush1.bf16.msra.mxu0 0
        %1195 = vmatprep.subr.bf16.mxu0 0
        %1196 = vmatpush1.bf16.msra.mxu0 0
        %1197 = vmatprep.subr.bf16.mxu0 0
        %1198 = vmatpush1.bf16.msra.mxu0 0
        %1199 = vmatprep.subr.bf16.mxu0 0
        %1200 = vmatpush1.bf16.msra.mxu0 0
        %1201 = vmatprep.subr.bf16.mxu0 0
        %1202 = vmatpush1.bf16.msra.mxu0 0
        %1203 = vmatprep.subr.bf16.mxu0 0
        %1204 = vmatpush1.bf16.msra.mxu0 0
        %1205 = vmatprep.subr.bf16.mxu0 0
        %1206 = vmatpush1.bf16.msra.mxu0 0
        %1207 = vmatprep.subr.bf16.mxu0 0
        %1208 = vmatpush1.bf16.msra.mxu0 0
        %1209 = vmatprep.subr.bf16.mxu0 0
        %1210 = vmatpush1.bf16.msra.mxu0 0
        %1211 = vmatprep.subr.bf16.mxu0 0
        %1212 = vmatpush1.bf16.msra.mxu0 0
        %1213 = vmatprep.subr.bf16.mxu0 0
        %1214 = vmatpush1.bf16.msra.mxu0 0
        %1215 = vmatprep.subr.bf16.mxu0 0
        %1216 = vmatpush1.bf16.msra.mxu0 0
        %1217 = vmatprep.subr.bf16.mxu0 0
        %1218 = vmatpush1.bf16.msra.mxu0 0
        %1219 = vmatprep.mubr.bf16.mxu0 0
        %1220 = vmatmul.mubr.bf16.gmra.mrb[0].mxu0 %v1185
        %v1221 = vpop.f32.mrb[0].mxu0
        %v1222 = vadd.f32 0.0, %v1221
        %v1223 = vpop.f32.mrb[0].mxu0
        %v1224 = vpop.f32.mrb[0].mxu0
        %v1225 = vpop.f32.mrb[0].mxu0
        %1226 = vdwg.mxu0
        %v1228 = vsel %vm1045, %v1093, 0
        %1230 = vmatprep.subr.bf16.mxu0 0
        %1231 = vmatpush1.bf16.msra.mxu0 %v1097
        %1232 = vmatprep.subr.bf16.mxu0 0
        %1233 = vmatpush1.bf16.msra.mxu0 0
        %1234 = vmatprep.subr.bf16.mxu0 0
        %1235 = vmatpush1.bf16.msra.mxu0 0
        %1236 = vmatprep.subr.bf16.mxu0 0
        %1237 = vmatpush1.bf16.msra.mxu0 0
        %1238 = vmatprep.subr.bf16.mxu0 0
        %1239 = vmatpush1.bf16.msra.mxu0 0
        %1240 = vmatprep.subr.bf16.mxu0 0
        %1241 = vmatpush1.bf16.msra.mxu0 0
        %1242 = vmatprep.subr.bf16.mxu0 0
        %1243 = vmatpush1.bf16.msra.mxu0 0
        %1244 = vmatprep.subr.bf16.mxu0 0
        %1245 = vmatpush1.bf16.msra.mxu0 0
        %1246 = vmatprep.subr.bf16.mxu0 0
        %1247 = vmatpush1.bf16.msra.mxu0 0
        %1248 = vmatprep.subr.bf16.mxu0 0
        %1249 = vmatpush1.bf16.msra.mxu0 0
        %1250 = vmatprep.subr.bf16.mxu0 0
        %1251 = vmatpush1.bf16.msra.mxu0 0
        %1252 = vmatprep.subr.bf16.mxu0 0
        %1253 = vmatpush1.bf16.msra.mxu0 0
        %1254 = vmatprep.subr.bf16.mxu0 0
        %1255 = vmatpush1.bf16.msra.mxu0 0
        %1256 = vmatprep.subr.bf16.mxu0 0
        %1257 = vmatpush1.bf16.msra.mxu0 0
        %1258 = vmatprep.subr.bf16.mxu0 0
        %1259 = vmatpush1.bf16.msra.mxu0 0
        %1260 = vmatprep.subr.bf16.mxu0 0
        %1261 = vmatpush1.bf16.msra.mxu0 0
        %1262 = vmatprep.mubr.bf16.mxu0 0
        %1263 = vmatmul.mubr.bf16.gmra.mrb[0].mxu0 %v1228
        %v1264 = vpop.f32.mrb[0].mxu0
        %v1265 = vadd.f32 0.0, %v1264
        %v1266 = vpop.f32.mrb[0].mxu0
        %v1267 = vpop.f32.mrb[0].mxu0
        %v1268 = vpop.f32.mrb[0].mxu0
        %1269 = vdwg.mxu0
        %v1270 = vpack.c.bf16 %v1136, %v1136
        %v1271 = vpack.c.bf16 %v1179, %v1179
        %v1272 = vpack.c.bf16 %v1222, %v1222
        %v1273 = vpack.c.bf16 %v1265, %v1265
        %1275 = vrot.lane.b32.xlu0 %v1271, 8
        %v1276 = vpop.permute.xlu0 %1275
        %1278 = vrot.lane.b32.xlu0 %v1272, 16
        %v1279 = vpop.permute.xlu0 %1278
        %1281 = vrot.lane.b32.xlu0 %v1273, 24
        %v1282 = vpop.permute.xlu0 %1281
        %v1285 = vsel %vm859, %v1270, %v1276
        %v1287 = vsel %vm1045, %v1285, %v1279
        %vm1288 = vcmask 195584
        %v1290 = vsel %vm1288, %v1287, %v1282
        %v1291 = vld [vmem:[%s7] sm:$0xf]
        %v1292 = vld [vmem:[%s7 + $0x4] sm:$0xf]
        %v1293 = vld [vmem:[%s7 + $0x8] sm:$0xf]
        %v1294 = vld [vmem:[%s7 + $0xc] sm:$0xf]
        %v1295 = vld [vmem:[#allocation9] sm:$0x1]
        %v1297 = vlaneseq
        %v1298 = vshrl.u32 %v1297, 7
        %v1299 = vsub.s32 0, %v1298
        %v1300 = vrot.slane %v1295, %v1299
        %v1306 = vunpack.c.l.b16 %v1291
        %v1307 = vunpack.c.l.b16 %v1292
        %v1308 = vunpack.c.l.b16 %v1293
        %v1309 = vunpack.c.l.b16 %v1294
        %v1310 = vpack.c.b16 %v1307, %v1306
        %v1311 = vpack.c.b16 %v1309, %v1308
        %v1314 = vsel %vm750, %v1290, 0
        %1316 = vmatprep.subr.bf16.mxu0 0
        %1317 = vmatpush1.bf16.msra.mxu0 %v1310
        %1318 = vmatprep.subr.bf16.mxu0 0
        %1319 = vmatpush1.bf16.msra.mxu0 %v1311
        %1320 = vmatprep.subr.bf16.mxu0 0
        %1321 = vmatpush1.bf16.msra.mxu0 0
        %1322 = vmatprep.subr.bf16.mxu0 0
        %1323 = vmatpush1.bf16.msra.mxu0 0
        %1324 = vmatprep.subr.bf16.mxu0 0
        %1325 = vmatpush1.bf16.msra.mxu0 0
        %1326 = vmatprep.subr.bf16.mxu0 0
        %1327 = vmatpush1.bf16.msra.mxu0 0
        %1328 = vmatprep.subr.bf16.mxu0 0
        %1329 = vmatpush1.bf16.msra.mxu0 0
        %1330 = vmatprep.subr.bf16.mxu0 0
        %1331 = vmatpush1.bf16.msra.mxu0 0
        %1332 = vmatprep.subr.bf16.mxu0 0
        %1333 = vmatpush1.bf16.msra.mxu0 0
        %1334 = vmatprep.subr.bf16.mxu0 0
        %1335 = vmatpush1.bf16.msra.mxu0 0
        %1336 = vmatprep.subr.bf16.mxu0 0
        %1337 = vmatpush1.bf16.msra.mxu0 0
        %1338 = vmatprep.subr.bf16.mxu0 0
        %1339 = vmatpush1.bf16.msra.mxu0 0
        %1340 = vmatprep.subr.bf16.mxu0 0
        %1341 = vmatpush1.bf16.msra.mxu0 0
        %1342 = vmatprep.subr.bf16.mxu0 0
        %1343 = vmatpush1.bf16.msra.mxu0 0
        %1344 = vmatprep.subr.bf16.mxu0 0
        %1345 = vmatpush1.bf16.msra.mxu0 0
        %1346 = vmatprep.subr.bf16.mxu0 0
        %1347 = vmatpush1.bf16.msra.mxu0 0
        %1348 = vmatprep.mubr.bf16.mxu0 0
        %1349 = vmatmul.mubr.bf16.gmra.mrb[0].mxu0 %v1314
        %v1350 = vpop.f32.mrb[0].mxu0
        %v1351 = vadd.f32 %v1300, %v1350
        %v1352 = vpop.f32.mrb[0].mxu0
        %v1353 = vpop.f32.mrb[0].mxu0
        %v1354 = vpop.f32.mrb[0].mxu0
        %1355 = vdwg.mxu0
        %v1356 = vadd.f32 %v747, %v1351
        %v1357 = vld [vmem:[#allocation10] sm:$0x1]
        %v1358 = vld [vmem:[%s10] sm:$0x1]
        %v1359 = vsel %vm750, %v1356, 0.0
        %1360 = vadd.xlane.f32.xlu0 %v1359
        %v1361 = vpop.xlane.xlu0 %1360
        %v1362 = vmul.f32 %v1361, %v754
        %v1363 = vsub.f32 %v1356, %v1362
        %v1364 = vmul.f32 %v1363, %v1363
        %v1365 = vsel %vm750, %v1364, 0.0
        %1366 = vadd.xlane.f32.xlu0 %v1365
        %v1367 = vpop.xlane.xlu0 %1366
        %v1368 = vmul.f32 %v1367, %v754
        %v1369 = vadd.f32 %v1368, 1e-05
        %v1370 = vrsqrt.pop %v1369
        %v1371 = vmul.f32 %v1363, %v1370
        %v1373 = vlaneseq
        %v1374 = vshrl.u32 %v1373, 7
        %v1375 = vsub.s32 0, %v1374
        %v1376 = vrot.slane %v1357, %v1375
        %v1378 = vmul.f32 %v1371, %v1376
        %v1380 = vlaneseq
        %v1381 = vshrl.u32 %v1380, 7
        %v1382 = vsub.s32 0, %v1381
        %v1383 = vrot.slane %v1358, %v1382
        %v1385 = vadd.f32 %v1378, %v1383
        %v1386 = vpack.c.bf16 %v1385, %v1385
        %v1387 = vld [vmem:[%s11] sm:$0xf]
        %v1388 = vld [vmem:[%s11 + $0x4] sm:$0xf]
        %v1389 = vld [vmem:[%s11 + $0x8] sm:$0xf]
        %v1390 = vld [vmem:[%s11 + $0xc] sm:$0xf]
        %v1391 = vld [vmem:[%s12] sm:$0x1]
        %v1393 = vlaneseq
        %v1394 = vshrl.u32 %v1393, 7
        %v1395 = vsub.s32 0, %v1394
        %v1396 = vrot.slane %v1391, %v1395
        %v1402 = vunpack.c.l.b16 %v1387
        %v1403 = vunpack.c.l.b16 %v1388
        %v1404 = vunpack.c.l.b16 %v1389
        %v1405 = vunpack.c.l.b16 %v1390
        %v1406 = vpack.c.b16 %v1403, %v1402
        %v1407 = vpack.c.b16 %v1405, %v1404
        %v1411 = vsel %vm750, %v1386, 0
        %1413 = vmatprep.subr.bf16.mxu0 0
        %1414 = vmatpush1.bf16.msra.mxu0 %v1406
        %1415 = vmatprep.subr.bf16.mxu0 0
        %1416 = vmatpush1.bf16.msra.mxu0 %v1407
        %1417 = vmatprep.subr.bf16.mxu0 0
        %1418 = vmatpush1.bf16.msra.mxu0 0
        %1419 = vmatprep.subr.bf16.mxu0 0
        %1420 = vmatpush1.bf16.msra.mxu0 0
        %1421 = vmatprep.subr.bf16.mxu0 0
        %1422 = vmatpush1.bf16.msra.mxu0 0
        %1423 = vmatprep.subr.bf16.mxu0 0
        %1424 = vmatpush1.bf16.msra.mxu0 0
        %1425 = vmatprep.subr.bf16.mxu0 0
        %1426 = vmatpush1.bf16.msra.mxu0 0
        %1427 = vmatprep.subr.bf16.mxu0 0
        %1428 = vmatpush1.bf16.msra.mxu0 0
        %1429 = vmatprep.subr.bf16.mxu0 0
        %1430 = vmatpush1.bf16.msra.mxu0 0
        %1431 = vmatprep.subr.bf16.mxu0 0
        %1432 = vmatpush1.bf16.msra.mxu0 0
        %1433 = vmatprep.subr.bf16.mxu0 0
        %1434 = vmatpush1.bf16.msra.mxu0 0
        %1435 = vmatprep.subr.bf16.mxu0 0
        %1436 = vmatpush1.bf16.msra.mxu0 0
        %1437 = vmatprep.subr.bf16.mxu0 0
        %1438 = vmatpush1.bf16.msra.mxu0 0
        %1439 = vmatprep.subr.bf16.mxu0 0
        %1440 = vmatpush1.bf16.msra.mxu0 0
        %1441 = vmatprep.subr.bf16.mxu0 0
        %1442 = vmatpush1.bf16.msra.mxu0 0
        %1443 = vmatprep.subr.bf16.mxu0 0
        %1444 = vmatpush1.bf16.msra.mxu0 0
        %1445 = vmatprep.mubr.bf16.mxu0 0
        %1446 = vmatmul.mubr.bf16.gmra.mrb[0].mxu0 %v1411
        %v1447 = vpop.f32.mrb[0].mxu0
        %v1448 = vadd.f32 %v1396, %v1447
        %v1449 = vpop.f32.mrb[0].mxu0
        %v1450 = vpop.f32.mrb[0].mxu0
        %v1451 = vpop.f32.mrb[0].mxu0
        %1452 = vdwg.mxu0
        %v1453 = vmul.f32 %v1448, 0.5
        %v1454 = vmul.f32 %v1448, %v1448
        %v1455 = vmul.f32 %v1454, %v1448
        %v1456 = vmul.f32 %v1455, 0.044715
        %v1457 = vadd.f32 %v1448, %v1456
        %v1458 = vmul.f32 %v1457, 0.7978846
        %v1459 = vtanh.pop %v1458
        %v1460 = vadd.f32 %v1459, 1.0
        %v1461 = vmul.f32 %v1453, %v1460
        %v1462 = vpack.c.bf16 %v1461, %v1461
        %v1463 = vld [vmem:[%s13] sm:$0xf]
        %v1464 = vld [vmem:[%s13 + $0x4] sm:$0xf]
        %v1465 = vld [vmem:[%s13 + $0x8] sm:$0xf]
        %v1466 = vld [vmem:[%s13 + $0xc] sm:$0xf]
        %v1467 = vld [vmem:[%s13 + $0x10] sm:$0xf]
        %v1468 = vld [vmem:[%s13 + $0x14] sm:$0xf]
        %v1469 = vld [vmem:[%s13 + $0x18] sm:$0xf]
        %v1470 = vld [vmem:[%s13 + $0x1c] sm:$0xf]
        %v1471 = vld [vmem:[%s13 + $0x20] sm:$0xf]
        %v1472 = vld [vmem:[%s13 + $0x24] sm:$0xf]
        %v1473 = vld [vmem:[%s13 + $0x28] sm:$0xf]
        %v1474 = vld [vmem:[%s13 + $0x2c] sm:$0xf]
        %v1475 = vld [vmem:[%s13 + $0x30] sm:$0xf]
        %v1476 = vld [vmem:[%s13 + $0x34] sm:$0xf]
        %v1477 = vld [vmem:[%s13 + $0x38] sm:$0xf]
        %v1478 = vld [vmem:[%s13 + $0x3c] sm:$0xf]
        %v1479 = vld [vmem:[%s14] sm:$0x1]
        %v1481 = vlaneseq
        %v1482 = vshrl.u32 %v1481, 7
        %v1483 = vsub.s32 0, %v1482
        %v1484 = vrot.slane %v1479, %v1483
        %v1502 = vunpack.c.l.b16 %v1463
        %v1503 = vunpack.c.l.b16 %v1464
        %v1504 = vunpack.c.l.b16 %v1465
        %v1505 = vunpack.c.l.b16 %v1466
        %v1506 = vunpack.c.l.b16 %v1467
        %v1507 = vunpack.c.l.b16 %v1468
        %v1508 = vunpack.c.l.b16 %v1469
        %v1509 = vunpack.c.l.b16 %v1470
        %v1510 = vunpack.c.l.b16 %v1471
        %v1511 = vunpack.c.l.b16 %v1472
        %v1512 = vunpack.c.l.b16 %v1473
        %v1513 = vunpack.c.l.b16 %v1474
        %v1514 = vunpack.c.l.b16 %v1475
        %v1515 = vunpack.c.l.b16 %v1476
        %v1516 = vunpack.c.l.b16 %v1477
        %v1517 = vunpack.c.l.b16 %v1478
        %v1518 = vpack.c.b16 %v1503, %v1502
        %v1519 = vpack.c.b16 %v1505, %v1504
        %v1520 = vpack.c.b16 %v1507, %v1506
        %v1521 = vpack.c.b16 %v1509, %v1508
        %v1522 = vpack.c.b16 %v1511, %v1510
        %v1523 = vpack.c.b16 %v1513, %v1512
        %v1524 = vpack.c.b16 %v1515, %v1514
        %v1525 = vpack.c.b16 %v1517, %v1516
        %1534 = vmatprep.subr.bf16.mxu0 0
        %1535 = vmatpush1.bf16.msra.mxu0 %v1518
        %1536 = vmatprep.subr.bf16.mxu0 0
        %1537 = vmatpush1.bf16.msra.mxu0 %v1519
        %1538 = vmatprep.subr.bf16.mxu0 0
        %1539 = vmatpush1.bf16.msra.mxu0 %v1520
        %1540 = vmatprep.subr.bf16.mxu0 0
        %1541 = vmatpush1.bf16.msra.mxu0 %v1521
        %1542 = vmatprep.subr.bf16.mxu0 0
        %1543 = vmatpush1.bf16.msra.mxu0 %v1522
        %1544 = vmatprep.subr.bf16.mxu0 0
        %1545 = vmatpush1.bf16.msra.mxu0 %v1523
        %1546 = vmatprep.subr.bf16.mxu0 0
        %1547 = vmatpush1.bf16.msra.mxu0 %v1524
        %1548 = vmatprep.subr.bf16.mxu0 0
        %1549 = vmatpush1.bf16.msra.mxu0 %v1525
        %1550 = vmatprep.subr.bf16.mxu0 0
        %1551 = vmatpush1.bf16.msra.mxu0 0
        %1552 = vmatprep.subr.bf16.mxu0 0
        %1553 = vmatpush1.bf16.msra.mxu0 0
        %1554 = vmatprep.subr.bf16.mxu0 0
        %1555 = vmatpush1.bf16.msra.mxu0 0
        %1556 = vmatprep.subr.bf16.mxu0 0
        %1557 = vmatpush1.bf16.msra.mxu0 0
        %1558 = vmatprep.subr.bf16.mxu0 0
        %1559 = vmatpush1.bf16.msra.mxu0 0
        %1560 = vmatprep.subr.bf16.mxu0 0
        %1561 = vmatpush1.bf16.msra.mxu0 0
        %1562 = vmatprep.subr.bf16.mxu0 0
        %1563 = vmatpush1.bf16.msra.mxu0 0
        %1564 = vmatprep.subr.bf16.mxu0 0
        %1565 = vmatpush1.bf16.msra.mxu0 0
        %1566 = vmatprep.mubr.bf16.mxu0 0
        %1567 = vmatmul.mubr.bf16.gmra.mrb[0].mxu0 %v1462
        %v1568 = vpop.f32.mrb[0].mxu0
        %v1569 = vadd.f32 %v1484, %v1568
        %v1570 = vpop.f32.mrb[0].mxu0
        %v1571 = vpop.f32.mrb[0].mxu0
        %v1572 = vpop.f32.mrb[0].mxu0
        %1573 = vdwg.mxu0
        %v1574 = vadd.f32 %v1356, %v1569
        %1575 = vst.msk [vmem:[%s552] sm:$0xff] %vm750, %v1574
        %s1576 = sand.u32 %s374, 1
        %s1577 = scalar_lea.sflag [#allocation6], %s1576
        %s1578 = sand.u32 %s374, 1
        %s1579 = smul.addr %s1578, 8
        %s1580 = scalar_lea.vmem [#allocation12], %s1579
        // Predicated region
        $region101: #{tpu_custom_call.1} parent=79 // pred_check
          %p1581 = pneg %p384
        $region102: #{tpu_custom_call.1} parent=79 // pred_check_branch
          %1583 = sbr.rel (%p1581) target = $region104
        $region103: #{tpu_custom_call.1} parent=79 // pred_region
          %s1585 = ssub.s32 128, 128
          %1586 = vsyncadd %s1577, %s1585
          %s1587 = smul.addr %s36, 2
          %s1588 = sadd.s32 %s37, %s1587
          %s1589 = smul.addr %s1588, 128
          %s1590 = scalar_lea.hbm %s15, %s1589
          %s1592 = sshll.u32 %s1580, 4
          %s1593 = int_to_ptr.vmem [resolvable:$true] %s1592
          %1595 = dma.vmem_to_hbm [thread:$0]  %s1593, 128, %s1590, %s1577
        $region104: #{tpu_custom_call.1} parent=79 // pred_fallthru
          _
      $region80: #{tpu_custom_call.1} parent=5 // pred_fallthru
        _
      %p1596 = scmp.le.s32.totalorder 2, %s27
      // Predicated region
      $region105: #{tpu_custom_call.1} parent=5 // pred_check
        %p1597 = pneg %p1596
      $region106: #{tpu_custom_call.1} parent=5 // pred_check_branch
        %1599 = sbr.rel (%p1597) target = $region108
      $region107: #{tpu_custom_call.1} parent=5 // pred_region
        %s1600 = ssub.s32 %s27, 2
        // Predicated region
        $region109: #{tpu_custom_call.1} parent=107 // pred_check
          %p1601 = pneg %p390
        $region110: #{tpu_custom_call.1} parent=107 // pred_check_branch
          %1603 = sbr.rel (%p1601) target = $region112
        $region111: #{tpu_custom_call.1} parent=107 // pred_region
          %s1604 = sand.u32 %s375, 1
          %s1605 = scalar_lea.sflag [#allocation6], %s1604
          %s1606 = sand.u32 %s375, 1
          %s1607 = smul.addr %s1606, 8
          %s1608 = scalar_lea.vmem [#allocation12], %s1607
          %1609 = dma.done %s1605, 128
        $region112: #{tpu_custom_call.1} parent=107 // pred_fallthru
          _
      $region108: #{tpu_custom_call.1} parent=5 // pred_fallthru
        _
    $region6: #{tpu_custom_call.1} parent=1 // loop_footer
      %s31 = sadd.s32 1, %s27
    $region7: #{tpu_custom_call.1} parent=1 // loop_footer_branch
      %26 = sbr.rel target = $region3
    $region8: #{tpu_custom_call.1} parent=1 // loop_exit
      _
    %1610 = vsyncpa [#allocation5], 1
    %s1611 = scalar_lea.sflag [#allocation5], 1
    %1612 = vsyncpa %s1611, 1
    %1613 = vsyncpa [#allocation8], 1
    %1614 = vsyncpa [#allocation11], 1
    %1615 = vsyncpa [#allocation6], 1
    %s1616 = scalar_lea.sflag [#allocation6], 1
    %1617 = vsyncpa %s1616, 1

</llo_original>
